<compile_context>
chip_gen: v5e
topology: v5e:2x2
jax: 0.10.0
libtpu: 0.0.40
codegen_flags: <defaults>
</compile_context>

<pallas_src>
import math

import jax
import jax.numpy as jnp
from jax.experimental import pallas as pl
from jax.experimental.pallas import tpu as pltpu


# ----------------------------------------------------------------------------
# Static layer configuration helpers
# ----------------------------------------------------------------------------
def _layer_channels(cin0, filters):
    """Per-conv (cin, cout, stride, norm, act) exactly as DiscriminatorUNet._build."""
    n = len(filters)
    cfgs = []
    for i in range(n):
        cfgs.append(dict(cin=cin0 if i == 0 else filters[i - 1],
                         cout=filters[i],
                         stride=2 if i < n - 1 else 1,
                         norm=i > 0,
                         act=True))
    cfgs.append(dict(cin=filters[-1], cout=1, stride=1, norm=False, act=False))
    return cfgs


def _spatial_metas(cfgs, H, W, k):
    """Add static padded / output spatial sizes for a given input resolution."""
    pad = k // 2
    metas, h, w = [], H, W
    for c in cfgs:
        hp, wp = h + 2 * pad, w + 2 * pad
        ho = (hp - k) // c["stride"] + 1
        wo = (wp - k) // c["stride"] + 1
        metas.append(dict(c, hp=hp, wp=wp, ho=ho, wo=wo, k=k, pad=pad))
        h, w = ho, wo
    return metas


# ----------------------------------------------------------------------------
# Fused whole-discriminator Pallas kernel (all layers + full batch per grid step)
# ----------------------------------------------------------------------------
def _make_fused_disc_kernel(metas, n_batch):
    L = len(metas)
    K = metas[0]["k"]
    PAD = metas[0]["pad"]
    N = n_batch

    def kernel(*refs):
        x_ref = refs[0]                  # (N, Hp0, Wp0, Cin0) padded input, f32
        wb = refs[1:1 + 2 * L]           # per layer: (K*K*Cin, Cout) bf16, (1, Cout) f32
        o_ref = refs[1 + 2 * L]          # (N, Ho_f*Wo_f*Cout_f) f32  (lane-dense head)
        scratch = refs[2 + 2 * L:]       # padded intermediate activations (VMEM, f32)

        src = x_ref
        for li, m in enumerate(metas):
            w_ref, b_ref = wb[2 * li], wb[2 * li + 1]
            ho, wo, cin, cout = m["ho"], m["wo"], m["cin"], m["cout"]
            stride = m["stride"]

            # im2col: the K*K taps are concatenated along the channel (lane) axis and
            # the spatial/batch dims are collapsed ONCE -> single MXU contraction with
            # M = N*Ho*Wo and K = K*K*Cin.
            taps = []
            for kh in range(K):
                for kw in range(K):
                    if stride == 1:
                        sl = src[:, pl.ds(kh, ho), pl.ds(kw, wo), :]
                    else:
                        sl = src[:, pl.ds(kh, ho, stride=stride),
                                 pl.ds(kw, wo, stride=stride), :]
                    taps.append(sl)
            patch = jnp.concatenate(taps, axis=-1).reshape(N * ho * wo, K * K * cin)
            if patch.dtype != jnp.bfloat16:
                patch = patch.astype(jnp.bfloat16)

            acc = jnp.dot(patch, w_ref[...], preferred_element_type=jnp.float32)
            acc = acc + b_ref[...]                                   # conv bias (f32)

            if m["norm"]:
                # InstanceNorm2d defaults: biased variance, eps=1e-5, no affine.
                # Two-pass (centered) variance on the f32 accumulator.
                a = acc.reshape(N, ho * wo, cout)
                mean = jnp.mean(a, axis=1, keepdims=True)
                cen = a - mean
                var = jnp.mean(cen * cen, axis=1, keepdims=True)
                a = cen * jax.lax.rsqrt(var + 1e-5)
            else:
                a = acc
            if m["act"]:
                a = jnp.where(a > 0, a, 0.2 * a)                     # LeakyReLU(0.2)

            if li < L - 1:
                dst = scratch[li]
                dt = dst.dtype
                hp, wp = ho + 2 * PAD, wo + 2 * PAD
                # Zero only the halo ring (interior is fully overwritten below) —
                # no full-buffer zero store per layer.
                dst[:, pl.ds(0, PAD), :, :] = jnp.zeros((N, PAD, wp, cout), dt)
                dst[:, pl.ds(ho + PAD, PAD), :, :] = jnp.zeros((N, PAD, wp, cout), dt)
                dst[:, :, pl.ds(0, PAD), :] = jnp.zeros((N, hp, PAD, cout), dt)
                dst[:, :, pl.ds(wo + PAD, PAD), :] = jnp.zeros((N, hp, PAD, cout), dt)
                # TODO(synk): interior store starts at sublane offset PAD=1 (masked
                # stores); a register-padded single full-tile store would remove it.
                dst[:, pl.ds(PAD, ho), pl.ds(PAD, wo), :] = \
                    a.astype(dt).reshape(N, ho, wo, cout)
                src = dst                                            # stays in VMEM
            else:
                # Lane-dense head write: (N, Ho_f*Wo_f*Cout_f) instead of last-dim 1.
                o_ref[...] = a.reshape(N, ho * wo * cout)

    return kernel


def fused_disc_forward(x_dn, stacked_params, metas):
    """x_dn: (D, N, H, W, Cin) NHWC f32 -> (D, N, Ho_f, Wo_f, Cout_f) f32.

    One pallas_call, grid=(D,), covers the full conv stack of D discriminators with
    the whole batch folded into each block.
    """
    D, N, H, W, Cin = x_dn.shape
    pad = metas[0]["pad"]
    hp0, wp0 = metas[0]["hp"], metas[0]["wp"]
    mL = metas[-1]
    ho_f, wo_f, cout_f = mL["ho"], mL["wo"], mL["cout"]

    # Single input pad (tiny, once per forward); all inter-layer halos live in VMEM.
    xp = jnp.pad(x_dn, ((0, 0), (0, 0), (pad, pad), (pad, pad), (0, 0)))

    in_specs = [pl.BlockSpec((None, N, hp0, wp0, Cin),
                             lambda d: (d, 0, 0, 0, 0))]
    flat_params = []
    for (w, b) in stacked_params:    # w: (D, K*K*Cin, Cout) bf16 ; b: (D, 1, Cout) f32
        kdim, cout = w.shape[1], w.shape[2]
        in_specs.append(pl.BlockSpec((None, kdim, cout), lambda d: (d, 0, 0)))
        in_specs.append(pl.BlockSpec((None, 1, cout), lambda d: (d, 0, 0)))
        flat_params += [w, b]

    scratch_shapes = [
        pltpu.VMEM((N, m["ho"] + 2 * pad, m["wo"] + 2 * pad, m["cout"]), jnp.float32)
        for m in metas[:-1]
    ]

    out = pl.pallas_call(
        _make_fused_disc_kernel(metas, N),
        out_shape=jax.ShapeDtypeStruct((D, N, ho_f * wo_f * cout_f), jnp.float32),
        grid=(D,),
        in_specs=in_specs,
        out_specs=pl.BlockSpec((None, N, ho_f * wo_f * cout_f),
                               lambda d: (d, 0, 0)),
        scratch_shapes=scratch_shapes,
        compiler_params=pltpu.CompilerParams(
            dimension_semantics=("parallel",)),
    )(xp, *flat_params)
    return out.reshape(D, N, ho_f, wo_f, cout_f)


# ----------------------------------------------------------------------------
# Parameters / model classes mirroring the PyTorch module structure
# ----------------------------------------------------------------------------
def _conv_init(key, k, cin, cout):
    """PyTorch-like uniform(-1/sqrt(fan_in), 1/sqrt(fan_in)); kernel-ready layout."""
    kw_key, kb_key = jax.random.split(key)
    bound = 1.0 / math.sqrt(cin * k * k)
    w = jax.random.uniform(kw_key, (k, k, cin, cout), jnp.float32, -bound, bound)
    b = jax.random.uniform(kb_key, (cout,), jnp.float32, -bound, bound)
    # (K*K*Cin, Cout) bf16 operand for the fused im2col matmul; f32 bias row.
    return w.reshape(k * k * cin, cout).astype(jnp.bfloat16), b.reshape(1, cout)


class DiscriminatorUNet:
    def __init__(self, key, input_shape, filters, kernel_size):
        self.kernel_size = kernel_size
        self.cfgs = _layer_channels(input_shape[0], filters)
        keys = jax.random.split(key, len(self.cfgs))
        self.params = [_conv_init(keys[i], kernel_size, c["cin"], c["cout"])
                       for i, c in enumerate(self.cfgs)]
        self._stacked = [(w[None], b[None]) for (w, b) in self.params]

    def __call__(self, x_nchw):
        N, C, H, W = x_nchw.shape
        metas = _spatial_metas(self.cfgs, H, W, self.kernel_size)
        x = jnp.transpose(x_nchw, (0, 2, 3, 1))[None]              # (1, N, H, W, C)
        out = fused_disc_forward(x, self._stacked, metas)          # (1, N, Ho, Wo, 1)
        return jnp.transpose(out[0], (0, 3, 1, 2))                 # NCHW


class CombndDiscs:
    def __init__(self, key, input_shape, filters, kernel_size):
        ka, kb = jax.random.split(key)
        self.kernel_size = kernel_size
        self.disc_a = DiscriminatorUNet(ka, input_shape, filters, kernel_size)
        self.disc_b = DiscriminatorUNet(kb, input_shape, filters, kernel_size)
        self.cfgs = self.disc_a.cfgs
        # Stack both discriminators' weights: one pallas_call with grid=(2,) serves
        # disc_a and disc_b; megacore splits the D axis so each TC keeps its
        # discriminator's weights resident for the whole run.
        self._stacked = [
            (jnp.stack([wa, wb], axis=0), jnp.stack([ba, bb], axis=0))
            for (wa, ba), (wb, bb) in zip(self.disc_a.params, self.disc_b.params)
        ]

    def __call__(self, inputs):
        img_a, img_b = inputs                                      # NCHW, same shape
        N, C, H, W = img_a.shape
        metas = _spatial_metas(self.cfgs, H, W, self.kernel_size)
        x = jnp.stack([jnp.transpose(img_a, (0, 2, 3, 1)),
                       jnp.transpose(img_b, (0, 2, 3, 1))], axis=0)  # (2, N, H, W, C)
        out = fused_disc_forward(x, self._stacked, metas)          # (2, N, Ho, Wo, 1)
        out_a = jnp.transpose(out[0], (0, 3, 1, 2))
        out_b = jnp.transpose(out[1], (0, 3, 1, 2))
        return (out_a, out_b)


# ----------------------------------------------------------------------------
# Pure-JAX reference (for a correctness check against the fused kernel)
# ----------------------------------------------------------------------------
def _reference_disc(x_nchw, params, cfgs, k):
    pad = k // 2
    h = x_nchw
    for (w_r, b), c in zip(params, cfgs):
        cin, cout = c["cin"], c["cout"]
        w = w_r.astype(jnp.float32).reshape(k, k, cin, cout)
        h = jax.lax.conv_general_dilated(
            h, w, window_strides=(c["stride"], c["stride"]),
            padding=((pad, pad), (pad, pad)),
            dimension_numbers=("NCHW", "HWIO", "NCHW"))
        h = h + b.astype(jnp.float32).reshape(1, cout, 1, 1)
        if c["norm"]:
            mean = jnp.mean(h, axis=(2, 3), keepdims=True)
            var = jnp.mean((h - mean) ** 2, axis=(2, 3), keepdims=True)
            h = (h - mean) * jax.lax.rsqrt(var + 1e-5)
        if c["act"]:
            h = jnp.where(h > 0, h, 0.2 * h)
    return h


# ----------------------------------------------------------------------------
if __name__ == "__main__":
    key = jax.random.PRNGKey(0)
    k_a, k_b, k_disc = jax.random.split(key, 3)

    N, C, H, W = 2, 3, 16, 16
    filters = [8, 16, 16]
    img_a = jax.random.normal(k_a, (N, C, H, W), jnp.float32)
    img_b = jax.random.normal(k_b, (N, C, H, W), jnp.float32)

    model = CombndDiscs(k_disc, input_shape=[C, H, W], filters=filters, kernel_size=3)

    out_a, out_b = model((img_a, img_b))
    jax.block_until_ready((out_a, out_b))
    assert out_a.shape == (N, 1, 4, 4) and out_b.shape == (N, 1, 4, 4)

    # Correctness vs pure-JAX reference (bf16 MXU operands => loose tolerance).
    ref_a = _reference_disc(img_a, model.disc_a.params, model.cfgs, 3)
    ref_b = _reference_disc(img_b, model.disc_b.params, model.cfgs, 3)
    assert jnp.allclose(out_a, ref_a, atol=0.1, rtol=0.1), \
        float(jnp.max(jnp.abs(out_a - ref_a)))
    assert jnp.allclose(out_b, ref_b, atol=0.1, rtol=0.1), \
        float(jnp.max(jnp.abs(out_b - ref_b)))

    # Standalone single-discriminator path (grid=(1,)) also exercises the kernel.
    single_a = model.disc_a(img_a)
    jax.block_until_ready(single_a)
    assert single_a.shape == (N, 1, 4, 4)

    print("KERNEL_OK")
</pallas_src>

<mosaic_0001>
module attributes {stable_mosaic.version = 11 : i64} {
  func.func @kernel(%arg0: i32, %arg1: memref<1x2x18x18x3xf32, #tpu.memory_space<vmem>>, %arg2: memref<1x27x8xbf16, #tpu.memory_space<vmem>>, %arg3: memref<1x1x8xf32, #tpu.memory_space<vmem>>, %arg4: memref<1x72x16xbf16, #tpu.memory_space<vmem>>, %arg5: memref<1x1x16xf32, #tpu.memory_space<vmem>>, %arg6: memref<1x144x16xbf16, #tpu.memory_space<vmem>>, %arg7: memref<1x1x16xf32, #tpu.memory_space<vmem>>, %arg8: memref<1x144x1xbf16, #tpu.memory_space<vmem>>, %arg9: memref<1x1x1xf32, #tpu.memory_space<vmem>>, %arg10: memref<1x2x16xf32, #tpu.memory_space<vmem>>, %arg11: memref<2x10x10x8xf32, #tpu.memory_space<vmem>>, %arg12: memref<2x6x6x16xf32, #tpu.memory_space<vmem>>, %arg13: memref<2x6x6x16xf32, #tpu.memory_space<vmem>>) attributes {dimension_semantics = [#tpu.dimension_semantics<parallel>], iteration_bounds = array<i64: 2>, scalar_prefetch = 0 : i64, scratch_operands = 3 : i64, tpu.core_type = #tpu.core_type<tc>, window_params = [{transform_indices = @transform_0, window_bounds = array<i64: 1, 2, 18, 18, 3>}, {transform_indices = @transform_1, window_bounds = array<i64: 1, 27, 8>}, {transform_indices = @transform_2, window_bounds = array<i64: 1, 1, 8>}, {transform_indices = @transform_3, window_bounds = array<i64: 1, 72, 16>}, {transform_indices = @transform_4, window_bounds = array<i64: 1, 1, 16>}, {transform_indices = @transform_5, window_bounds = array<i64: 1, 144, 16>}, {transform_indices = @transform_6, window_bounds = array<i64: 1, 1, 16>}, {transform_indices = @transform_7, window_bounds = array<i64: 1, 144, 1>}, {transform_indices = @transform_8, window_bounds = array<i64: 1, 1, 1>}, {transform_indices = @transform_9, window_bounds = array<i64: 1, 2, 16>}]} {
    %c0 = arith.constant 0 : index
    %c0_0 = arith.constant 0 : index
    %c0_1 = arith.constant 0 : index
    %c0_2 = arith.constant 0 : index
    %c0_3 = arith.constant 0 : index
    %0 = tpu.strided_load %arg1[%c0, %c0_0, %c0_1, %c0_2, %c0_3] {strides = array<i32: 1, 1, 2, 2, 1>} : memref<1x2x18x18x3xf32, #tpu.memory_space<vmem>>, vector<1x2x8x8x3xf32>
    %1 = vector.shape_cast %0 : vector<1x2x8x8x3xf32> to vector<2x8x8x3xf32>
    %c0_4 = arith.constant 0 : index
    %c0_5 = arith.constant 0 : index
    %c0_6 = arith.constant 0 : index
    %c1 = arith.constant 1 : index
    %c0_7 = arith.constant 0 : index
    %2 = tpu.strided_load %arg1[%c0_4, %c0_5, %c0_6, %c1, %c0_7] {strides = array<i32: 1, 1, 2, 2, 1>} : memref<1x2x18x18x3xf32, #tpu.memory_space<vmem>>, vector<1x2x8x8x3xf32>
    %3 = vector.shape_cast %2 : vector<1x2x8x8x3xf32> to vector<2x8x8x3xf32>
    %c0_8 = arith.constant 0 : index
    %c0_9 = arith.constant 0 : index
    %c0_10 = arith.constant 0 : index
    %c2 = arith.constant 2 : index
    %c0_11 = arith.constant 0 : index
    %4 = tpu.strided_load %arg1[%c0_8, %c0_9, %c0_10, %c2, %c0_11] {strides = array<i32: 1, 1, 2, 2, 1>} : memref<1x2x18x18x3xf32, #tpu.memory_space<vmem>>, vector<1x2x8x8x3xf32>
    %5 = vector.shape_cast %4 : vector<1x2x8x8x3xf32> to vector<2x8x8x3xf32>
    %c0_12 = arith.constant 0 : index
    %c0_13 = arith.constant 0 : index
    %c1_14 = arith.constant 1 : index
    %c0_15 = arith.constant 0 : index
    %c0_16 = arith.constant 0 : index
    %6 = tpu.strided_load %arg1[%c0_12, %c0_13, %c1_14, %c0_15, %c0_16] {strides = array<i32: 1, 1, 2, 2, 1>} : memref<1x2x18x18x3xf32, #tpu.memory_space<vmem>>, vector<1x2x8x8x3xf32>
    %7 = vector.shape_cast %6 : vector<1x2x8x8x3xf32> to vector<2x8x8x3xf32>
    %c0_17 = arith.constant 0 : index
    %c0_18 = arith.constant 0 : index
    %c1_19 = arith.constant 1 : index
    %c1_20 = arith.constant 1 : index
    %c0_21 = arith.constant 0 : index
    %8 = tpu.strided_load %arg1[%c0_17, %c0_18, %c1_19, %c1_20, %c0_21] {strides = array<i32: 1, 1, 2, 2, 1>} : memref<1x2x18x18x3xf32, #tpu.memory_space<vmem>>, vector<1x2x8x8x3xf32>
    %9 = vector.shape_cast %8 : vector<1x2x8x8x3xf32> to vector<2x8x8x3xf32>
    %c0_22 = arith.constant 0 : index
    %c0_23 = arith.constant 0 : index
    %c1_24 = arith.constant 1 : index
    %c2_25 = arith.constant 2 : index
    %c0_26 = arith.constant 0 : index
    %10 = tpu.strided_load %arg1[%c0_22, %c0_23, %c1_24, %c2_25, %c0_26] {strides = array<i32: 1, 1, 2, 2, 1>} : memref<1x2x18x18x3xf32, #tpu.memory_space<vmem>>, vector<1x2x8x8x3xf32>
    %11 = vector.shape_cast %10 : vector<1x2x8x8x3xf32> to vector<2x8x8x3xf32>
    %c0_27 = arith.constant 0 : index
    %c0_28 = arith.constant 0 : index
    %c2_29 = arith.constant 2 : index
    %c0_30 = arith.constant 0 : index
    %c0_31 = arith.constant 0 : index
    %12 = tpu.strided_load %arg1[%c0_27, %c0_28, %c2_29, %c0_30, %c0_31] {strides = array<i32: 1, 1, 2, 2, 1>} : memref<1x2x18x18x3xf32, #tpu.memory_space<vmem>>, vector<1x2x8x8x3xf32>
    %13 = vector.shape_cast %12 : vector<1x2x8x8x3xf32> to vector<2x8x8x3xf32>
    %c0_32 = arith.constant 0 : index
    %c0_33 = arith.constant 0 : index
    %c2_34 = arith.constant 2 : index
    %c1_35 = arith.constant 1 : index
    %c0_36 = arith.constant 0 : index
    %14 = tpu.strided_load %arg1[%c0_32, %c0_33, %c2_34, %c1_35, %c0_36] {strides = array<i32: 1, 1, 2, 2, 1>} : memref<1x2x18x18x3xf32, #tpu.memory_space<vmem>>, vector<1x2x8x8x3xf32>
    %15 = vector.shape_cast %14 : vector<1x2x8x8x3xf32> to vector<2x8x8x3xf32>
    %c0_37 = arith.constant 0 : index
    %c0_38 = arith.constant 0 : index
    %c2_39 = arith.constant 2 : index
    %c2_40 = arith.constant 2 : index
    %c0_41 = arith.constant 0 : index
    %16 = tpu.strided_load %arg1[%c0_37, %c0_38, %c2_39, %c2_40, %c0_41] {strides = array<i32: 1, 1, 2, 2, 1>} : memref<1x2x18x18x3xf32, #tpu.memory_space<vmem>>, vector<1x2x8x8x3xf32>
    %17 = vector.shape_cast %16 : vector<1x2x8x8x3xf32> to vector<2x8x8x3xf32>
    %18 = tpu.concatenate %1, %3, %5, %7, %9, %11, %13, %15, %17 in 3 : vector<2x8x8x3xf32>, vector<2x8x8x3xf32>, vector<2x8x8x3xf32>, vector<2x8x8x3xf32>, vector<2x8x8x3xf32>, vector<2x8x8x3xf32>, vector<2x8x8x3xf32>, vector<2x8x8x3xf32>, vector<2x8x8x3xf32> -> vector<2x8x8x27xf32>
    %19 = vector.shape_cast %18 : vector<2x8x8x27xf32> to vector<128x27xf32>
    %20 = arith.truncf %19 : vector<128x27xf32> to vector<128x27xbf16>
    %c0_42 = arith.constant 0 : index
    %c0_43 = arith.constant 0 : index
    %c0_44 = arith.constant 0 : index
    %21 = vector.load %arg2[%c0_42, %c0_43, %c0_44] : memref<1x27x8xbf16, #tpu.memory_space<vmem>>, vector<1x27x8xbf16>
    %22 = vector.shape_cast %21 : vector<1x27x8xbf16> to vector<27x8xbf16>
    %cst = arith.constant dense<0.000000e+00> : vector<128x8xf32>
    %23 = tpu.matmul %20, %22, %cst {dimension_numbers = #tpu.dot_dimension_numbers<[1], [0], [0], [1], [0, 0, 1, 1], [], []>} : vector<128x27xbf16>, vector<27x8xbf16>, vector<128x8xf32> -> vector<128x8xf32>
    %c0_45 = arith.constant 0 : index
    %c0_46 = arith.constant 0 : index
    %c0_47 = arith.constant 0 : index
    %24 = vector.load %arg3[%c0_45, %c0_46, %c0_47] : memref<1x1x8xf32, #tpu.memory_space<vmem>>, vector<1x1x8xf32>
    %25 = vector.shape_cast %24 : vector<1x1x8xf32> to vector<1x8xf32>
    %26 = vector.broadcast %25 : vector<1x8xf32> to vector<128x8xf32>
    %27 = arith.addf %23, %26 : vector<128x8xf32>
    %cst_48 = arith.constant 0.000000e+00 : f32
    %28 = vector.broadcast %cst_48 : f32 to vector<128x8xf32>
    %29 = arith.cmpf ogt, %27, %28 : vector<128x8xf32>
    %cst_49 = arith.constant 2.000000e-01 : f32
    %30 = vector.broadcast %cst_49 : f32 to vector<128x8xf32>
    %31 = arith.mulf %30, %27 : vector<128x8xf32>
    %32 = arith.select %29, %27, %31 : vector<128x8xi1>, vector<128x8xf32>
    %cst_50 = arith.constant 0.000000e+00 : f32
    %33 = vector.broadcast %cst_50 : f32 to vector<2x1x10x8xf32>
    %c0_51 = arith.constant 0 : index
    %c0_52 = arith.constant 0 : index
    %c0_53 = arith.constant 0 : index
    %c0_54 = arith.constant 0 : index
    %34 = vector.load %arg11[%c0_51, %c0_52, %c0_53, %c0_54] : memref<2x10x10x8xf32, #tpu.memory_space<vmem>>, vector<2x1x10x8xf32>
    tpu.vector_store %arg11[%c0_51, %c0_52, %c0_53, %c0_54], %33 {strides = array<i32>} : memref<2x10x10x8xf32, #tpu.memory_space<vmem>>, vector<2x1x10x8xf32>,
    %cst_55 = arith.constant 0.000000e+00 : f32
    %35 = vector.broadcast %cst_55 : f32 to vector<2x1x10x8xf32>
    %c0_56 = arith.constant 0 : index
    %c9 = arith.constant 9 : index
    %c0_57 = arith.constant 0 : index
    %c0_58 = arith.constant 0 : index
    %36 = vector.load %arg11[%c0_56, %c9, %c0_57, %c0_58] : memref<2x10x10x8xf32, #tpu.memory_space<vmem>>, vector<2x1x10x8xf32>
    tpu.vector_store %arg11[%c0_56, %c9, %c0_57, %c0_58], %35 {strides = array<i32>} : memref<2x10x10x8xf32, #tpu.memory_space<vmem>>, vector<2x1x10x8xf32>,
    %cst_59 = arith.constant 0.000000e+00 : f32
    %37 = vector.broadcast %cst_59 : f32 to vector<2x10x1x8xf32>
    %c0_60 = arith.constant 0 : index
    %c0_61 = arith.constant 0 : index
    %c0_62 = arith.constant 0 : index
    %c0_63 = arith.constant 0 : index
    %38 = vector.load %arg11[%c0_60, %c0_61, %c0_62, %c0_63] : memref<2x10x10x8xf32, #tpu.memory_space<vmem>>, vector<2x10x1x8xf32>
    tpu.vector_store %arg11[%c0_60, %c0_61, %c0_62, %c0_63], %37 {strides = array<i32>} : memref<2x10x10x8xf32, #tpu.memory_space<vmem>>, vector<2x10x1x8xf32>,
    %cst_64 = arith.constant 0.000000e+00 : f32
    %39 = vector.broadcast %cst_64 : f32 to vector<2x10x1x8xf32>
    %c0_65 = arith.constant 0 : index
    %c0_66 = arith.constant 0 : index
    %c9_67 = arith.constant 9 : index
    %c0_68 = arith.constant 0 : index
    %40 = vector.load %arg11[%c0_65, %c0_66, %c9_67, %c0_68] : memref<2x10x10x8xf32, #tpu.memory_space<vmem>>, vector<2x10x1x8xf32>
    tpu.vector_store %arg11[%c0_65, %c0_66, %c9_67, %c0_68], %39 {strides = array<i32>} : memref<2x10x10x8xf32, #tpu.memory_space<vmem>>, vector<2x10x1x8xf32>,
    %41 = vector.shape_cast %32 : vector<128x8xf32> to vector<2x8x8x8xf32>
    %c0_69 = arith.constant 0 : index
    %c1_70 = arith.constant 1 : index
    %c1_71 = arith.constant 1 : index
    %c0_72 = arith.constant 0 : index
    %42 = vector.load %arg11[%c0_69, %c1_70, %c1_71, %c0_72] : memref<2x10x10x8xf32, #tpu.memory_space<vmem>>, vector<2x8x8x8xf32>
    tpu.vector_store %arg11[%c0_69, %c1_70, %c1_71, %c0_72], %41 {strides = array<i32>} : memref<2x10x10x8xf32, #tpu.memory_space<vmem>>, vector<2x8x8x8xf32>,
    %c0_73 = arith.constant 0 : index
    %c0_74 = arith.constant 0 : index
    %c0_75 = arith.constant 0 : index
    %c0_76 = arith.constant 0 : index
    %43 = tpu.strided_load %arg11[%c0_73, %c0_74, %c0_75, %c0_76] {strides = array<i32: 1, 2, 2, 1>} : memref<2x10x10x8xf32, #tpu.memory_space<vmem>>, vector<2x4x4x8xf32>
    %c0_77 = arith.constant 0 : index
    %c0_78 = arith.constant 0 : index
    %c1_79 = arith.constant 1 : index
    %c0_80 = arith.constant 0 : index
    %44 = tpu.strided_load %arg11[%c0_77, %c0_78, %c1_79, %c0_80] {strides = array<i32: 1, 2, 2, 1>} : memref<2x10x10x8xf32, #tpu.memory_space<vmem>>, vector<2x4x4x8xf32>
    %c0_81 = arith.constant 0 : index
    %c0_82 = arith.constant 0 : index
    %c2_83 = arith.constant 2 : index
    %c0_84 = arith.constant 0 : index
    %45 = tpu.strided_load %arg11[%c0_81, %c0_82, %c2_83, %c0_84] {strides = array<i32: 1, 2, 2, 1>} : memref<2x10x10x8xf32, #tpu.memory_space<vmem>>, vector<2x4x4x8xf32>
    %c0_85 = arith.constant 0 : index
    %c1_86 = arith.constant 1 : index
    %c0_87 = arith.constant 0 : index
    %c0_88 = arith.constant 0 : index
    %46 = tpu.strided_load %arg11[%c0_85, %c1_86, %c0_87, %c0_88] {strides = array<i32: 1, 2, 2, 1>} : memref<2x10x10x8xf32, #tpu.memory_space<vmem>>, vector<2x4x4x8xf32>
    %c0_89 = arith.constant 0 : index
    %c1_90 = arith.constant 1 : index
    %c1_91 = arith.constant 1 : index
    %c0_92 = arith.constant 0 : index
    %47 = tpu.strided_load %arg11[%c0_89, %c1_90, %c1_91, %c0_92] {strides = array<i32: 1, 2, 2, 1>} : memref<2x10x10x8xf32, #tpu.memory_space<vmem>>, vector<2x4x4x8xf32>
    %c0_93 = arith.constant 0 : index
    %c1_94 = arith.constant 1 : index
    %c2_95 = arith.constant 2 : index
    %c0_96 = arith.constant 0 : index
    %48 = tpu.strided_load %arg11[%c0_93, %c1_94, %c2_95, %c0_96] {strides = array<i32: 1, 2, 2, 1>} : memref<2x10x10x8xf32, #tpu.memory_space<vmem>>, vector<2x4x4x8xf32>
    %c0_97 = arith.constant 0 : index
    %c2_98 = arith.constant 2 : index
    %c0_99 = arith.constant 0 : index
    %c0_100 = arith.constant 0 : index
    %49 = tpu.strided_load %arg11[%c0_97, %c2_98, %c0_99, %c0_100] {strides = array<i32: 1, 2, 2, 1>} : memref<2x10x10x8xf32, #tpu.memory_space<vmem>>, vector<2x4x4x8xf32>
    %c0_101 = arith.constant 0 : index
    %c2_102 = arith.constant 2 : index
    %c1_103 = arith.constant 1 : index
    %c0_104 = arith.constant 0 : index
    %50 = tpu.strided_load %arg11[%c0_101, %c2_102, %c1_103, %c0_104] {strides = array<i32: 1, 2, 2, 1>} : memref<2x10x10x8xf32, #tpu.memory_space<vmem>>, vector<2x4x4x8xf32>
    %c0_105 = arith.constant 0 : index
    %c2_106 = arith.constant 2 : index
    %c2_107 = arith.constant 2 : index
    %c0_108 = arith.constant 0 : index
    %51 = tpu.strided_load %arg11[%c0_105, %c2_106, %c2_107, %c0_108] {strides = array<i32: 1, 2, 2, 1>} : memref<2x10x10x8xf32, #tpu.memory_space<vmem>>, vector<2x4x4x8xf32>
    %52 = tpu.concatenate %43, %44, %45, %46, %47, %48, %49, %50, %51 in 3 : vector<2x4x4x8xf32>, vector<2x4x4x8xf32>, vector<2x4x4x8xf32>, vector<2x4x4x8xf32>, vector<2x4x4x8xf32>, vector<2x4x4x8xf32>, vector<2x4x4x8xf32>, vector<2x4x4x8xf32>, vector<2x4x4x8xf32> -> vector<2x4x4x72xf32>
    %53 = vector.shape_cast %52 : vector<2x4x4x72xf32> to vector<32x72xf32>
    %54 = arith.truncf %53 : vector<32x72xf32> to vector<32x72xbf16>
    %c0_109 = arith.constant 0 : index
    %c0_110 = arith.constant 0 : index
    %c0_111 = arith.constant 0 : index
    %55 = vector.load %arg4[%c0_109, %c0_110, %c0_111] : memref<1x72x16xbf16, #tpu.memory_space<vmem>>, vector<1x72x16xbf16>
    %56 = vector.shape_cast %55 : vector<1x72x16xbf16> to vector<72x16xbf16>
    %cst_112 = arith.constant dense<0.000000e+00> : vector<32x16xf32>
    %57 = tpu.matmul %54, %56, %cst_112 {dimension_numbers = #tpu.dot_dimension_numbers<[1], [0], [0], [1], [0, 0, 1, 1], [], []>} : vector<32x72xbf16>, vector<72x16xbf16>, vector<32x16xf32> -> vector<32x16xf32>
    %c0_113 = arith.constant 0 : index
    %c0_114 = arith.constant 0 : index
    %c0_115 = arith.constant 0 : index
    %58 = vector.load %arg5[%c0_113, %c0_114, %c0_115] : memref<1x1x16xf32, #tpu.memory_space<vmem>>, vector<1x1x16xf32>
    %59 = vector.shape_cast %58 : vector<1x1x16xf32> to vector<1x16xf32>
    %60 = vector.broadcast %59 : vector<1x16xf32> to vector<32x16xf32>
    %61 = arith.addf %57, %60 : vector<32x16xf32>
    %62 = vector.shape_cast %61 : vector<32x16xf32> to vector<2x16x16xf32>
    %cst_116 = arith.constant dense<0.000000e+00> : vector<2x16xf32>
    %63 = vector.multi_reduction <add>, %62, %cst_116 [1] : vector<2x16x16xf32> to vector<2x16xf32>
    %64 = vector.shape_cast %63 : vector<2x16xf32> to vector<2x1x16xf32>
    %cst_117 = arith.constant 1.600000e+01 : f32
    %65 = vector.broadcast %cst_117 : f32 to vector<2x1x16xf32>
    %66 = arith.divf %64, %65 : vector<2x1x16xf32>
    %67 = vector.broadcast %66 : vector<2x1x16xf32> to vector<2x16x16xf32>
    %68 = arith.subf %62, %67 : vector<2x16x16xf32>
    %69 = arith.mulf %68, %68 : vector<2x16x16xf32>
    %cst_118 = arith.constant dense<0.000000e+00> : vector<2x16xf32>
    %70 = vector.multi_reduction <add>, %69, %cst_118 [1] : vector<2x16x16xf32> to vector<2x16xf32>
    %71 = vector.shape_cast %70 : vector<2x16xf32> to vector<2x1x16xf32>
    %cst_119 = arith.constant 1.600000e+01 : f32
    %72 = vector.broadcast %cst_119 : f32 to vector<2x1x16xf32>
    %73 = arith.divf %71, %72 : vector<2x1x16xf32>
    %cst_120 = arith.constant 9.99999974E-6 : f32
    %74 = vector.broadcast %cst_120 : f32 to vector<2x1x16xf32>
    %75 = arith.addf %73, %74 : vector<2x1x16xf32>
    %76 = math.rsqrt %75 : vector<2x1x16xf32>
    %77 = vector.broadcast %76 : vector<2x1x16xf32> to vector<2x16x16xf32>
    %78 = arith.mulf %68, %77 : vector<2x16x16xf32>
    %cst_121 = arith.constant 0.000000e+00 : f32
    %79 = vector.broadcast %cst_121 : f32 to vector<2x16x16xf32>
    %80 = arith.cmpf ogt, %78, %79 : vector<2x16x16xf32>
    %cst_122 = arith.constant 2.000000e-01 : f32
    %81 = vector.broadcast %cst_122 : f32 to vector<2x16x16xf32>
    %82 = arith.mulf %81, %78 : vector<2x16x16xf32>
    %83 = arith.select %80, %78, %82 : vector<2x16x16xi1>, vector<2x16x16xf32>
    %cst_123 = arith.constant 0.000000e+00 : f32
    %84 = vector.broadcast %cst_123 : f32 to vector<2x1x6x16xf32>
    %c0_124 = arith.constant 0 : index
    %c0_125 = arith.constant 0 : index
    %c0_126 = arith.constant 0 : index
    %c0_127 = arith.constant 0 : index
    %85 = vector.load %arg12[%c0_124, %c0_125, %c0_126, %c0_127] : memref<2x6x6x16xf32, #tpu.memory_space<vmem>>, vector<2x1x6x16xf32>
    tpu.vector_store %arg12[%c0_124, %c0_125, %c0_126, %c0_127], %84 {strides = array<i32>} : memref<2x6x6x16xf32, #tpu.memory_space<vmem>>, vector<2x1x6x16xf32>,
    %cst_128 = arith.constant 0.000000e+00 : f32
    %86 = vector.broadcast %cst_128 : f32 to vector<2x1x6x16xf32>
    %c0_129 = arith.constant 0 : index
    %c5 = arith.constant 5 : index
    %c0_130 = arith.constant 0 : index
    %c0_131 = arith.constant 0 : index
    %87 = vector.load %arg12[%c0_129, %c5, %c0_130, %c0_131] : memref<2x6x6x16xf32, #tpu.memory_space<vmem>>, vector<2x1x6x16xf32>
    tpu.vector_store %arg12[%c0_129, %c5, %c0_130, %c0_131], %86 {strides = array<i32>} : memref<2x6x6x16xf32, #tpu.memory_space<vmem>>, vector<2x1x6x16xf32>,
    %cst_132 = arith.constant 0.000000e+00 : f32
    %88 = vector.broadcast %cst_132 : f32 to vector<2x6x1x16xf32>
    %c0_133 = arith.constant 0 : index
    %c0_134 = arith.constant 0 : index
    %c0_135 = arith.constant 0 : index
    %c0_136 = arith.constant 0 : index
    %89 = vector.load %arg12[%c0_133, %c0_134, %c0_135, %c0_136] : memref<2x6x6x16xf32, #tpu.memory_space<vmem>>, vector<2x6x1x16xf32>
    tpu.vector_store %arg12[%c0_133, %c0_134, %c0_135, %c0_136], %88 {strides = array<i32>} : memref<2x6x6x16xf32, #tpu.memory_space<vmem>>, vector<2x6x1x16xf32>,
    %cst_137 = arith.constant 0.000000e+00 : f32
    %90 = vector.broadcast %cst_137 : f32 to vector<2x6x1x16xf32>
    %c0_138 = arith.constant 0 : index
    %c0_139 = arith.constant 0 : index
    %c5_140 = arith.constant 5 : index
    %c0_141 = arith.constant 0 : index
    %91 = vector.load %arg12[%c0_138, %c0_139, %c5_140, %c0_141] : memref<2x6x6x16xf32, #tpu.memory_space<vmem>>, vector<2x6x1x16xf32>
    tpu.vector_store %arg12[%c0_138, %c0_139, %c5_140, %c0_141], %90 {strides = array<i32>} : memref<2x6x6x16xf32, #tpu.memory_space<vmem>>, vector<2x6x1x16xf32>,
    %92 = vector.shape_cast %83 : vector<2x16x16xf32> to vector<2x4x4x16xf32>
    %c0_142 = arith.constant 0 : index
    %c1_143 = arith.constant 1 : index
    %c1_144 = arith.constant 1 : index
    %c0_145 = arith.constant 0 : index
    %93 = vector.load %arg12[%c0_142, %c1_143, %c1_144, %c0_145] : memref<2x6x6x16xf32, #tpu.memory_space<vmem>>, vector<2x4x4x16xf32>
    tpu.vector_store %arg12[%c0_142, %c1_143, %c1_144, %c0_145], %92 {strides = array<i32>} : memref<2x6x6x16xf32, #tpu.memory_space<vmem>>, vector<2x4x4x16xf32>,
    %c0_146 = arith.constant 0 : index
    %c0_147 = arith.constant 0 : index
    %c0_148 = arith.constant 0 : index
    %c0_149 = arith.constant 0 : index
    %94 = vector.load %arg12[%c0_146, %c0_147, %c0_148, %c0_149] : memref<2x6x6x16xf32, #tpu.memory_space<vmem>>, vector<2x4x4x16xf32>
    %c0_150 = arith.constant 0 : index
    %c0_151 = arith.constant 0 : index
    %c1_152 = arith.constant 1 : index
    %c0_153 = arith.constant 0 : index
    %95 = vector.load %arg12[%c0_150, %c0_151, %c1_152, %c0_153] : memref<2x6x6x16xf32, #tpu.memory_space<vmem>>, vector<2x4x4x16xf32>
    %c0_154 = arith.constant 0 : index
    %c0_155 = arith.constant 0 : index
    %c2_156 = arith.constant 2 : index
    %c0_157 = arith.constant 0 : index
    %96 = vector.load %arg12[%c0_154, %c0_155, %c2_156, %c0_157] : memref<2x6x6x16xf32, #tpu.memory_space<vmem>>, vector<2x4x4x16xf32>
    %c0_158 = arith.constant 0 : index
    %c1_159 = arith.constant 1 : index
    %c0_160 = arith.constant 0 : index
    %c0_161 = arith.constant 0 : index
    %97 = vector.load %arg12[%c0_158, %c1_159, %c0_160, %c0_161] : memref<2x6x6x16xf32, #tpu.memory_space<vmem>>, vector<2x4x4x16xf32>
    %c0_162 = arith.constant 0 : index
    %c1_163 = arith.constant 1 : index
    %c1_164 = arith.constant 1 : index
    %c0_165 = arith.constant 0 : index
    %98 = vector.load %arg12[%c0_162, %c1_163, %c1_164, %c0_165] : memref<2x6x6x16xf32, #tpu.memory_space<vmem>>, vector<2x4x4x16xf32>
    %c0_166 = arith.constant 0 : index
    %c1_167 = arith.constant 1 : index
    %c2_168 = arith.constant 2 : index
    %c0_169 = arith.constant 0 : index
    %99 = vector.load %arg12[%c0_166, %c1_167, %c2_168, %c0_169] : memref<2x6x6x16xf32, #tpu.memory_space<vmem>>, vector<2x4x4x16xf32>
    %c0_170 = arith.constant 0 : index
    %c2_171 = arith.constant 2 : index
    %c0_172 = arith.constant 0 : index
    %c0_173 = arith.constant 0 : index
    %100 = vector.load %arg12[%c0_170, %c2_171, %c0_172, %c0_173] : memref<2x6x6x16xf32, #tpu.memory_space<vmem>>, vector<2x4x4x16xf32>
    %c0_174 = arith.constant 0 : index
    %c2_175 = arith.constant 2 : index
    %c1_176 = arith.constant 1 : index
    %c0_177 = arith.constant 0 : index
    %101 = vector.load %arg12[%c0_174, %c2_175, %c1_176, %c0_177] : memref<2x6x6x16xf32, #tpu.memory_space<vmem>>, vector<2x4x4x16xf32>
    %c0_178 = arith.constant 0 : index
    %c2_179 = arith.constant 2 : index
    %c2_180 = arith.constant 2 : index
    %c0_181 = arith.constant 0 : index
    %102 = vector.load %arg12[%c0_178, %c2_179, %c2_180, %c0_181] : memref<2x6x6x16xf32, #tpu.memory_space<vmem>>, vector<2x4x4x16xf32>
    %103 = tpu.concatenate %94, %95, %96, %97, %98, %99, %100, %101, %102 in 3 : vector<2x4x4x16xf32>, vector<2x4x4x16xf32>, vector<2x4x4x16xf32>, vector<2x4x4x16xf32>, vector<2x4x4x16xf32>, vector<2x4x4x16xf32>, vector<2x4x4x16xf32>, vector<2x4x4x16xf32>, vector<2x4x4x16xf32> -> vector<2x4x4x144xf32>
    %104 = vector.shape_cast %103 : vector<2x4x4x144xf32> to vector<32x144xf32>
    %105 = arith.truncf %104 : vector<32x144xf32> to vector<32x144xbf16>
    %c0_182 = arith.constant 0 : index
    %c0_183 = arith.constant 0 : index
    %c0_184 = arith.constant 0 : index
    %106 = vector.load %arg6[%c0_182, %c0_183, %c0_184] : memref<1x144x16xbf16, #tpu.memory_space<vmem>>, vector<1x144x16xbf16>
    %107 = vector.shape_cast %106 : vector<1x144x16xbf16> to vector<144x16xbf16>
    %cst_185 = arith.constant dense<0.000000e+00> : vector<32x16xf32>
    %108 = tpu.matmul %105, %107, %cst_185 {dimension_numbers = #tpu.dot_dimension_numbers<[1], [0], [0], [1], [0, 0, 1, 1], [], []>} : vector<32x144xbf16>, vector<144x16xbf16>, vector<32x16xf32> -> vector<32x16xf32>
    %c0_186 = arith.constant 0 : index
    %c0_187 = arith.constant 0 : index
    %c0_188 = arith.constant 0 : index
    %109 = vector.load %arg7[%c0_186, %c0_187, %c0_188] : memref<1x1x16xf32, #tpu.memory_space<vmem>>, vector<1x1x16xf32>
    %110 = vector.shape_cast %109 : vector<1x1x16xf32> to vector<1x16xf32>
    %111 = vector.broadcast %110 : vector<1x16xf32> to vector<32x16xf32>
    %112 = arith.addf %108, %111 : vector<32x16xf32>
    %113 = vector.shape_cast %112 : vector<32x16xf32> to vector<2x16x16xf32>
    %cst_189 = arith.constant dense<0.000000e+00> : vector<2x16xf32>
    %114 = vector.multi_reduction <add>, %113, %cst_189 [1] : vector<2x16x16xf32> to vector<2x16xf32>
    %115 = vector.shape_cast %114 : vector<2x16xf32> to vector<2x1x16xf32>
    %cst_190 = arith.constant 1.600000e+01 : f32
    %116 = vector.broadcast %cst_190 : f32 to vector<2x1x16xf32>
    %117 = arith.divf %115, %116 : vector<2x1x16xf32>
    %118 = vector.broadcast %117 : vector<2x1x16xf32> to vector<2x16x16xf32>
    %119 = arith.subf %113, %118 : vector<2x16x16xf32>
    %120 = arith.mulf %119, %119 : vector<2x16x16xf32>
    %cst_191 = arith.constant dense<0.000000e+00> : vector<2x16xf32>
    %121 = vector.multi_reduction <add>, %120, %cst_191 [1] : vector<2x16x16xf32> to vector<2x16xf32>
    %122 = vector.shape_cast %121 : vector<2x16xf32> to vector<2x1x16xf32>
    %cst_192 = arith.constant 1.600000e+01 : f32
    %123 = vector.broadcast %cst_192 : f32 to vector<2x1x16xf32>
    %124 = arith.divf %122, %123 : vector<2x1x16xf32>
    %cst_193 = arith.constant 9.99999974E-6 : f32
    %125 = vector.broadcast %cst_193 : f32 to vector<2x1x16xf32>
    %126 = arith.addf %124, %125 : vector<2x1x16xf32>
    %127 = math.rsqrt %126 : vector<2x1x16xf32>
    %128 = vector.broadcast %127 : vector<2x1x16xf32> to vector<2x16x16xf32>
    %129 = arith.mulf %119, %128 : vector<2x16x16xf32>
    %cst_194 = arith.constant 0.000000e+00 : f32
    %130 = vector.broadcast %cst_194 : f32 to vector<2x16x16xf32>
    %131 = arith.cmpf ogt, %129, %130 : vector<2x16x16xf32>
    %cst_195 = arith.constant 2.000000e-01 : f32
    %132 = vector.broadcast %cst_195 : f32 to vector<2x16x16xf32>
    %133 = arith.mulf %132, %129 : vector<2x16x16xf32>
    %134 = arith.select %131, %129, %133 : vector<2x16x16xi1>, vector<2x16x16xf32>
    %cst_196 = arith.constant 0.000000e+00 : f32
    %135 = vector.broadcast %cst_196 : f32 to vector<2x1x6x16xf32>
    %c0_197 = arith.constant 0 : index
    %c0_198 = arith.constant 0 : index
    %c0_199 = arith.constant 0 : index
    %c0_200 = arith.constant 0 : index
    %136 = vector.load %arg13[%c0_197, %c0_198, %c0_199, %c0_200] : memref<2x6x6x16xf32, #tpu.memory_space<vmem>>, vector<2x1x6x16xf32>
    tpu.vector_store %arg13[%c0_197, %c0_198, %c0_199, %c0_200], %135 {strides = array<i32>} : memref<2x6x6x16xf32, #tpu.memory_space<vmem>>, vector<2x1x6x16xf32>,
    %cst_201 = arith.constant 0.000000e+00 : f32
    %137 = vector.broadcast %cst_201 : f32 to vector<2x1x6x16xf32>
    %c0_202 = arith.constant 0 : index
    %c5_203 = arith.constant 5 : index
    %c0_204 = arith.constant 0 : index
    %c0_205 = arith.constant 0 : index
    %138 = vector.load %arg13[%c0_202, %c5_203, %c0_204, %c0_205] : memref<2x6x6x16xf32, #tpu.memory_space<vmem>>, vector<2x1x6x16xf32>
    tpu.vector_store %arg13[%c0_202, %c5_203, %c0_204, %c0_205], %137 {strides = array<i32>} : memref<2x6x6x16xf32, #tpu.memory_space<vmem>>, vector<2x1x6x16xf32>,
    %cst_206 = arith.constant 0.000000e+00 : f32
    %139 = vector.broadcast %cst_206 : f32 to vector<2x6x1x16xf32>
    %c0_207 = arith.constant 0 : index
    %c0_208 = arith.constant 0 : index
    %c0_209 = arith.constant 0 : index
    %c0_210 = arith.constant 0 : index
    %140 = vector.load %arg13[%c0_207, %c0_208, %c0_209, %c0_210] : memref<2x6x6x16xf32, #tpu.memory_space<vmem>>, vector<2x6x1x16xf32>
    tpu.vector_store %arg13[%c0_207, %c0_208, %c0_209, %c0_210], %139 {strides = array<i32>} : memref<2x6x6x16xf32, #tpu.memory_space<vmem>>, vector<2x6x1x16xf32>,
    %cst_211 = arith.constant 0.000000e+00 : f32
    %141 = vector.broadcast %cst_211 : f32 to vector<2x6x1x16xf32>
    %c0_212 = arith.constant 0 : index
    %c0_213 = arith.constant 0 : index
    %c5_214 = arith.constant 5 : index
    %c0_215 = arith.constant 0 : index
    %142 = vector.load %arg13[%c0_212, %c0_213, %c5_214, %c0_215] : memref<2x6x6x16xf32, #tpu.memory_space<vmem>>, vector<2x6x1x16xf32>
    tpu.vector_store %arg13[%c0_212, %c0_213, %c5_214, %c0_215], %141 {strides = array<i32>} : memref<2x6x6x16xf32, #tpu.memory_space<vmem>>, vector<2x6x1x16xf32>,
    %143 = vector.shape_cast %134 : vector<2x16x16xf32> to vector<2x4x4x16xf32>
    %c0_216 = arith.constant 0 : index
    %c1_217 = arith.constant 1 : index
    %c1_218 = arith.constant 1 : index
    %c0_219 = arith.constant 0 : index
    %144 = vector.load %arg13[%c0_216, %c1_217, %c1_218, %c0_219] : memref<2x6x6x16xf32, #tpu.memory_space<vmem>>, vector<2x4x4x16xf32>
    tpu.vector_store %arg13[%c0_216, %c1_217, %c1_218, %c0_219], %143 {strides = array<i32>} : memref<2x6x6x16xf32, #tpu.memory_space<vmem>>, vector<2x4x4x16xf32>,
    %c0_220 = arith.constant 0 : index
    %c0_221 = arith.constant 0 : index
    %c0_222 = arith.constant 0 : index
    %c0_223 = arith.constant 0 : index
    %145 = vector.load %arg13[%c0_220, %c0_221, %c0_222, %c0_223] : memref<2x6x6x16xf32, #tpu.memory_space<vmem>>, vector<2x4x4x16xf32>
    %c0_224 = arith.constant 0 : index
    %c0_225 = arith.constant 0 : index
    %c1_226 = arith.constant 1 : index
    %c0_227 = arith.constant 0 : index
    %146 = vector.load %arg13[%c0_224, %c0_225, %c1_226, %c0_227] : memref<2x6x6x16xf32, #tpu.memory_space<vmem>>, vector<2x4x4x16xf32>
    %c0_228 = arith.constant 0 : index
    %c0_229 = arith.constant 0 : index
    %c2_230 = arith.constant 2 : index
    %c0_231 = arith.constant 0 : index
    %147 = vector.load %arg13[%c0_228, %c0_229, %c2_230, %c0_231] : memref<2x6x6x16xf32, #tpu.memory_space<vmem>>, vector<2x4x4x16xf32>
    %c0_232 = arith.constant 0 : index
    %c1_233 = arith.constant 1 : index
    %c0_234 = arith.constant 0 : index
    %c0_235 = arith.constant 0 : index
    %148 = vector.load %arg13[%c0_232, %c1_233, %c0_234, %c0_235] : memref<2x6x6x16xf32, #tpu.memory_space<vmem>>, vector<2x4x4x16xf32>
    %c0_236 = arith.constant 0 : index
    %c1_237 = arith.constant 1 : index
    %c1_238 = arith.constant 1 : index
    %c0_239 = arith.constant 0 : index
    %149 = vector.load %arg13[%c0_236, %c1_237, %c1_238, %c0_239] : memref<2x6x6x16xf32, #tpu.memory_space<vmem>>, vector<2x4x4x16xf32>
    %c0_240 = arith.constant 0 : index
    %c1_241 = arith.constant 1 : index
    %c2_242 = arith.constant 2 : index
    %c0_243 = arith.constant 0 : index
    %150 = vector.load %arg13[%c0_240, %c1_241, %c2_242, %c0_243] : memref<2x6x6x16xf32, #tpu.memory_space<vmem>>, vector<2x4x4x16xf32>
    %c0_244 = arith.constant 0 : index
    %c2_245 = arith.constant 2 : index
    %c0_246 = arith.constant 0 : index
    %c0_247 = arith.constant 0 : index
    %151 = vector.load %arg13[%c0_244, %c2_245, %c0_246, %c0_247] : memref<2x6x6x16xf32, #tpu.memory_space<vmem>>, vector<2x4x4x16xf32>
    %c0_248 = arith.constant 0 : index
    %c2_249 = arith.constant 2 : index
    %c1_250 = arith.constant 1 : index
    %c0_251 = arith.constant 0 : index
    %152 = vector.load %arg13[%c0_248, %c2_249, %c1_250, %c0_251] : memref<2x6x6x16xf32, #tpu.memory_space<vmem>>, vector<2x4x4x16xf32>
    %c0_252 = arith.constant 0 : index
    %c2_253 = arith.constant 2 : index
    %c2_254 = arith.constant 2 : index
    %c0_255 = arith.constant 0 : index
    %153 = vector.load %arg13[%c0_252, %c2_253, %c2_254, %c0_255] : memref<2x6x6x16xf32, #tpu.memory_space<vmem>>, vector<2x4x4x16xf32>
    %154 = tpu.concatenate %145, %146, %147, %148, %149, %150, %151, %152, %153 in 3 : vector<2x4x4x16xf32>, vector<2x4x4x16xf32>, vector<2x4x4x16xf32>, vector<2x4x4x16xf32>, vector<2x4x4x16xf32>, vector<2x4x4x16xf32>, vector<2x4x4x16xf32>, vector<2x4x4x16xf32>, vector<2x4x4x16xf32> -> vector<2x4x4x144xf32>
    %155 = vector.shape_cast %154 : vector<2x4x4x144xf32> to vector<32x144xf32>
    %156 = arith.truncf %155 : vector<32x144xf32> to vector<32x144xbf16>
    %c0_256 = arith.constant 0 : index
    %c0_257 = arith.constant 0 : index
    %c0_258 = arith.constant 0 : index
    %157 = vector.load %arg8[%c0_256, %c0_257, %c0_258] : memref<1x144x1xbf16, #tpu.memory_space<vmem>>, vector<1x144x1xbf16>
    %158 = vector.shape_cast %157 : vector<1x144x1xbf16> to vector<144x1xbf16>
    %cst_259 = arith.constant dense<0.000000e+00> : vector<32x1xf32>
    %159 = tpu.matmul %156, %158, %cst_259 {dimension_numbers = #tpu.dot_dimension_numbers<[1], [0], [0], [1], [0, 0, 1, 1], [], []>} : vector<32x144xbf16>, vector<144x1xbf16>, vector<32x1xf32> -> vector<32x1xf32>
    %c0_260 = arith.constant 0 : index
    %c0_261 = arith.constant 0 : index
    %c0_262 = arith.constant 0 : index
    %160 = vector.load %arg9[%c0_260, %c0_261, %c0_262] : memref<1x1x1xf32, #tpu.memory_space<vmem>>, vector<1x1x1xf32>
    %161 = vector.shape_cast %160 : vector<1x1x1xf32> to vector<1x1xf32>
    %162 = vector.broadcast %161 : vector<1x1xf32> to vector<32x1xf32>
    %163 = arith.addf %159, %162 : vector<32x1xf32>
    %164 = vector.shape_cast %163 : vector<32x1xf32> to vector<2x16xf32>
    %c0_263 = arith.constant 0 : index
    %c0_264 = arith.constant 0 : index
    %c0_265 = arith.constant 0 : index
    %165 = vector.load %arg10[%c0_263, %c0_264, %c0_265] : memref<1x2x16xf32, #tpu.memory_space<vmem>>, vector<1x2x16xf32>
    %166 = vector.shape_cast %165 : vector<1x2x16xf32> to vector<2x16xf32>
    %167 = vector.shape_cast %164 : vector<2x16xf32> to vector<1x2x16xf32>
    tpu.vector_store %arg10[%c0_263, %c0_264, %c0_265], %167 {strides = array<i32>} : memref<1x2x16xf32, #tpu.memory_space<vmem>>, vector<1x2x16xf32>,
    return
  }
  func.func @transform_0(%arg0: i32) -> (i32, i32, i32, i32, i32) {
    %c0_i32 = arith.constant 0 : i32
    %c0_i32_0 = arith.constant 0 : i32
    %c0_i32_1 = arith.constant 0 : i32
    %c0_i32_2 = arith.constant 0 : i32
    %c0_i32_3 = arith.constant 0 : i32
    return %arg0, %c0_i32, %c0_i32_0, %c0_i32_1, %c0_i32_2 : i32, i32, i32, i32, i32
  }
  func.func @transform_1(%arg0: i32) -> (i32, i32, i32) {
    %c0_i32 = arith.constant 0 : i32
    %c0_i32_0 = arith.constant 0 : i32
    %c0_i32_1 = arith.constant 0 : i32
    return %arg0, %c0_i32, %c0_i32_0 : i32, i32, i32
  }
  func.func @transform_2(%arg0: i32) -> (i32, i32, i32) {
    %c0_i32 = arith.constant 0 : i32
    %c0_i32_0 = arith.constant 0 : i32
    %c0_i32_1 = arith.constant 0 : i32
    return %arg0, %c0_i32, %c0_i32_0 : i32, i32, i32
  }
  func.func @transform_3(%arg0: i32) -> (i32, i32, i32) {
    %c0_i32 = arith.constant 0 : i32
    %c0_i32_0 = arith.constant 0 : i32
    %c0_i32_1 = arith.constant 0 : i32
    return %arg0, %c0_i32, %c0_i32_0 : i32, i32, i32
  }
  func.func @transform_4(%arg0: i32) -> (i32, i32, i32) {
    %c0_i32 = arith.constant 0 : i32
    %c0_i32_0 = arith.constant 0 : i32
    %c0_i32_1 = arith.constant 0 : i32
    return %arg0, %c0_i32, %c0_i32_0 : i32, i32, i32
  }
  func.func @transform_5(%arg0: i32) -> (i32, i32, i32) {
    %c0_i32 = arith.constant 0 : i32
    %c0_i32_0 = arith.constant 0 : i32
    %c0_i32_1 = arith.constant 0 : i32
    return %arg0, %c0_i32, %c0_i32_0 : i32, i32, i32
  }
  func.func @transform_6(%arg0: i32) -> (i32, i32, i32) {
    %c0_i32 = arith.constant 0 : i32
    %c0_i32_0 = arith.constant 0 : i32
    %c0_i32_1 = arith.constant 0 : i32
    return %arg0, %c0_i32, %c0_i32_0 : i32, i32, i32
  }
  func.func @transform_7(%arg0: i32) -> (i32, i32, i32) {
    %c0_i32 = arith.constant 0 : i32
    %c0_i32_0 = arith.constant 0 : i32
    %c0_i32_1 = arith.constant 0 : i32
    return %arg0, %c0_i32, %c0_i32_0 : i32, i32, i32
  }
  func.func @transform_8(%arg0: i32) -> (i32, i32, i32) {
    %c0_i32 = arith.constant 0 : i32
    %c0_i32_0 = arith.constant 0 : i32
    %c0_i32_1 = arith.constant 0 : i32
    return %arg0, %c0_i32, %c0_i32_0 : i32, i32, i32
  }
  func.func @transform_9(%arg0: i32) -> (i32, i32, i32) {
    %c0_i32 = arith.constant 0 : i32
    %c0_i32_0 = arith.constant 0 : i32
    %c0_i32_1 = arith.constant 0 : i32
    return %arg0, %c0_i32, %c0_i32_0 : i32, i32, i32
  }
}

</mosaic_0001>

<llo_original>
// kernel: tpu_custom_call.1
$region0: #{tpu_custom_call.1}
  #allocation0 [shape = 'u32[]', space=smem, size = 0x4, offset = 0x4, fixed_abs, tag = 'smem constant byte address 0x4 - core index']
  #allocation1 [shape = 'u32[72,128]{1,0:T(1,128)}', space=vmem, size = 0x9000, scoped, tag = 'internal scratch']
  #allocation2 [shape = 'f32[2,10,10,8]{3,2,1,0:T(8,128)}', space=vmem, size = 0x28000, scoped, tag = 'scratch operand']
  #allocation3 [shape = 'f32[2,6,6,16]{3,2,1,0:T(8,128)}', space=vmem, size = 0xc000, scoped, tag = 'scratch operand']
  #allocation4 [shape = 'f32[2,6,6,16]{3,2,1,0:T(8,128)}', space=vmem, size = 0xc000, scoped, tag = 'scratch operand']
  %s0 = inlined_call_operand.vmem [shape: f32[2,2,18,18,3], index: 0, kind: input, shape index: {}]
  %s1 = inlined_call_operand.vmem [shape: bf16[2,27,8], index: 1, kind: input, shape index: {}]
  %s2 = inlined_call_operand.vmem [shape: f32[2,1,8], index: 2, kind: input, shape index: {}]
  %s3 = inlined_call_operand.vmem [shape: bf16[2,72,16], index: 3, kind: input, shape index: {}]
  %s4 = inlined_call_operand.vmem [shape: f32[2,1,16], index: 4, kind: input, shape index: {}]
  %s5 = inlined_call_operand.vmem [shape: bf16[2,144,16], index: 5, kind: input, shape index: {}]
  %s6 = inlined_call_operand.vmem [shape: f32[2,1,16], index: 6, kind: input, shape index: {}]
  %s7 = inlined_call_operand.vmem [shape: bf16[2,144,1], index: 7, kind: input, shape index: {}]
  %s8 = inlined_call_operand.vmem [shape: f32[2,1,1], index: 8, kind: input, shape index: {}]
  %s9 = inlined_call_operand.hbm [shape: f32[2,2,16], index: 9, kind: output, shape index: {}]
  %s10 = sld [smem:[#allocation0]]
  $region69: #{tpu_custom_call.1} parent=0
    _
  %s12 = ssub.s32 1, %s10
  %s13 = scalar_select 0, %s12, %s10
  $region1: #{tpu_custom_call.1} parent=0
    #allocation5 [shape = 'u8[2048]{0}', space=vmem, size = 0x800, scoped, tag = 'output window, operand 0']
    #allocation6 [shape = 's32[2]{0}', space=sflag, size = 0x8, scoped, tag = 'scoped memory for tpu_custom_call.1']
    %14 = vsyncpa [#allocation6], 0
    %s15 = scalar_lea.sflag [#allocation6], 1
    %16 = vsyncpa %s15, 0
    loop: start=0, step=1, limit=4
    $region2: #{tpu_custom_call.1} parent=1 // loop_pre_header
      _
    $region3: #{tpu_custom_call.1} parent=1 // loop_header
      %s18 = sphi 0, %s22
      %p19 = scmp.ge.s32.totalorder %s18, 4
      %s28 = sphi 0, %s30
      %s31 = sphi 0, %s28
      %s32 = sphi 0, %s31
      %s48 = sphi 0, %s32
      %s54 = sphi 0, %s56
      %s57 = sphi 0, %s54
      %s58 = sphi 0, %s57
      %s74 = sphi 0, %s58
      %s80 = sphi 0, %s82
      %s83 = sphi 0, %s80
      %s84 = sphi 0, %s83
      %s100 = sphi 0, %s84
      %s106 = sphi 0, %s108
      %s109 = sphi 0, %s106
      %s110 = sphi 0, %s109
      %s126 = sphi 0, %s110
      %s132 = sphi 0, %s134
      %s135 = sphi 0, %s132
      %s136 = sphi 0, %s135
      %s152 = sphi 0, %s136
      %s158 = sphi 0, %s160
      %s161 = sphi 0, %s158
      %s162 = sphi 0, %s161
      %s178 = sphi 0, %s162
      %s184 = sphi 0, %s186
      %s187 = sphi 0, %s184
      %s188 = sphi 0, %s187
      %s204 = sphi 0, %s188
      %s210 = sphi 0, %s212
      %s213 = sphi 0, %s210
      %s214 = sphi 0, %s213
      %s230 = sphi 0, %s214
      %s236 = sphi 0, %s238
      %s239 = sphi 0, %s236
      %s240 = sphi 0, %s239
      %s256 = sphi 0, %s240
      %s262 = sphi 0, %s264
      %s265 = sphi 0, %s262
      %s266 = sphi 0, %s265
      %s282 = sphi 0, %s266
    $region4: #{tpu_custom_call.1} parent=1 // loop_header_branch
      %21 = sbr.rel (%p19) target = $region8
    $region5: #{tpu_custom_call.1} parent=1 // loop_body
      %s23 = ssub.s32 %s18, 1
      %s24 = ssub.s32 %s18, 2
      %s25 = sadd.s32 %s18, 1
      %s26 = ssub.s32 %s18, %s25
      %p27 = scmp.eq.s32.totalorder %s26, 0
      %s29 = sadd.s32 %s28, 1
      %s30 = scalar_select %p27, %s28, %s29
      %p33 = pneg %p27
      %p34 = scmp.eq.s32.totalorder %s18, 1
      %p35 = por %p33, %p34
      %p36 = scmp.ne.s32.totalorder %s28, %s31
      %p37 = scmp.eq.s32.totalorder %s18, 0
      %p38 = por %p36, %p37
      %p39 = scmp.ne.s32.totalorder %s28, %s31
      %p40 = scmp.eq.s32.totalorder %s23, 1
      %p41 = por %p39, %p40
      %p42 = scmp.ne.s32.totalorder %s31, %s32
      %p43 = scmp.eq.s32.totalorder %s23, 0
      %p44 = por %p42, %p43
      %p45 = scmp.ne.s32.totalorder %s31, %s32
      %p46 = scmp.eq.s32.totalorder %s24, 1
      %p47 = por %p45, %p46
      %p49 = scmp.ne.s32.totalorder %s32, %s48
      %p50 = scmp.eq.s32.totalorder %s24, 0
      %p51 = por %p49, %p50
      %s52 = ssub.s32 %s18, %s25
      %p53 = scmp.eq.s32.totalorder %s52, 0
      %s55 = sadd.s32 %s54, 1
      %s56 = scalar_select %p53, %s54, %s55
      %p59 = pneg %p53
      %p60 = scmp.eq.s32.totalorder %s18, 1
      %p61 = por %p59, %p60
      %p62 = scmp.ne.s32.totalorder %s54, %s57
      %p63 = scmp.eq.s32.totalorder %s18, 0
      %p64 = por %p62, %p63
      %p65 = scmp.ne.s32.totalorder %s54, %s57
      %p66 = scmp.eq.s32.totalorder %s23, 1
      %p67 = por %p65, %p66
      %p68 = scmp.ne.s32.totalorder %s57, %s58
      %p69 = scmp.eq.s32.totalorder %s23, 0
      %p70 = por %p68, %p69
      %p71 = scmp.ne.s32.totalorder %s57, %s58
      %p72 = scmp.eq.s32.totalorder %s24, 1
      %p73 = por %p71, %p72
      %p75 = scmp.ne.s32.totalorder %s58, %s74
      %p76 = scmp.eq.s32.totalorder %s24, 0
      %p77 = por %p75, %p76
      %s78 = ssub.s32 %s18, %s25
      %p79 = scmp.eq.s32.totalorder %s78, 0
      %s81 = sadd.s32 %s80, 1
      %s82 = scalar_select %p79, %s80, %s81
      %p85 = pneg %p79
      %p86 = scmp.eq.s32.totalorder %s18, 1
      %p87 = por %p85, %p86
      %p88 = scmp.ne.s32.totalorder %s80, %s83
      %p89 = scmp.eq.s32.totalorder %s18, 0
      %p90 = por %p88, %p89
      %p91 = scmp.ne.s32.totalorder %s80, %s83
      %p92 = scmp.eq.s32.totalorder %s23, 1
      %p93 = por %p91, %p92
      %p94 = scmp.ne.s32.totalorder %s83, %s84
      %p95 = scmp.eq.s32.totalorder %s23, 0
      %p96 = por %p94, %p95
      %p97 = scmp.ne.s32.totalorder %s83, %s84
      %p98 = scmp.eq.s32.totalorder %s24, 1
      %p99 = por %p97, %p98
      %p101 = scmp.ne.s32.totalorder %s84, %s100
      %p102 = scmp.eq.s32.totalorder %s24, 0
      %p103 = por %p101, %p102
      %s104 = ssub.s32 %s18, %s25
      %p105 = scmp.eq.s32.totalorder %s104, 0
      %s107 = sadd.s32 %s106, 1
      %s108 = scalar_select %p105, %s106, %s107
      %p111 = pneg %p105
      %p112 = scmp.eq.s32.totalorder %s18, 1
      %p113 = por %p111, %p112
      %p114 = scmp.ne.s32.totalorder %s106, %s109
      %p115 = scmp.eq.s32.totalorder %s18, 0
      %p116 = por %p114, %p115
      %p117 = scmp.ne.s32.totalorder %s106, %s109
      %p118 = scmp.eq.s32.totalorder %s23, 1
      %p119 = por %p117, %p118
      %p120 = scmp.ne.s32.totalorder %s109, %s110
      %p121 = scmp.eq.s32.totalorder %s23, 0
      %p122 = por %p120, %p121
      %p123 = scmp.ne.s32.totalorder %s109, %s110
      %p124 = scmp.eq.s32.totalorder %s24, 1
      %p125 = por %p123, %p124
      %p127 = scmp.ne.s32.totalorder %s110, %s126
      %p128 = scmp.eq.s32.totalorder %s24, 0
      %p129 = por %p127, %p128
      %s130 = ssub.s32 %s18, %s25
      %p131 = scmp.eq.s32.totalorder %s130, 0
      %s133 = sadd.s32 %s132, 1
      %s134 = scalar_select %p131, %s132, %s133
      %p137 = pneg %p131
      %p138 = scmp.eq.s32.totalorder %s18, 1
      %p139 = por %p137, %p138
      %p140 = scmp.ne.s32.totalorder %s132, %s135
      %p141 = scmp.eq.s32.totalorder %s18, 0
      %p142 = por %p140, %p141
      %p143 = scmp.ne.s32.totalorder %s132, %s135
      %p144 = scmp.eq.s32.totalorder %s23, 1
      %p145 = por %p143, %p144
      %p146 = scmp.ne.s32.totalorder %s135, %s136
      %p147 = scmp.eq.s32.totalorder %s23, 0
      %p148 = por %p146, %p147
      %p149 = scmp.ne.s32.totalorder %s135, %s136
      %p150 = scmp.eq.s32.totalorder %s24, 1
      %p151 = por %p149, %p150
      %p153 = scmp.ne.s32.totalorder %s136, %s152
      %p154 = scmp.eq.s32.totalorder %s24, 0
      %p155 = por %p153, %p154
      %s156 = ssub.s32 %s18, %s25
      %p157 = scmp.eq.s32.totalorder %s156, 0
      %s159 = sadd.s32 %s158, 1
      %s160 = scalar_select %p157, %s158, %s159
      %p163 = pneg %p157
      %p164 = scmp.eq.s32.totalorder %s18, 1
      %p165 = por %p163, %p164
      %p166 = scmp.ne.s32.totalorder %s158, %s161
      %p167 = scmp.eq.s32.totalorder %s18, 0
      %p168 = por %p166, %p167
      %p169 = scmp.ne.s32.totalorder %s158, %s161
      %p170 = scmp.eq.s32.totalorder %s23, 1
      %p171 = por %p169, %p170
      %p172 = scmp.ne.s32.totalorder %s161, %s162
      %p173 = scmp.eq.s32.totalorder %s23, 0
      %p174 = por %p172, %p173
      %p175 = scmp.ne.s32.totalorder %s161, %s162
      %p176 = scmp.eq.s32.totalorder %s24, 1
      %p177 = por %p175, %p176
      %p179 = scmp.ne.s32.totalorder %s162, %s178
      %p180 = scmp.eq.s32.totalorder %s24, 0
      %p181 = por %p179, %p180
      %s182 = ssub.s32 %s18, %s25
      %p183 = scmp.eq.s32.totalorder %s182, 0
      %s185 = sadd.s32 %s184, 1
      %s186 = scalar_select %p183, %s184, %s185
      %p189 = pneg %p183
      %p190 = scmp.eq.s32.totalorder %s18, 1
      %p191 = por %p189, %p190
      %p192 = scmp.ne.s32.totalorder %s184, %s187
      %p193 = scmp.eq.s32.totalorder %s18, 0
      %p194 = por %p192, %p193
      %p195 = scmp.ne.s32.totalorder %s184, %s187
      %p196 = scmp.eq.s32.totalorder %s23, 1
      %p197 = por %p195, %p196
      %p198 = scmp.ne.s32.totalorder %s187, %s188
      %p199 = scmp.eq.s32.totalorder %s23, 0
      %p200 = por %p198, %p199
      %p201 = scmp.ne.s32.totalorder %s187, %s188
      %p202 = scmp.eq.s32.totalorder %s24, 1
      %p203 = por %p201, %p202
      %p205 = scmp.ne.s32.totalorder %s188, %s204
      %p206 = scmp.eq.s32.totalorder %s24, 0
      %p207 = por %p205, %p206
      %s208 = ssub.s32 %s18, %s25
      %p209 = scmp.eq.s32.totalorder %s208, 0
      %s211 = sadd.s32 %s210, 1
      %s212 = scalar_select %p209, %s210, %s211
      %p215 = pneg %p209
      %p216 = scmp.eq.s32.totalorder %s18, 1
      %p217 = por %p215, %p216
      %p218 = scmp.ne.s32.totalorder %s210, %s213
      %p219 = scmp.eq.s32.totalorder %s18, 0
      %p220 = por %p218, %p219
      %p221 = scmp.ne.s32.totalorder %s210, %s213
      %p222 = scmp.eq.s32.totalorder %s23, 1
      %p223 = por %p221, %p222
      %p224 = scmp.ne.s32.totalorder %s213, %s214
      %p225 = scmp.eq.s32.totalorder %s23, 0
      %p226 = por %p224, %p225
      %p227 = scmp.ne.s32.totalorder %s213, %s214
      %p228 = scmp.eq.s32.totalorder %s24, 1
      %p229 = por %p227, %p228
      %p231 = scmp.ne.s32.totalorder %s214, %s230
      %p232 = scmp.eq.s32.totalorder %s24, 0
      %p233 = por %p231, %p232
      %s234 = ssub.s32 %s18, %s25
      %p235 = scmp.eq.s32.totalorder %s234, 0
      %s237 = sadd.s32 %s236, 1
      %s238 = scalar_select %p235, %s236, %s237
      %p241 = pneg %p235
      %p242 = scmp.eq.s32.totalorder %s18, 1
      %p243 = por %p241, %p242
      %p244 = scmp.ne.s32.totalorder %s236, %s239
      %p245 = scmp.eq.s32.totalorder %s18, 0
      %p246 = por %p244, %p245
      %p247 = scmp.ne.s32.totalorder %s236, %s239
      %p248 = scmp.eq.s32.totalorder %s23, 1
      %p249 = por %p247, %p248
      %p250 = scmp.ne.s32.totalorder %s239, %s240
      %p251 = scmp.eq.s32.totalorder %s23, 0
      %p252 = por %p250, %p251
      %p253 = scmp.ne.s32.totalorder %s239, %s240
      %p254 = scmp.eq.s32.totalorder %s24, 1
      %p255 = por %p253, %p254
      %p257 = scmp.ne.s32.totalorder %s240, %s256
      %p258 = scmp.eq.s32.totalorder %s24, 0
      %p259 = por %p257, %p258
      %s260 = ssub.s32 %s18, %s25
      %p261 = scmp.eq.s32.totalorder %s260, 0
      %s263 = sadd.s32 %s262, 1
      %s264 = scalar_select %p261, %s262, %s263
      %p267 = pneg %p261
      %p268 = scmp.eq.s32.totalorder %s18, 1
      %p269 = por %p267, %p268
      %p270 = scmp.ne.s32.totalorder %s262, %s265
      %p271 = scmp.eq.s32.totalorder %s18, 0
      %p272 = por %p270, %p271
      %p273 = scmp.ne.s32.totalorder %s262, %s265
      %p274 = scmp.eq.s32.totalorder %s23, 1
      %p275 = por %p273, %p274
      %p276 = scmp.ne.s32.totalorder %s265, %s266
      %p277 = scmp.eq.s32.totalorder %s23, 0
      %p278 = por %p276, %p277
      %p279 = scmp.ne.s32.totalorder %s265, %s266
      %p280 = scmp.eq.s32.totalorder %s24, 1
      %p281 = por %p279, %p280
      %p283 = scmp.ne.s32.totalorder %s266, %s282
      %p284 = scmp.eq.s32.totalorder %s24, 0
      %p285 = por %p283, %p284
      %p286 = scmp.le.s32.totalorder 1, %s18
      %p287 = scmp.lt.s32.totalorder %s18, 3
      %p288 = pnand %p286, %p287
      %p289 = pneg %p288
      // Predicated region
      $region9: #{tpu_custom_call.1} parent=5 // pred_check
        _
      $region10: #{tpu_custom_call.1} parent=5 // pred_check_branch
        %291 = sbr.rel (%p288) target = $region12
      $region11: #{tpu_custom_call.1} parent=5 // pred_region
        %s292 = ssub.s32 %s18, 1
      $region12: #{tpu_custom_call.1} parent=5 // pred_fallthru
        _
      %p293 = scmp.lt.s32.totalorder %s18, 2
      // Predicated region
      $region13: #{tpu_custom_call.1} parent=5 // pred_check
        %p294 = pneg %p293
      $region14: #{tpu_custom_call.1} parent=5 // pred_check_branch
        %296 = sbr.rel (%p294) target = $region16
      $region15: #{tpu_custom_call.1} parent=5 // pred_region
        // Predicated region
        $region17: #{tpu_custom_call.1} parent=15 // pred_check
          %p297 = pneg %p38
        $region18: #{tpu_custom_call.1} parent=15 // pred_check_branch
          %299 = sbr.rel (%p297) target = $region20
        $region19: #{tpu_custom_call.1} parent=15 // pred_region
          %p300 = scmp.lt.s32.totalorder %s18, 1
          %s301 = scalar_select %p300, %s18, 1
          %s302 = smul.addr %s301, 108
          %s303 = smul.addr %s302, 8
          %s304 = scalar_lea.vmem %s0, %s303
        $region20: #{tpu_custom_call.1} parent=15 // pred_fallthru
          _
        // Predicated region
        $region21: #{tpu_custom_call.1} parent=15 // pred_check
          %p305 = pneg %p64
        $region22: #{tpu_custom_call.1} parent=15 // pred_check_branch
          %307 = sbr.rel (%p305) target = $region24
        $region23: #{tpu_custom_call.1} parent=15 // pred_region
          %p308 = scmp.lt.s32.totalorder %s18, 1
          %s309 = scalar_select %p308, %s18, 1
          %s310 = smul.addr %s309, 4
          %s311 = smul.addr %s310, 4
          %s312 = scalar_lea.vmem %s1, %s311
        $region24: #{tpu_custom_call.1} parent=15 // pred_fallthru
          _
        // Predicated region
        $region25: #{tpu_custom_call.1} parent=15 // pred_check
          %p313 = pneg %p90
        $region26: #{tpu_custom_call.1} parent=15 // pred_check_branch
          %315 = sbr.rel (%p313) target = $region28
        $region27: #{tpu_custom_call.1} parent=15 // pred_region
          %p316 = scmp.lt.s32.totalorder %s18, 1
          %s317 = scalar_select %p316, %s18, 1
          %s318 = scalar_lea.vmem %s2, %s317
        $region28: #{tpu_custom_call.1} parent=15 // pred_fallthru
          _
        // Predicated region
        $region29: #{tpu_custom_call.1} parent=15 // pred_check
          %p319 = pneg %p116
        $region30: #{tpu_custom_call.1} parent=15 // pred_check_branch
          %321 = sbr.rel (%p319) target = $region32
        $region31: #{tpu_custom_call.1} parent=15 // pred_region
          %p322 = scmp.lt.s32.totalorder %s18, 1
          %s323 = scalar_select %p322, %s18, 1
          %s324 = smul.addr %s323, 9
          %s325 = smul.addr %s324, 4
          %s326 = scalar_lea.vmem %s3, %s325
        $region32: #{tpu_custom_call.1} parent=15 // pred_fallthru
          _
        // Predicated region
        $region33: #{tpu_custom_call.1} parent=15 // pred_check
          %p327 = pneg %p142
        $region34: #{tpu_custom_call.1} parent=15 // pred_check_branch
          %329 = sbr.rel (%p327) target = $region36
        $region35: #{tpu_custom_call.1} parent=15 // pred_region
          %p330 = scmp.lt.s32.totalorder %s18, 1
          %s331 = scalar_select %p330, %s18, 1
          %s332 = scalar_lea.vmem %s4, %s331
        $region36: #{tpu_custom_call.1} parent=15 // pred_fallthru
          _
        // Predicated region
        $region37: #{tpu_custom_call.1} parent=15 // pred_check
          %p333 = pneg %p168
        $region38: #{tpu_custom_call.1} parent=15 // pred_check_branch
          %335 = sbr.rel (%p333) target = $region40
        $region39: #{tpu_custom_call.1} parent=15 // pred_region
          %p336 = scmp.lt.s32.totalorder %s18, 1
          %s337 = scalar_select %p336, %s18, 1
          %s338 = smul.addr %s337, 18
          %s339 = smul.addr %s338, 4
          %s340 = scalar_lea.vmem %s5, %s339
        $region40: #{tpu_custom_call.1} parent=15 // pred_fallthru
          _
        // Predicated region
        $region41: #{tpu_custom_call.1} parent=15 // pred_check
          %p341 = pneg %p194
        $region42: #{tpu_custom_call.1} parent=15 // pred_check_branch
          %343 = sbr.rel (%p341) target = $region44
        $region43: #{tpu_custom_call.1} parent=15 // pred_region
          %p344 = scmp.lt.s32.totalorder %s18, 1
          %s345 = scalar_select %p344, %s18, 1
          %s346 = scalar_lea.vmem %s6, %s345
        $region44: #{tpu_custom_call.1} parent=15 // pred_fallthru
          _
        // Predicated region
        $region45: #{tpu_custom_call.1} parent=15 // pred_check
          %p347 = pneg %p220
        $region46: #{tpu_custom_call.1} parent=15 // pred_check_branch
          %349 = sbr.rel (%p347) target = $region48
        $region47: #{tpu_custom_call.1} parent=15 // pred_region
          %p350 = scmp.lt.s32.totalorder %s18, 1
          %s351 = scalar_select %p350, %s18, 1
          %s352 = smul.addr %s351, 18
          %s353 = smul.addr %s352, 4
          %s354 = scalar_lea.vmem %s7, %s353
        $region48: #{tpu_custom_call.1} parent=15 // pred_fallthru
          _
        // Predicated region
        $region49: #{tpu_custom_call.1} parent=15 // pred_check
          %p355 = pneg %p246
        $region50: #{tpu_custom_call.1} parent=15 // pred_check_branch
          %357 = sbr.rel (%p355) target = $region52
        $region51: #{tpu_custom_call.1} parent=15 // pred_region
          %p358 = scmp.lt.s32.totalorder %s18, 1
          %s359 = scalar_select %p358, %s18, 1
          %s360 = scalar_lea.vmem %s8, %s359
        $region52: #{tpu_custom_call.1} parent=15 // pred_fallthru
          _
      $region16: #{tpu_custom_call.1} parent=5 // pred_fallthru
        _
      %p361 = scmp.le.s32.totalorder 1, %s18
      %p362 = scmp.lt.s32.totalorder %s18, 3
      %p363 = pnand %p361, %p362
      %p364 = pneg %p363
      // Predicated region
      $region53: #{tpu_custom_call.1} parent=5 // pred_check
        _
      $region54: #{tpu_custom_call.1} parent=5 // pred_check_branch
        %366 = sbr.rel (%p363) target = $region56
      $region55: #{tpu_custom_call.1} parent=5 // pred_region
        %s367 = ssub.s32 %s18, 1
        %p368 = scmp.lt.s32.totalorder %s23, 1
        %s369 = scalar_select %p368, %s23, 1
        %s370 = smul.addr %s369, 108
        %s371 = smul.addr %s370, 8
        %s372 = scalar_lea.vmem %s0, %s371
        %p373 = pneg %p44
        %p374 = pneg %p41
        %p375 = scmp.lt.s32.totalorder %s23, 1
        %s376 = scalar_select %p375, %s23, 1
        %s377 = smul.addr %s376, 4
        %s378 = smul.addr %s377, 4
        %s379 = scalar_lea.vmem %s1, %s378
        %p380 = pneg %p70
        %p381 = pneg %p67
        %p382 = scmp.lt.s32.totalorder %s23, 1
        %s383 = scalar_select %p382, %s23, 1
        %s384 = scalar_lea.vmem %s2, %s383
        %p385 = pneg %p96
        %p386 = pneg %p93
        %p387 = scmp.lt.s32.totalorder %s23, 1
        %s388 = scalar_select %p387, %s23, 1
        %s389 = smul.addr %s388, 9
        %s390 = smul.addr %s389, 4
        %s391 = scalar_lea.vmem %s3, %s390
        %p392 = pneg %p122
        %p393 = pneg %p119
        %p394 = scmp.lt.s32.totalorder %s23, 1
        %s395 = scalar_select %p394, %s23, 1
        %s396 = scalar_lea.vmem %s4, %s395
        %p397 = pneg %p148
        %p398 = pneg %p145
        %p399 = scmp.lt.s32.totalorder %s23, 1
        %s400 = scalar_select %p399, %s23, 1
        %s401 = smul.addr %s400, 18
        %s402 = smul.addr %s401, 4
        %s403 = scalar_lea.vmem %s5, %s402
        %p404 = pneg %p174
        %p405 = pneg %p171
        %p406 = scmp.lt.s32.totalorder %s23, 1
        %s407 = scalar_select %p406, %s23, 1
        %s408 = scalar_lea.vmem %s6, %s407
        %p409 = pneg %p200
        %p410 = pneg %p197
        %p411 = scmp.lt.s32.totalorder %s23, 1
        %s412 = scalar_select %p411, %s23, 1
        %s413 = smul.addr %s412, 18
        %s414 = smul.addr %s413, 4
        %s415 = scalar_lea.vmem %s7, %s414
        %p416 = pneg %p226
        %p417 = pneg %p223
        %p418 = scmp.lt.s32.totalorder %s23, 1
        %s419 = scalar_select %p418, %s23, 1
        %s420 = scalar_lea.vmem %s8, %s419
        %p421 = pneg %p252
        %p422 = pneg %p249
        %p423 = pneg %p278
        %p424 = pneg %p275
        %s425 = sand.u32 %s265, 1
        %s426 = scalar_lea.sflag [#allocation6], %s425
        %s427 = sand.u32 %s265, 1
        %s428 = smul.addr %s427, 2
        %s429 = scalar_lea.vmem [#allocation5], %s428
        %p430 = scmp.lt.s32.totalorder %s23, 1
        %s431 = scalar_select %p430, %s23, 1
        %s432 = smul.addr %s431, 108
        %s433 = smul.addr %s432, 8
        %s434 = scalar_lea.vmem %s0, %s433
        %p435 = scmp.lt.s32.totalorder %s23, 1
        %s436 = scalar_select %p435, %s23, 1
        %s437 = smul.addr %s436, 4
        %s438 = smul.addr %s437, 4
        %s439 = scalar_lea.vmem %s1, %s438
        %p440 = scmp.lt.s32.totalorder %s23, 1
        %s441 = scalar_select %p440, %s23, 1
        %s442 = scalar_lea.vmem %s2, %s441
        %p443 = scmp.lt.s32.totalorder %s23, 1
        %s444 = scalar_select %p443, %s23, 1
        %s445 = smul.addr %s444, 9
        %s446 = smul.addr %s445, 4
        %s447 = scalar_lea.vmem %s3, %s446
        %p448 = scmp.lt.s32.totalorder %s23, 1
        %s449 = scalar_select %p448, %s23, 1
        %s450 = scalar_lea.vmem %s4, %s449
        %p451 = scmp.lt.s32.totalorder %s23, 1
        %s452 = scalar_select %p451, %s23, 1
        %s453 = smul.addr %s452, 18
        %s454 = smul.addr %s453, 4
        %s455 = scalar_lea.vmem %s5, %s454
        %p456 = scmp.lt.s32.totalorder %s23, 1
        %s457 = scalar_select %p456, %s23, 1
        %s458 = scalar_lea.vmem %s6, %s457
        %p459 = scmp.lt.s32.totalorder %s23, 1
        %s460 = scalar_select %p459, %s23, 1
        %s461 = smul.addr %s460, 18
        %s462 = smul.addr %s461, 4
        %s463 = scalar_lea.vmem %s7, %s462
        %p464 = scmp.lt.s32.totalorder %s23, 1
        %s465 = scalar_select %p464, %s23, 1
        %s466 = scalar_lea.vmem %s8, %s465
        %v468 = vld [vmem:[%s434] ss:$2 sm:$0xff]
        %s469 = scalar_lea.vmem %s434, 48
        %v470 = vld [vmem:[%s469] ss:$2 sm:$0xff]
        %s471 = scalar_lea.vmem %s434, 96
        %v472 = vld [vmem:[%s471] ss:$2 sm:$0xff]
        %s473 = scalar_lea.vmem %s434, 144
        %v474 = vld [vmem:[%s473] ss:$2 sm:$0xff]
        %s475 = scalar_lea.vmem %s434, 192
        %v476 = vld [vmem:[%s475] ss:$2 sm:$0xff]
        %s477 = scalar_lea.vmem %s434, 240
        %v478 = vld [vmem:[%s477] ss:$2 sm:$0xff]
        %s479 = scalar_lea.vmem %s434, 288
        %v480 = vld [vmem:[%s479] ss:$2 sm:$0xff]
        %s481 = scalar_lea.vmem %s434, 336
        %v482 = vld [vmem:[%s481] ss:$2 sm:$0xff]
        %s483 = scalar_lea.vmem %s434, 432
        %v484 = vld [vmem:[%s483] ss:$2 sm:$0xff]
        %s485 = scalar_lea.vmem %s434, 480
        %v486 = vld [vmem:[%s485] ss:$2 sm:$0xff]
        %s487 = scalar_lea.vmem %s434, 528
        %v488 = vld [vmem:[%s487] ss:$2 sm:$0xff]
        %s489 = scalar_lea.vmem %s434, 576
        %v490 = vld [vmem:[%s489] ss:$2 sm:$0xff]
        %s491 = scalar_lea.vmem %s434, 624
        %v492 = vld [vmem:[%s491] ss:$2 sm:$0xff]
        %s493 = scalar_lea.vmem %s434, 672
        %v494 = vld [vmem:[%s493] ss:$2 sm:$0xff]
        %s495 = scalar_lea.vmem %s434, 720
        %v496 = vld [vmem:[%s495] ss:$2 sm:$0xff]
        %s497 = scalar_lea.vmem %s434, 768
        %v498 = vld [vmem:[%s497] ss:$2 sm:$0xff]
        %s499 = scalar_lea.vmem %s434, 1
        %v500 = vld [vmem:[%s499] ss:$2 sm:$0xff]
        %s501 = scalar_lea.vmem %s434, 49
        %v502 = vld [vmem:[%s501] ss:$2 sm:$0xff]
        %s503 = scalar_lea.vmem %s434, 97
        %v504 = vld [vmem:[%s503] ss:$2 sm:$0xff]
        %s505 = scalar_lea.vmem %s434, 145
        %v506 = vld [vmem:[%s505] ss:$2 sm:$0xff]
        %s507 = scalar_lea.vmem %s434, 193
        %v508 = vld [vmem:[%s507] ss:$2 sm:$0xff]
        %s509 = scalar_lea.vmem %s434, 241
        %v510 = vld [vmem:[%s509] ss:$2 sm:$0xff]
        %s511 = scalar_lea.vmem %s434, 289
        %v512 = vld [vmem:[%s511] ss:$2 sm:$0xff]
        %s513 = scalar_lea.vmem %s434, 337
        %v514 = vld [vmem:[%s513] ss:$2 sm:$0xff]
        %s515 = scalar_lea.vmem %s434, 433
        %v516 = vld [vmem:[%s515] ss:$2 sm:$0xff]
        %s517 = scalar_lea.vmem %s434, 481
        %v518 = vld [vmem:[%s517] ss:$2 sm:$0xff]
        %s519 = scalar_lea.vmem %s434, 529
        %v520 = vld [vmem:[%s519] ss:$2 sm:$0xff]
        %s521 = scalar_lea.vmem %s434, 577
        %v522 = vld [vmem:[%s521] ss:$2 sm:$0xff]
        %s523 = scalar_lea.vmem %s434, 625
        %v524 = vld [vmem:[%s523] ss:$2 sm:$0xff]
        %s525 = scalar_lea.vmem %s434, 673
        %v526 = vld [vmem:[%s525] ss:$2 sm:$0xff]
        %s527 = scalar_lea.vmem %s434, 721
        %v528 = vld [vmem:[%s527] ss:$2 sm:$0xff]
        %s529 = scalar_lea.vmem %s434, 769
        %v530 = vld [vmem:[%s529] ss:$2 sm:$0xff]
        %s531 = scalar_lea.vmem %s434, 2
        %v532 = vld [vmem:[%s531] ss:$2 sm:$0xff]
        %s533 = scalar_lea.vmem %s434, 50
        %v534 = vld [vmem:[%s533] ss:$2 sm:$0xff]
        %s535 = scalar_lea.vmem %s434, 98
        %v536 = vld [vmem:[%s535] ss:$2 sm:$0xff]
        %s537 = scalar_lea.vmem %s434, 146
        %v538 = vld [vmem:[%s537] ss:$2 sm:$0xff]
        %s539 = scalar_lea.vmem %s434, 194
        %v540 = vld [vmem:[%s539] ss:$2 sm:$0xff]
        %s541 = scalar_lea.vmem %s434, 242
        %v542 = vld [vmem:[%s541] ss:$2 sm:$0xff]
        %s543 = scalar_lea.vmem %s434, 290
        %v544 = vld [vmem:[%s543] ss:$2 sm:$0xff]
        %s545 = scalar_lea.vmem %s434, 338
        %v546 = vld [vmem:[%s545] ss:$2 sm:$0xff]
        %s547 = scalar_lea.vmem %s434, 434
        %v548 = vld [vmem:[%s547] ss:$2 sm:$0xff]
        %s549 = scalar_lea.vmem %s434, 482
        %v550 = vld [vmem:[%s549] ss:$2 sm:$0xff]
        %s551 = scalar_lea.vmem %s434, 530
        %v552 = vld [vmem:[%s551] ss:$2 sm:$0xff]
        %s553 = scalar_lea.vmem %s434, 578
        %v554 = vld [vmem:[%s553] ss:$2 sm:$0xff]
        %s555 = scalar_lea.vmem %s434, 626
        %v556 = vld [vmem:[%s555] ss:$2 sm:$0xff]
        %s557 = scalar_lea.vmem %s434, 674
        %v558 = vld [vmem:[%s557] ss:$2 sm:$0xff]
        %s559 = scalar_lea.vmem %s434, 722
        %v560 = vld [vmem:[%s559] ss:$2 sm:$0xff]
        %s561 = scalar_lea.vmem %s434, 770
        %v562 = vld [vmem:[%s561] ss:$2 sm:$0xff]
        %s563 = scalar_lea.vmem %s434, 24
        %v564 = vld [vmem:[%s563] ss:$2 sm:$0xff]
        %s565 = scalar_lea.vmem %s563, 48
        %v566 = vld [vmem:[%s565] ss:$2 sm:$0xff]
        %s567 = scalar_lea.vmem %s563, 96
        %v568 = vld [vmem:[%s567] ss:$2 sm:$0xff]
        %s569 = scalar_lea.vmem %s563, 144
        %v570 = vld [vmem:[%s569] ss:$2 sm:$0xff]
        %s571 = scalar_lea.vmem %s563, 192
        %v572 = vld [vmem:[%s571] ss:$2 sm:$0xff]
        %s573 = scalar_lea.vmem %s563, 240
        %v574 = vld [vmem:[%s573] ss:$2 sm:$0xff]
        %s575 = scalar_lea.vmem %s563, 288
        %v576 = vld [vmem:[%s575] ss:$2 sm:$0xff]
        %s577 = scalar_lea.vmem %s563, 336
        %v578 = vld [vmem:[%s577] ss:$2 sm:$0xff]
        %s579 = scalar_lea.vmem %s563, 432
        %v580 = vld [vmem:[%s579] ss:$2 sm:$0xff]
        %s581 = scalar_lea.vmem %s563, 480
        %v582 = vld [vmem:[%s581] ss:$2 sm:$0xff]
        %s583 = scalar_lea.vmem %s563, 528
        %v584 = vld [vmem:[%s583] ss:$2 sm:$0xff]
        %s585 = scalar_lea.vmem %s563, 576
        %v586 = vld [vmem:[%s585] ss:$2 sm:$0xff]
        %s587 = scalar_lea.vmem %s563, 624
        %v588 = vld [vmem:[%s587] ss:$2 sm:$0xff]
        %s589 = scalar_lea.vmem %s563, 672
        %v590 = vld [vmem:[%s589] ss:$2 sm:$0xff]
        %s591 = scalar_lea.vmem %s563, 720
        %v592 = vld [vmem:[%s591] ss:$2 sm:$0xff]
        %s593 = scalar_lea.vmem %s563, 768
        %v594 = vld [vmem:[%s593] ss:$2 sm:$0xff]
        %s595 = scalar_lea.vmem %s563, 1
        %v596 = vld [vmem:[%s595] ss:$2 sm:$0xff]
        %s597 = scalar_lea.vmem %s563, 49
        %v598 = vld [vmem:[%s597] ss:$2 sm:$0xff]
        %s599 = scalar_lea.vmem %s563, 97
        %v600 = vld [vmem:[%s599] ss:$2 sm:$0xff]
        %s601 = scalar_lea.vmem %s563, 145
        %v602 = vld [vmem:[%s601] ss:$2 sm:$0xff]
        %s603 = scalar_lea.vmem %s563, 193
        %v604 = vld [vmem:[%s603] ss:$2 sm:$0xff]
        %s605 = scalar_lea.vmem %s563, 241
        %v606 = vld [vmem:[%s605] ss:$2 sm:$0xff]
        %s607 = scalar_lea.vmem %s563, 289
        %v608 = vld [vmem:[%s607] ss:$2 sm:$0xff]
        %s609 = scalar_lea.vmem %s563, 337
        %v610 = vld [vmem:[%s609] ss:$2 sm:$0xff]
        %s611 = scalar_lea.vmem %s563, 433
        %v612 = vld [vmem:[%s611] ss:$2 sm:$0xff]
        %s613 = scalar_lea.vmem %s563, 481
        %v614 = vld [vmem:[%s613] ss:$2 sm:$0xff]
        %s615 = scalar_lea.vmem %s563, 529
        %v616 = vld [vmem:[%s615] ss:$2 sm:$0xff]
        %s617 = scalar_lea.vmem %s563, 577
        %v618 = vld [vmem:[%s617] ss:$2 sm:$0xff]
        %s619 = scalar_lea.vmem %s563, 625
        %v620 = vld [vmem:[%s619] ss:$2 sm:$0xff]
        %s621 = scalar_lea.vmem %s563, 673
        %v622 = vld [vmem:[%s621] ss:$2 sm:$0xff]
        %s623 = scalar_lea.vmem %s563, 721
        %v624 = vld [vmem:[%s623] ss:$2 sm:$0xff]
        %s625 = scalar_lea.vmem %s563, 769
        %v626 = vld [vmem:[%s625] ss:$2 sm:$0xff]
        %s627 = scalar_lea.vmem %s563, 2
        %v628 = vld [vmem:[%s627] ss:$2 sm:$0xff]
        %s629 = scalar_lea.vmem %s563, 50
        %v630 = vld [vmem:[%s629] ss:$2 sm:$0xff]
        %s631 = scalar_lea.vmem %s563, 98
        %v632 = vld [vmem:[%s631] ss:$2 sm:$0xff]
        %s633 = scalar_lea.vmem %s563, 146
        %v634 = vld [vmem:[%s633] ss:$2 sm:$0xff]
        %s635 = scalar_lea.vmem %s563, 194
        %v636 = vld [vmem:[%s635] ss:$2 sm:$0xff]
        %s637 = scalar_lea.vmem %s563, 242
        %v638 = vld [vmem:[%s637] ss:$2 sm:$0xff]
        %s639 = scalar_lea.vmem %s563, 290
        %v640 = vld [vmem:[%s639] ss:$2 sm:$0xff]
        %s641 = scalar_lea.vmem %s563, 338
        %v642 = vld [vmem:[%s641] ss:$2 sm:$0xff]
        %s643 = scalar_lea.vmem %s563, 434
        %v644 = vld [vmem:[%s643] ss:$2 sm:$0xff]
        %s645 = scalar_lea.vmem %s563, 482
        %v646 = vld [vmem:[%s645] ss:$2 sm:$0xff]
        %s647 = scalar_lea.vmem %s563, 530
        %v648 = vld [vmem:[%s647] ss:$2 sm:$0xff]
        %s649 = scalar_lea.vmem %s563, 578
        %v650 = vld [vmem:[%s649] ss:$2 sm:$0xff]
        %s651 = scalar_lea.vmem %s563, 626
        %v652 = vld [vmem:[%s651] ss:$2 sm:$0xff]
        %s653 = scalar_lea.vmem %s563, 674
        %v654 = vld [vmem:[%s653] ss:$2 sm:$0xff]
        %s655 = scalar_lea.vmem %s563, 722
        %v656 = vld [vmem:[%s655] ss:$2 sm:$0xff]
        %s657 = scalar_lea.vmem %s563, 770
        %v658 = vld [vmem:[%s657] ss:$2 sm:$0xff]
        %s659 = scalar_lea.vmem %s434, 48
        %v660 = vld [vmem:[%s659] ss:$2 sm:$0xff]
        %s661 = scalar_lea.vmem %s659, 48
        %v662 = vld [vmem:[%s661] ss:$2 sm:$0xff]
        %s663 = scalar_lea.vmem %s659, 96
        %v664 = vld [vmem:[%s663] ss:$2 sm:$0xff]
        %s665 = scalar_lea.vmem %s659, 144
        %v666 = vld [vmem:[%s665] ss:$2 sm:$0xff]
        %s667 = scalar_lea.vmem %s659, 192
        %v668 = vld [vmem:[%s667] ss:$2 sm:$0xff]
        %s669 = scalar_lea.vmem %s659, 240
        %v670 = vld [vmem:[%s669] ss:$2 sm:$0xff]
        %s671 = scalar_lea.vmem %s659, 288
        %v672 = vld [vmem:[%s671] ss:$2 sm:$0xff]
        %s673 = scalar_lea.vmem %s659, 336
        %v674 = vld [vmem:[%s673] ss:$2 sm:$0xff]
        %s675 = scalar_lea.vmem %s659, 432
        %v676 = vld [vmem:[%s675] ss:$2 sm:$0xff]
        %s677 = scalar_lea.vmem %s659, 480
        %v678 = vld [vmem:[%s677] ss:$2 sm:$0xff]
        %s679 = scalar_lea.vmem %s659, 528
        %v680 = vld [vmem:[%s679] ss:$2 sm:$0xff]
        %s681 = scalar_lea.vmem %s659, 576
        %v682 = vld [vmem:[%s681] ss:$2 sm:$0xff]
        %s683 = scalar_lea.vmem %s659, 624
        %v684 = vld [vmem:[%s683] ss:$2 sm:$0xff]
        %s685 = scalar_lea.vmem %s659, 672
        %v686 = vld [vmem:[%s685] ss:$2 sm:$0xff]
        %s687 = scalar_lea.vmem %s659, 720
        %v688 = vld [vmem:[%s687] ss:$2 sm:$0xff]
        %s689 = scalar_lea.vmem %s659, 768
        %v690 = vld [vmem:[%s689] ss:$2 sm:$0xff]
        %s691 = scalar_lea.vmem %s659, 1
        %v692 = vld [vmem:[%s691] ss:$2 sm:$0xff]
        %s693 = scalar_lea.vmem %s659, 49
        %v694 = vld [vmem:[%s693] ss:$2 sm:$0xff]
        %s695 = scalar_lea.vmem %s659, 97
        %v696 = vld [vmem:[%s695] ss:$2 sm:$0xff]
        %s697 = scalar_lea.vmem %s659, 145
        %v698 = vld [vmem:[%s697] ss:$2 sm:$0xff]
        %s699 = scalar_lea.vmem %s659, 193
        %v700 = vld [vmem:[%s699] ss:$2 sm:$0xff]
        %s701 = scalar_lea.vmem %s659, 241
        %v702 = vld [vmem:[%s701] ss:$2 sm:$0xff]
        %s703 = scalar_lea.vmem %s659, 289
        %v704 = vld [vmem:[%s703] ss:$2 sm:$0xff]
        %s705 = scalar_lea.vmem %s659, 337
        %v706 = vld [vmem:[%s705] ss:$2 sm:$0xff]
        %s707 = scalar_lea.vmem %s659, 433
        %v708 = vld [vmem:[%s707] ss:$2 sm:$0xff]
        %s709 = scalar_lea.vmem %s659, 481
        %v710 = vld [vmem:[%s709] ss:$2 sm:$0xff]
        %s711 = scalar_lea.vmem %s659, 529
        %v712 = vld [vmem:[%s711] ss:$2 sm:$0xff]
        %s713 = scalar_lea.vmem %s659, 577
        %v714 = vld [vmem:[%s713] ss:$2 sm:$0xff]
        %s715 = scalar_lea.vmem %s659, 625
        %v716 = vld [vmem:[%s715] ss:$2 sm:$0xff]
        %s717 = scalar_lea.vmem %s659, 673
        %v718 = vld [vmem:[%s717] ss:$2 sm:$0xff]
        %s719 = scalar_lea.vmem %s659, 721
        %v720 = vld [vmem:[%s719] ss:$2 sm:$0xff]
        %s721 = scalar_lea.vmem %s659, 769
        %v722 = vld [vmem:[%s721] ss:$2 sm:$0xff]
        %s723 = scalar_lea.vmem %s659, 2
        %v724 = vld [vmem:[%s723] ss:$2 sm:$0xff]
        %s725 = scalar_lea.vmem %s659, 50
        %v726 = vld [vmem:[%s725] ss:$2 sm:$0xff]
        %s727 = scalar_lea.vmem %s659, 98
        %v728 = vld [vmem:[%s727] ss:$2 sm:$0xff]
        %s729 = scalar_lea.vmem %s659, 146
        %v730 = vld [vmem:[%s729] ss:$2 sm:$0xff]
        %s731 = scalar_lea.vmem %s659, 194
        %v732 = vld [vmem:[%s731] ss:$2 sm:$0xff]
        %s733 = scalar_lea.vmem %s659, 242
        %v734 = vld [vmem:[%s733] ss:$2 sm:$0xff]
        %s735 = scalar_lea.vmem %s659, 290
        %v736 = vld [vmem:[%s735] ss:$2 sm:$0xff]
        %s737 = scalar_lea.vmem %s659, 338
        %v738 = vld [vmem:[%s737] ss:$2 sm:$0xff]
        %s739 = scalar_lea.vmem %s659, 434
        %v740 = vld [vmem:[%s739] ss:$2 sm:$0xff]
        %s741 = scalar_lea.vmem %s659, 482
        %v742 = vld [vmem:[%s741] ss:$2 sm:$0xff]
        %s743 = scalar_lea.vmem %s659, 530
        %v744 = vld [vmem:[%s743] ss:$2 sm:$0xff]
        %s745 = scalar_lea.vmem %s659, 578
        %v746 = vld [vmem:[%s745] ss:$2 sm:$0xff]
        %s747 = scalar_lea.vmem %s659, 626
        %v748 = vld [vmem:[%s747] ss:$2 sm:$0xff]
        %s749 = scalar_lea.vmem %s659, 674
        %v750 = vld [vmem:[%s749] ss:$2 sm:$0xff]
        %s751 = scalar_lea.vmem %s659, 722
        %v752 = vld [vmem:[%s751] ss:$2 sm:$0xff]
        %s753 = scalar_lea.vmem %s659, 770
        %v754 = vld [vmem:[%s753] ss:$2 sm:$0xff]
        %771 = vrot.lane.b32.xlu0 %v500, 3
        %v772 = vpop.permute.xlu0 %771
        %773 = vrot.lane.b32.xlu0 %v502, 3
        %v774 = vpop.permute.xlu0 %773
        %775 = vrot.lane.b32.xlu0 %v504, 3
        %v776 = vpop.permute.xlu0 %775
        %777 = vrot.lane.b32.xlu0 %v506, 3
        %v778 = vpop.permute.xlu0 %777
        %779 = vrot.lane.b32.xlu0 %v508, 3
        %v780 = vpop.permute.xlu0 %779
        %781 = vrot.lane.b32.xlu0 %v510, 3
        %v782 = vpop.permute.xlu0 %781
        %783 = vrot.lane.b32.xlu0 %v512, 3
        %v784 = vpop.permute.xlu0 %783
        %785 = vrot.lane.b32.xlu0 %v514, 3
        %v786 = vpop.permute.xlu0 %785
        %787 = vrot.lane.b32.xlu0 %v516, 3
        %v788 = vpop.permute.xlu0 %787
        %789 = vrot.lane.b32.xlu0 %v518, 3
        %v790 = vpop.permute.xlu0 %789
        %791 = vrot.lane.b32.xlu0 %v520, 3
        %v792 = vpop.permute.xlu0 %791
        %793 = vrot.lane.b32.xlu0 %v522, 3
        %v794 = vpop.permute.xlu0 %793
        %795 = vrot.lane.b32.xlu0 %v524, 3
        %v796 = vpop.permute.xlu0 %795
        %797 = vrot.lane.b32.xlu0 %v526, 3
        %v798 = vpop.permute.xlu0 %797
        %799 = vrot.lane.b32.xlu0 %v528, 3
        %v800 = vpop.permute.xlu0 %799
        %801 = vrot.lane.b32.xlu0 %v530, 3
        %v802 = vpop.permute.xlu0 %801
        %835 = vrot.lane.b32.xlu0 %v532, 6
        %v836 = vpop.permute.xlu0 %835
        %837 = vrot.lane.b32.xlu0 %v534, 6
        %v838 = vpop.permute.xlu0 %837
        %839 = vrot.lane.b32.xlu0 %v536, 6
        %v840 = vpop.permute.xlu0 %839
        %841 = vrot.lane.b32.xlu0 %v538, 6
        %v842 = vpop.permute.xlu0 %841
        %843 = vrot.lane.b32.xlu0 %v540, 6
        %v844 = vpop.permute.xlu0 %843
        %845 = vrot.lane.b32.xlu0 %v542, 6
        %v846 = vpop.permute.xlu0 %845
        %847 = vrot.lane.b32.xlu0 %v544, 6
        %v848 = vpop.permute.xlu0 %847
        %849 = vrot.lane.b32.xlu0 %v546, 6
        %v850 = vpop.permute.xlu0 %849
        %851 = vrot.lane.b32.xlu0 %v548, 6
        %v852 = vpop.permute.xlu0 %851
        %853 = vrot.lane.b32.xlu0 %v550, 6
        %v854 = vpop.permute.xlu0 %853
        %855 = vrot.lane.b32.xlu0 %v552, 6
        %v856 = vpop.permute.xlu0 %855
        %857 = vrot.lane.b32.xlu0 %v554, 6
        %v858 = vpop.permute.xlu0 %857
        %859 = vrot.lane.b32.xlu0 %v556, 6
        %v860 = vpop.permute.xlu0 %859
        %861 = vrot.lane.b32.xlu0 %v558, 6
        %v862 = vpop.permute.xlu0 %861
        %863 = vrot.lane.b32.xlu0 %v560, 6
        %v864 = vpop.permute.xlu0 %863
        %865 = vrot.lane.b32.xlu0 %v562, 6
        %v866 = vpop.permute.xlu0 %865
        %899 = vrot.lane.b32.xlu0 %v564, 9
        %v900 = vpop.permute.xlu0 %899
        %901 = vrot.lane.b32.xlu0 %v566, 9
        %v902 = vpop.permute.xlu0 %901
        %903 = vrot.lane.b32.xlu0 %v568, 9
        %v904 = vpop.permute.xlu0 %903
        %905 = vrot.lane.b32.xlu0 %v570, 9
        %v906 = vpop.permute.xlu0 %905
        %907 = vrot.lane.b32.xlu0 %v572, 9
        %v908 = vpop.permute.xlu0 %907
        %909 = vrot.lane.b32.xlu0 %v574, 9
        %v910 = vpop.permute.xlu0 %909
        %911 = vrot.lane.b32.xlu0 %v576, 9
        %v912 = vpop.permute.xlu0 %911
        %913 = vrot.lane.b32.xlu0 %v578, 9
        %v914 = vpop.permute.xlu0 %913
        %915 = vrot.lane.b32.xlu0 %v580, 9
        %v916 = vpop.permute.xlu0 %915
        %917 = vrot.lane.b32.xlu0 %v582, 9
        %v918 = vpop.permute.xlu0 %917
        %919 = vrot.lane.b32.xlu0 %v584, 9
        %v920 = vpop.permute.xlu0 %919
        %921 = vrot.lane.b32.xlu0 %v586, 9
        %v922 = vpop.permute.xlu0 %921
        %923 = vrot.lane.b32.xlu0 %v588, 9
        %v924 = vpop.permute.xlu0 %923
        %925 = vrot.lane.b32.xlu0 %v590, 9
        %v926 = vpop.permute.xlu0 %925
        %927 = vrot.lane.b32.xlu0 %v592, 9
        %v928 = vpop.permute.xlu0 %927
        %929 = vrot.lane.b32.xlu0 %v594, 9
        %v930 = vpop.permute.xlu0 %929
        %963 = vrot.lane.b32.xlu0 %v596, 12
        %v964 = vpop.permute.xlu0 %963
        %965 = vrot.lane.b32.xlu0 %v598, 12
        %v966 = vpop.permute.xlu0 %965
        %967 = vrot.lane.b32.xlu0 %v600, 12
        %v968 = vpop.permute.xlu0 %967
        %969 = vrot.lane.b32.xlu0 %v602, 12
        %v970 = vpop.permute.xlu0 %969
        %971 = vrot.lane.b32.xlu0 %v604, 12
        %v972 = vpop.permute.xlu0 %971
        %973 = vrot.lane.b32.xlu0 %v606, 12
        %v974 = vpop.permute.xlu0 %973
        %975 = vrot.lane.b32.xlu0 %v608, 12
        %v976 = vpop.permute.xlu0 %975
        %977 = vrot.lane.b32.xlu0 %v610, 12
        %v978 = vpop.permute.xlu0 %977
        %979 = vrot.lane.b32.xlu0 %v612, 12
        %v980 = vpop.permute.xlu0 %979
        %981 = vrot.lane.b32.xlu0 %v614, 12
        %v982 = vpop.permute.xlu0 %981
        %983 = vrot.lane.b32.xlu0 %v616, 12
        %v984 = vpop.permute.xlu0 %983
        %985 = vrot.lane.b32.xlu0 %v618, 12
        %v986 = vpop.permute.xlu0 %985
        %987 = vrot.lane.b32.xlu0 %v620, 12
        %v988 = vpop.permute.xlu0 %987
        %989 = vrot.lane.b32.xlu0 %v622, 12
        %v990 = vpop.permute.xlu0 %989
        %991 = vrot.lane.b32.xlu0 %v624, 12
        %v992 = vpop.permute.xlu0 %991
        %993 = vrot.lane.b32.xlu0 %v626, 12
        %v994 = vpop.permute.xlu0 %993
        %1027 = vrot.lane.b32.xlu0 %v628, 15
        %v1028 = vpop.permute.xlu0 %1027
        %1029 = vrot.lane.b32.xlu0 %v630, 15
        %v1030 = vpop.permute.xlu0 %1029
        %1031 = vrot.lane.b32.xlu0 %v632, 15
        %v1032 = vpop.permute.xlu0 %1031
        %1033 = vrot.lane.b32.xlu0 %v634, 15
        %v1034 = vpop.permute.xlu0 %1033
        %1035 = vrot.lane.b32.xlu0 %v636, 15
        %v1036 = vpop.permute.xlu0 %1035
        %1037 = vrot.lane.b32.xlu0 %v638, 15
        %v1038 = vpop.permute.xlu0 %1037
        %1039 = vrot.lane.b32.xlu0 %v640, 15
        %v1040 = vpop.permute.xlu0 %1039
        %1041 = vrot.lane.b32.xlu0 %v642, 15
        %v1042 = vpop.permute.xlu0 %1041
        %1043 = vrot.lane.b32.xlu0 %v644, 15
        %v1044 = vpop.permute.xlu0 %1043
        %1045 = vrot.lane.b32.xlu0 %v646, 15
        %v1046 = vpop.permute.xlu0 %1045
        %1047 = vrot.lane.b32.xlu0 %v648, 15
        %v1048 = vpop.permute.xlu0 %1047
        %1049 = vrot.lane.b32.xlu0 %v650, 15
        %v1050 = vpop.permute.xlu0 %1049
        %1051 = vrot.lane.b32.xlu0 %v652, 15
        %v1052 = vpop.permute.xlu0 %1051
        %1053 = vrot.lane.b32.xlu0 %v654, 15
        %v1054 = vpop.permute.xlu0 %1053
        %1055 = vrot.lane.b32.xlu0 %v656, 15
        %v1056 = vpop.permute.xlu0 %1055
        %1057 = vrot.lane.b32.xlu0 %v658, 15
        %v1058 = vpop.permute.xlu0 %1057
        %1091 = vrot.lane.b32.xlu0 %v660, 18
        %v1092 = vpop.permute.xlu0 %1091
        %1093 = vrot.lane.b32.xlu0 %v662, 18
        %v1094 = vpop.permute.xlu0 %1093
        %1095 = vrot.lane.b32.xlu0 %v664, 18
        %v1096 = vpop.permute.xlu0 %1095
        %1097 = vrot.lane.b32.xlu0 %v666, 18
        %v1098 = vpop.permute.xlu0 %1097
        %1099 = vrot.lane.b32.xlu0 %v668, 18
        %v1100 = vpop.permute.xlu0 %1099
        %1101 = vrot.lane.b32.xlu0 %v670, 18
        %v1102 = vpop.permute.xlu0 %1101
        %1103 = vrot.lane.b32.xlu0 %v672, 18
        %v1104 = vpop.permute.xlu0 %1103
        %1105 = vrot.lane.b32.xlu0 %v674, 18
        %v1106 = vpop.permute.xlu0 %1105
        %1107 = vrot.lane.b32.xlu0 %v676, 18
        %v1108 = vpop.permute.xlu0 %1107
        %1109 = vrot.lane.b32.xlu0 %v678, 18
        %v1110 = vpop.permute.xlu0 %1109
        %1111 = vrot.lane.b32.xlu0 %v680, 18
        %v1112 = vpop.permute.xlu0 %1111
        %1113 = vrot.lane.b32.xlu0 %v682, 18
        %v1114 = vpop.permute.xlu0 %1113
        %1115 = vrot.lane.b32.xlu0 %v684, 18
        %v1116 = vpop.permute.xlu0 %1115
        %1117 = vrot.lane.b32.xlu0 %v686, 18
        %v1118 = vpop.permute.xlu0 %1117
        %1119 = vrot.lane.b32.xlu0 %v688, 18
        %v1120 = vpop.permute.xlu0 %1119
        %1121 = vrot.lane.b32.xlu0 %v690, 18
        %v1122 = vpop.permute.xlu0 %1121
        %1155 = vrot.lane.b32.xlu0 %v692, 21
        %v1156 = vpop.permute.xlu0 %1155
        %1157 = vrot.lane.b32.xlu0 %v694, 21
        %v1158 = vpop.permute.xlu0 %1157
        %1159 = vrot.lane.b32.xlu0 %v696, 21
        %v1160 = vpop.permute.xlu0 %1159
        %1161 = vrot.lane.b32.xlu0 %v698, 21
        %v1162 = vpop.permute.xlu0 %1161
        %1163 = vrot.lane.b32.xlu0 %v700, 21
        %v1164 = vpop.permute.xlu0 %1163
        %1165 = vrot.lane.b32.xlu0 %v702, 21
        %v1166 = vpop.permute.xlu0 %1165
        %1167 = vrot.lane.b32.xlu0 %v704, 21
        %v1168 = vpop.permute.xlu0 %1167
        %1169 = vrot.lane.b32.xlu0 %v706, 21
        %v1170 = vpop.permute.xlu0 %1169
        %1171 = vrot.lane.b32.xlu0 %v708, 21
        %v1172 = vpop.permute.xlu0 %1171
        %1173 = vrot.lane.b32.xlu0 %v710, 21
        %v1174 = vpop.permute.xlu0 %1173
        %1175 = vrot.lane.b32.xlu0 %v712, 21
        %v1176 = vpop.permute.xlu0 %1175
        %1177 = vrot.lane.b32.xlu0 %v714, 21
        %v1178 = vpop.permute.xlu0 %1177
        %1179 = vrot.lane.b32.xlu0 %v716, 21
        %v1180 = vpop.permute.xlu0 %1179
        %1181 = vrot.lane.b32.xlu0 %v718, 21
        %v1182 = vpop.permute.xlu0 %1181
        %1183 = vrot.lane.b32.xlu0 %v720, 21
        %v1184 = vpop.permute.xlu0 %1183
        %1185 = vrot.lane.b32.xlu0 %v722, 21
        %v1186 = vpop.permute.xlu0 %1185
        %1219 = vrot.lane.b32.xlu0 %v724, 24
        %v1220 = vpop.permute.xlu0 %1219
        %1221 = vrot.lane.b32.xlu0 %v726, 24
        %v1222 = vpop.permute.xlu0 %1221
        %1223 = vrot.lane.b32.xlu0 %v728, 24
        %v1224 = vpop.permute.xlu0 %1223
        %1225 = vrot.lane.b32.xlu0 %v730, 24
        %v1226 = vpop.permute.xlu0 %1225
        %1227 = vrot.lane.b32.xlu0 %v732, 24
        %v1228 = vpop.permute.xlu0 %1227
        %1229 = vrot.lane.b32.xlu0 %v734, 24
        %v1230 = vpop.permute.xlu0 %1229
        %1231 = vrot.lane.b32.xlu0 %v736, 24
        %v1232 = vpop.permute.xlu0 %1231
        %1233 = vrot.lane.b32.xlu0 %v738, 24
        %v1234 = vpop.permute.xlu0 %1233
        %1235 = vrot.lane.b32.xlu0 %v740, 24
        %v1236 = vpop.permute.xlu0 %1235
        %1237 = vrot.lane.b32.xlu0 %v742, 24
        %v1238 = vpop.permute.xlu0 %1237
        %1239 = vrot.lane.b32.xlu0 %v744, 24
        %v1240 = vpop.permute.xlu0 %1239
        %1241 = vrot.lane.b32.xlu0 %v746, 24
        %v1242 = vpop.permute.xlu0 %1241
        %1243 = vrot.lane.b32.xlu0 %v748, 24
        %v1244 = vpop.permute.xlu0 %1243
        %1245 = vrot.lane.b32.xlu0 %v750, 24
        %v1246 = vpop.permute.xlu0 %1245
        %1247 = vrot.lane.b32.xlu0 %v752, 24
        %v1248 = vpop.permute.xlu0 %1247
        %1249 = vrot.lane.b32.xlu0 %v754, 24
        %v1250 = vpop.permute.xlu0 %1249
        %vm1267 = vcmask 23552
        %v1268 = vsel %vm1267, %v468, %v772
        %v1269 = vsel %vm1267, %v470, %v774
        %v1270 = vsel %vm1267, %v472, %v776
        %v1271 = vsel %vm1267, %v474, %v778
        %v1272 = vsel %vm1267, %v476, %v780
        %v1273 = vsel %vm1267, %v478, %v782
        %v1274 = vsel %vm1267, %v480, %v784
        %v1275 = vsel %vm1267, %v482, %v786
        %v1276 = vsel %vm1267, %v484, %v788
        %v1277 = vsel %vm1267, %v486, %v790
        %v1278 = vsel %vm1267, %v488, %v792
        %v1279 = vsel %vm1267, %v490, %v794
        %v1280 = vsel %vm1267, %v492, %v796
        %v1281 = vsel %vm1267, %v494, %v798
        %v1282 = vsel %vm1267, %v496, %v800
        %v1283 = vsel %vm1267, %v498, %v802
        %vm1284 = vcmask 48128
        %v1285 = vsel %vm1284, %v1268, %v836
        %v1286 = vsel %vm1284, %v1269, %v838
        %v1287 = vsel %vm1284, %v1270, %v840
        %v1288 = vsel %vm1284, %v1271, %v842
        %v1289 = vsel %vm1284, %v1272, %v844
        %v1290 = vsel %vm1284, %v1273, %v846
        %v1291 = vsel %vm1284, %v1274, %v848
        %v1292 = vsel %vm1284, %v1275, %v850
        %v1293 = vsel %vm1284, %v1276, %v852
        %v1294 = vsel %vm1284, %v1277, %v854
        %v1295 = vsel %vm1284, %v1278, %v856
        %v1296 = vsel %vm1284, %v1279, %v858
        %v1297 = vsel %vm1284, %v1280, %v860
        %v1298 = vsel %vm1284, %v1281, %v862
        %v1299 = vsel %vm1284, %v1282, %v864
        %v1300 = vsel %vm1284, %v1283, %v866
        %vm1301 = vcmask 72704
        %v1302 = vsel %vm1301, %v1285, %v900
        %v1303 = vsel %vm1301, %v1286, %v902
        %v1304 = vsel %vm1301, %v1287, %v904
        %v1305 = vsel %vm1301, %v1288, %v906
        %v1306 = vsel %vm1301, %v1289, %v908
        %v1307 = vsel %vm1301, %v1290, %v910
        %v1308 = vsel %vm1301, %v1291, %v912
        %v1309 = vsel %vm1301, %v1292, %v914
        %v1310 = vsel %vm1301, %v1293, %v916
        %v1311 = vsel %vm1301, %v1294, %v918
        %v1312 = vsel %vm1301, %v1295, %v920
        %v1313 = vsel %vm1301, %v1296, %v922
        %v1314 = vsel %vm1301, %v1297, %v924
        %v1315 = vsel %vm1301, %v1298, %v926
        %v1316 = vsel %vm1301, %v1299, %v928
        %v1317 = vsel %vm1301, %v1300, %v930
        %vm1318 = vcmask 97280
        %v1319 = vsel %vm1318, %v1302, %v964
        %v1320 = vsel %vm1318, %v1303, %v966
        %v1321 = vsel %vm1318, %v1304, %v968
        %v1322 = vsel %vm1318, %v1305, %v970
        %v1323 = vsel %vm1318, %v1306, %v972
        %v1324 = vsel %vm1318, %v1307, %v974
        %v1325 = vsel %vm1318, %v1308, %v976
        %v1326 = vsel %vm1318, %v1309, %v978
        %v1327 = vsel %vm1318, %v1310, %v980
        %v1328 = vsel %vm1318, %v1311, %v982
        %v1329 = vsel %vm1318, %v1312, %v984
        %v1330 = vsel %vm1318, %v1313, %v986
        %v1331 = vsel %vm1318, %v1314, %v988
        %v1332 = vsel %vm1318, %v1315, %v990
        %v1333 = vsel %vm1318, %v1316, %v992
        %v1334 = vsel %vm1318, %v1317, %v994
        %vm1335 = vcmask 121856
        %v1336 = vsel %vm1335, %v1319, %v1028
        %v1337 = vsel %vm1335, %v1320, %v1030
        %v1338 = vsel %vm1335, %v1321, %v1032
        %v1339 = vsel %vm1335, %v1322, %v1034
        %v1340 = vsel %vm1335, %v1323, %v1036
        %v1341 = vsel %vm1335, %v1324, %v1038
        %v1342 = vsel %vm1335, %v1325, %v1040
        %v1343 = vsel %vm1335, %v1326, %v1042
        %v1344 = vsel %vm1335, %v1327, %v1044
        %v1345 = vsel %vm1335, %v1328, %v1046
        %v1346 = vsel %vm1335, %v1329, %v1048
        %v1347 = vsel %vm1335, %v1330, %v1050
        %v1348 = vsel %vm1335, %v1331, %v1052
        %v1349 = vsel %vm1335, %v1332, %v1054
        %v1350 = vsel %vm1335, %v1333, %v1056
        %v1351 = vsel %vm1335, %v1334, %v1058
        %vm1352 = vcmask 146432
        %v1353 = vsel %vm1352, %v1336, %v1092
        %v1354 = vsel %vm1352, %v1337, %v1094
        %v1355 = vsel %vm1352, %v1338, %v1096
        %v1356 = vsel %vm1352, %v1339, %v1098
        %v1357 = vsel %vm1352, %v1340, %v1100
        %v1358 = vsel %vm1352, %v1341, %v1102
        %v1359 = vsel %vm1352, %v1342, %v1104
        %v1360 = vsel %vm1352, %v1343, %v1106
        %v1361 = vsel %vm1352, %v1344, %v1108
        %v1362 = vsel %vm1352, %v1345, %v1110
        %v1363 = vsel %vm1352, %v1346, %v1112
        %v1364 = vsel %vm1352, %v1347, %v1114
        %v1365 = vsel %vm1352, %v1348, %v1116
        %v1366 = vsel %vm1352, %v1349, %v1118
        %v1367 = vsel %vm1352, %v1350, %v1120
        %v1368 = vsel %vm1352, %v1351, %v1122
        %vm1369 = vcmask 171008
        %v1370 = vsel %vm1369, %v1353, %v1156
        %v1371 = vsel %vm1369, %v1354, %v1158
        %v1372 = vsel %vm1369, %v1355, %v1160
        %v1373 = vsel %vm1369, %v1356, %v1162
        %v1374 = vsel %vm1369, %v1357, %v1164
        %v1375 = vsel %vm1369, %v1358, %v1166
        %v1376 = vsel %vm1369, %v1359, %v1168
        %v1377 = vsel %vm1369, %v1360, %v1170
        %v1378 = vsel %vm1369, %v1361, %v1172
        %v1379 = vsel %vm1369, %v1362, %v1174
        %v1380 = vsel %vm1369, %v1363, %v1176
        %v1381 = vsel %vm1369, %v1364, %v1178
        %v1382 = vsel %vm1369, %v1365, %v1180
        %v1383 = vsel %vm1369, %v1366, %v1182
        %v1384 = vsel %vm1369, %v1367, %v1184
        %v1385 = vsel %vm1369, %v1368, %v1186
        %vm1386 = vcmask 195584
        %v1387 = vsel %vm1386, %v1370, %v1220
        %v1388 = vsel %vm1386, %v1371, %v1222
        %v1389 = vsel %vm1386, %v1372, %v1224
        %v1390 = vsel %vm1386, %v1373, %v1226
        %v1391 = vsel %vm1386, %v1374, %v1228
        %v1392 = vsel %vm1386, %v1375, %v1230
        %v1393 = vsel %vm1386, %v1376, %v1232
        %v1394 = vsel %vm1386, %v1377, %v1234
        %v1395 = vsel %vm1386, %v1378, %v1236
        %v1396 = vsel %vm1386, %v1379, %v1238
        %v1397 = vsel %vm1386, %v1380, %v1240
        %v1398 = vsel %vm1386, %v1381, %v1242
        %v1399 = vsel %vm1386, %v1382, %v1244
        %v1400 = vsel %vm1386, %v1383, %v1246
        %v1401 = vsel %vm1386, %v1384, %v1248
        %v1402 = vsel %vm1386, %v1385, %v1250
        %v1403 = vpack.c.bf16 %v1388, %v1387
        %v1404 = vpack.c.bf16 %v1390, %v1389
        %v1405 = vpack.c.bf16 %v1392, %v1391
        %v1406 = vpack.c.bf16 %v1394, %v1393
        %v1407 = vpack.c.bf16 %v1396, %v1395
        %v1408 = vpack.c.bf16 %v1398, %v1397
        %v1409 = vpack.c.bf16 %v1400, %v1399
        %v1410 = vpack.c.bf16 %v1402, %v1401
        %v1411 = vld [vmem:[%s439] sm:$0xf]
        %v1412 = vld [vmem:[%s439 + $0x4] sm:$0xf]
        %v1413 = vld [vmem:[%s439 + $0x8] sm:$0xf]
        %v1414 = vld [vmem:[%s439 + $0xc] sm:$0x3]
        %v1415 = vld [vmem:[%s442] sm:$0x1]
        %v1417 = vperm.slane %v1415, 0
        %v1423 = vunpack.c.l.b16 %v1411
        %v1424 = vunpack.c.l.b16 %v1412
        %v1425 = vunpack.c.l.b16 %v1413
        %v1426 = vunpack.c.l.b16 %v1414
        %v1427 = vpack.c.b16 %v1424, %v1423
        %v1428 = vpack.c.b16 %v1426, %v1425
        %vm1430 = vcmask 220160
        %v1432 = vsel %vm1430, %v1403, 0
        %v1435 = vsel %vm1430, %v1404, 0
        %v1438 = vsel %vm1430, %v1405, 0
        %v1441 = vsel %vm1430, %v1406, 0
        %v1444 = vsel %vm1430, %v1407, 0
        %v1447 = vsel %vm1430, %v1408, 0
        %v1450 = vsel %vm1430, %v1409, 0
        %v1453 = vsel %vm1430, %v1410, 0
        %vm1455 = vcmask 1044480
        %vm1456 = vcmask 1045504
        %v1457 = vsel %vm1455, 4294967295, 65535
        %v1458 = vsel %vm1456, %v1457, 0
        %v1460 = vand.u32 %v1428, %v1458
        %1462 = vmatpush.bf16.msra.mxu0 0
        %1463 = vmatpush.bf16.msra.mxu0 0
        %1464 = vmatpush.bf16.msra.mxu0 0
        %1465 = vmatpush.bf16.msra.mxu0 0
        %1466 = vmatpush.bf16.msra.mxu0 0
        %1467 = vmatpush.bf16.msra.mxu0 0
        %1468 = vmatpush.bf16.msra.mxu0 %v1460
        %1469 = vmatpush.bf16.msra.mxu0 %v1427
        %1470 = vmatmul.bf16.gmra.mxu0 %v1432
        %v1471 = vpop.f32.mrf.mxu0
        %v1472 = vadd.f32 %v1417, %v1471
        %v1473 = vpop.f32.mrf.mxu0
        %v1474 = vadd.f32 %v1417, %v1473
        %1475 = vmatmul.bf16.gmra.mxu0 %v1435
        %v1476 = vpop.f32.mrf.mxu0
        %v1477 = vadd.f32 %v1417, %v1476
        %v1478 = vpop.f32.mrf.mxu0
        %v1479 = vadd.f32 %v1417, %v1478
        %1480 = vmatmul.bf16.gmra.mxu0 %v1438
        %v1481 = vpop.f32.mrf.mxu0
        %v1482 = vadd.f32 %v1417, %v1481
        %v1483 = vpop.f32.mrf.mxu0
        %v1484 = vadd.f32 %v1417, %v1483
        %1485 = vmatmul.bf16.gmra.mxu0 %v1441
        %v1486 = vpop.f32.mrf.mxu0
        %v1487 = vadd.f32 %v1417, %v1486
        %v1488 = vpop.f32.mrf.mxu0
        %v1489 = vadd.f32 %v1417, %v1488
        %1490 = vmatmul.bf16.gmra.mxu0 %v1444
        %v1491 = vpop.f32.mrf.mxu0
        %v1492 = vadd.f32 %v1417, %v1491
        %v1493 = vpop.f32.mrf.mxu0
        %v1494 = vadd.f32 %v1417, %v1493
        %1495 = vmatmul.bf16.gmra.mxu0 %v1447
        %v1496 = vpop.f32.mrf.mxu0
        %v1497 = vadd.f32 %v1417, %v1496
        %v1498 = vpop.f32.mrf.mxu0
        %v1499 = vadd.f32 %v1417, %v1498
        %1500 = vmatmul.bf16.gmra.mxu0 %v1450
        %v1501 = vpop.f32.mrf.mxu0
        %v1502 = vadd.f32 %v1417, %v1501
        %v1503 = vpop.f32.mrf.mxu0
        %v1504 = vadd.f32 %v1417, %v1503
        %1505 = vmatmul.bf16.gmra.mxu0 %v1453
        %v1506 = vpop.f32.mrf.mxu0
        %v1507 = vadd.f32 %v1417, %v1506
        %v1508 = vpop.f32.mrf.mxu0
        %v1509 = vadd.f32 %v1417, %v1508
        %1510 = vdwg.mxu0
        %vm1511 = vcmp.gt.f32.partialorder %v1472, 0.0
        %vm1512 = vcmp.gt.f32.partialorder %v1474, 0.0
        %vm1513 = vcmp.gt.f32.partialorder %v1477, 0.0
        %vm1514 = vcmp.gt.f32.partialorder %v1479, 0.0
        %vm1515 = vcmp.gt.f32.partialorder %v1482, 0.0
        %vm1516 = vcmp.gt.f32.partialorder %v1484, 0.0
        %vm1517 = vcmp.gt.f32.partialorder %v1487, 0.0
        %vm1518 = vcmp.gt.f32.partialorder %v1489, 0.0
        %vm1519 = vcmp.gt.f32.partialorder %v1492, 0.0
        %vm1520 = vcmp.gt.f32.partialorder %v1494, 0.0
        %vm1521 = vcmp.gt.f32.partialorder %v1497, 0.0
        %vm1522 = vcmp.gt.f32.partialorder %v1499, 0.0
        %vm1523 = vcmp.gt.f32.partialorder %v1502, 0.0
        %vm1524 = vcmp.gt.f32.partialorder %v1504, 0.0
        %vm1525 = vcmp.gt.f32.partialorder %v1507, 0.0
        %vm1526 = vcmp.gt.f32.partialorder %v1509, 0.0
        %v1527 = vmul.f32 %v1472, 0.2
        %v1528 = vmul.f32 %v1474, 0.2
        %v1529 = vmul.f32 %v1477, 0.2
        %v1530 = vmul.f32 %v1479, 0.2
        %v1531 = vmul.f32 %v1482, 0.2
        %v1532 = vmul.f32 %v1484, 0.2
        %v1533 = vmul.f32 %v1487, 0.2
        %v1534 = vmul.f32 %v1489, 0.2
        %v1535 = vmul.f32 %v1492, 0.2
        %v1536 = vmul.f32 %v1494, 0.2
        %v1537 = vmul.f32 %v1497, 0.2
        %v1538 = vmul.f32 %v1499, 0.2
        %v1539 = vmul.f32 %v1502, 0.2
        %v1540 = vmul.f32 %v1504, 0.2
        %v1541 = vmul.f32 %v1507, 0.2
        %v1542 = vmul.f32 %v1509, 0.2
        %v1543 = vsel %vm1511, %v1472, %v1527
        %v1544 = vsel %vm1512, %v1474, %v1528
        %v1545 = vsel %vm1513, %v1477, %v1529
        %v1546 = vsel %vm1514, %v1479, %v1530
        %v1547 = vsel %vm1515, %v1482, %v1531
        %v1548 = vsel %vm1516, %v1484, %v1532
        %v1549 = vsel %vm1517, %v1487, %v1533
        %v1550 = vsel %vm1518, %v1489, %v1534
        %v1551 = vsel %vm1519, %v1492, %v1535
        %v1552 = vsel %vm1520, %v1494, %v1536
        %v1553 = vsel %vm1521, %v1497, %v1537
        %v1554 = vsel %vm1522, %v1499, %v1538
        %v1555 = vsel %vm1523, %v1502, %v1539
        %v1556 = vsel %vm1524, %v1504, %v1540
        %v1557 = vsel %vm1525, %v1507, %v1541
        %v1558 = vsel %vm1526, %v1509, %v1542
        %vm1559 = vcmask 64512
        %1560 = vst.msk [vmem:[#allocation2] sm:$0xff] %vm1559, 0.0
        %vm1561 = vcmask 58368
        %1562 = vst.msk [vmem:[#allocation2 + $0x8] sm:$0x3] %vm1561, 0.0
        %1563 = vst.msk [vmem:[#allocation2 + $0xa0] sm:$0xff] %vm1559, 0.0
        %1564 = vst.msk [vmem:[#allocation2 + $0xa8] sm:$0x3] %vm1561, 0.0
        %s1565 = scalar_lea.vmem [#allocation2], 144
        %1566 = vst.msk [vmem:[%s1565] sm:$0xff] %vm1559, 0.0
        %1567 = vst.msk [vmem:[%s1565 + $0x8] sm:$0x3] %vm1561, 0.0
        %1568 = vst.msk [vmem:[%s1565 + $0xa0] sm:$0xff] %vm1559, 0.0
        %1569 = vst.msk [vmem:[%s1565 + $0xa8] sm:$0x3] %vm1561, 0.0
        %vm1570 = vcmask 57344
        %1571 = vst.msk [vmem:[#allocation2] sm:$0x1] %vm1570, 0.0
        %1572 = vst.msk [vmem:[#allocation2 + $0x10] sm:$0x1] %vm1570, 0.0
        %1573 = vst.msk [vmem:[#allocation2 + $0x20] sm:$0x1] %vm1570, 0.0
        %1574 = vst.msk [vmem:[#allocation2 + $0x30] sm:$0x1] %vm1570, 0.0
        %1575 = vst.msk [vmem:[#allocation2 + $0x40] sm:$0x1] %vm1570, 0.0
        %1576 = vst.msk [vmem:[#allocation2 + $0x50] sm:$0x1] %vm1570, 0.0
        %1577 = vst.msk [vmem:[#allocation2 + $0x60] sm:$0x1] %vm1570, 0.0
        %1578 = vst.msk [vmem:[#allocation2 + $0x70] sm:$0x1] %vm1570, 0.0
        %1579 = vst.msk [vmem:[#allocation2 + $0x80] sm:$0x1] %vm1570, 0.0
        %1580 = vst.msk [vmem:[#allocation2 + $0x90] sm:$0x1] %vm1570, 0.0
        %1581 = vst.msk [vmem:[#allocation2 + $0xa0] sm:$0x1] %vm1570, 0.0
        %1582 = vst.msk [vmem:[#allocation2 + $0xb0] sm:$0x1] %vm1570, 0.0
        %1583 = vst.msk [vmem:[#allocation2 + $0xc0] sm:$0x1] %vm1570, 0.0
        %1584 = vst.msk [vmem:[#allocation2 + $0xd0] sm:$0x1] %vm1570, 0.0
        %1585 = vst.msk [vmem:[#allocation2 + $0xe0] sm:$0x1] %vm1570, 0.0
        %1586 = vst.msk [vmem:[#allocation2 + $0xf0] sm:$0x1] %vm1570, 0.0
        %1587 = vst.msk [vmem:[#allocation2 + $0x100] sm:$0x1] %vm1570, 0.0
        %1588 = vst.msk [vmem:[#allocation2 + $0x110] sm:$0x1] %vm1570, 0.0
        %1589 = vst.msk [vmem:[#allocation2 + $0x120] sm:$0x1] %vm1570, 0.0
        %1590 = vst.msk [vmem:[#allocation2 + $0x130] sm:$0x1] %vm1570, 0.0
        %1591 = vst.msk [vmem:[#allocation2 + $0x9] sm:$0x1] %vm1570, 0.0
        %1592 = vst.msk [vmem:[#allocation2 + $0x19] sm:$0x1] %vm1570, 0.0
        %1593 = vst.msk [vmem:[#allocation2 + $0x29] sm:$0x1] %vm1570, 0.0
        %1594 = vst.msk [vmem:[#allocation2 + $0x39] sm:$0x1] %vm1570, 0.0
        %1595 = vst.msk [vmem:[#allocation2 + $0x49] sm:$0x1] %vm1570, 0.0
        %1596 = vst.msk [vmem:[#allocation2 + $0x59] sm:$0x1] %vm1570, 0.0
        %1597 = vst.msk [vmem:[#allocation2 + $0x69] sm:$0x1] %vm1570, 0.0
        %1598 = vst.msk [vmem:[#allocation2 + $0x79] sm:$0x1] %vm1570, 0.0
        %1599 = vst.msk [vmem:[#allocation2 + $0x89] sm:$0x1] %vm1570, 0.0
        %1600 = vst.msk [vmem:[#allocation2 + $0x99] sm:$0x1] %vm1570, 0.0
        %1601 = vst.msk [vmem:[#allocation2 + $0xa9] sm:$0x1] %vm1570, 0.0
        %1602 = vst.msk [vmem:[#allocation2 + $0xb9] sm:$0x1] %vm1570, 0.0
        %1603 = vst.msk [vmem:[#allocation2 + $0xc9] sm:$0x1] %vm1570, 0.0
        %1604 = vst.msk [vmem:[#allocation2 + $0xd9] sm:$0x1] %vm1570, 0.0
        %1605 = vst.msk [vmem:[#allocation2 + $0xe9] sm:$0x1] %vm1570, 0.0
        %1606 = vst.msk [vmem:[#allocation2 + $0xf9] sm:$0x1] %vm1570, 0.0
        %1607 = vst.msk [vmem:[#allocation2 + $0x109] sm:$0x1] %vm1570, 0.0
        %1608 = vst.msk [vmem:[#allocation2 + $0x119] sm:$0x1] %vm1570, 0.0
        %1609 = vst.msk [vmem:[#allocation2 + $0x129] sm:$0x1] %vm1570, 0.0
        %1610 = vst.msk [vmem:[#allocation2 + $0x139] sm:$0x1] %vm1570, 0.0
        %s1611 = scalar_lea.vmem [#allocation2], 16
        %1612 = vst.msk [vmem:[%s1611 + $0x1] sm:$0xff] %vm1559, %v1543
        %1613 = vst.msk [vmem:[%s1611 + $0x11] sm:$0xff] %vm1559, %v1544
        %1614 = vst.msk [vmem:[%s1611 + $0x21] sm:$0xff] %vm1559, %v1545
        %1615 = vst.msk [vmem:[%s1611 + $0x31] sm:$0xff] %vm1559, %v1546
        %1616 = vst.msk [vmem:[%s1611 + $0x41] sm:$0xff] %vm1559, %v1547
        %1617 = vst.msk [vmem:[%s1611 + $0x51] sm:$0xff] %vm1559, %v1548
        %1618 = vst.msk [vmem:[%s1611 + $0x61] sm:$0xff] %vm1559, %v1549
        %1619 = vst.msk [vmem:[%s1611 + $0x71] sm:$0xff] %vm1559, %v1550
        %1620 = vst.msk [vmem:[%s1611 + $0xa1] sm:$0xff] %vm1559, %v1551
        %1621 = vst.msk [vmem:[%s1611 + $0xb1] sm:$0xff] %vm1559, %v1552
        %1622 = vst.msk [vmem:[%s1611 + $0xc1] sm:$0xff] %vm1559, %v1553
        %1623 = vst.msk [vmem:[%s1611 + $0xd1] sm:$0xff] %vm1559, %v1554
        %1624 = vst.msk [vmem:[%s1611 + $0xe1] sm:$0xff] %vm1559, %v1555
        %1625 = vst.msk [vmem:[%s1611 + $0xf1] sm:$0xff] %vm1559, %v1556
        %1626 = vst.msk [vmem:[%s1611 + $0x101] sm:$0xff] %vm1559, %v1557
        %1627 = vst.msk [vmem:[%s1611 + $0x111] sm:$0xff] %vm1559, %v1558
        %v1628 = vld [vmem:[#allocation2] ss:$2 sm:$0xf]
        %s1629 = scalar_lea.vmem [#allocation2], 32
        %v1630 = vld [vmem:[%s1629] ss:$2 sm:$0xf]
        %s1631 = scalar_lea.vmem [#allocation2], 64
        %v1632 = vld [vmem:[%s1631] ss:$2 sm:$0xf]
        %s1633 = scalar_lea.vmem [#allocation2], 96
        %v1634 = vld [vmem:[%s1633] ss:$2 sm:$0xf]
        %s1635 = scalar_lea.vmem [#allocation2], 160
        %v1636 = vld [vmem:[%s1635] ss:$2 sm:$0xf]
        %s1637 = scalar_lea.vmem [#allocation2], 192
        %v1638 = vld [vmem:[%s1637] ss:$2 sm:$0xf]
        %s1639 = scalar_lea.vmem [#allocation2], 224
        %v1640 = vld [vmem:[%s1639] ss:$2 sm:$0xf]
        %s1641 = scalar_lea.vmem [#allocation2], 256
        %v1642 = vld [vmem:[%s1641] ss:$2 sm:$0xf]
        %s1643 = scalar_lea.vmem [#allocation2], 1
        %v1644 = vld [vmem:[%s1643] ss:$2 sm:$0xf]
        %s1645 = scalar_lea.vmem [#allocation2], 33
        %v1646 = vld [vmem:[%s1645] ss:$2 sm:$0xf]
        %s1647 = scalar_lea.vmem [#allocation2], 65
        %v1648 = vld [vmem:[%s1647] ss:$2 sm:$0xf]
        %s1649 = scalar_lea.vmem [#allocation2], 97
        %v1650 = vld [vmem:[%s1649] ss:$2 sm:$0xf]
        %s1651 = scalar_lea.vmem [#allocation2], 161
        %v1652 = vld [vmem:[%s1651] ss:$2 sm:$0xf]
        %s1653 = scalar_lea.vmem [#allocation2], 193
        %v1654 = vld [vmem:[%s1653] ss:$2 sm:$0xf]
        %s1655 = scalar_lea.vmem [#allocation2], 225
        %v1656 = vld [vmem:[%s1655] ss:$2 sm:$0xf]
        %s1657 = scalar_lea.vmem [#allocation2], 257
        %v1658 = vld [vmem:[%s1657] ss:$2 sm:$0xf]
        %s1659 = scalar_lea.vmem [#allocation2], 2
        %v1660 = vld [vmem:[%s1659] ss:$2 sm:$0xf]
        %s1661 = scalar_lea.vmem [#allocation2], 34
        %v1662 = vld [vmem:[%s1661] ss:$2 sm:$0xf]
        %s1663 = scalar_lea.vmem [#allocation2], 66
        %v1664 = vld [vmem:[%s1663] ss:$2 sm:$0xf]
        %s1665 = scalar_lea.vmem [#allocation2], 98
        %v1666 = vld [vmem:[%s1665] ss:$2 sm:$0xf]
        %s1667 = scalar_lea.vmem [#allocation2], 162
        %v1668 = vld [vmem:[%s1667] ss:$2 sm:$0xf]
        %s1669 = scalar_lea.vmem [#allocation2], 194
        %v1670 = vld [vmem:[%s1669] ss:$2 sm:$0xf]
        %s1671 = scalar_lea.vmem [#allocation2], 226
        %v1672 = vld [vmem:[%s1671] ss:$2 sm:$0xf]
        %s1673 = scalar_lea.vmem [#allocation2], 258
        %v1674 = vld [vmem:[%s1673] ss:$2 sm:$0xf]
        %v1675 = vld [vmem:[%s1611] ss:$2 sm:$0xf]
        %s1676 = scalar_lea.vmem %s1611, 32 [#allocation2]
        %v1677 = vld [vmem:[%s1676] ss:$2 sm:$0xf]
        %s1678 = scalar_lea.vmem %s1611, 64 [#allocation2]
        %v1679 = vld [vmem:[%s1678] ss:$2 sm:$0xf]
        %s1680 = scalar_lea.vmem %s1611, 96 [#allocation2]
        %v1681 = vld [vmem:[%s1680] ss:$2 sm:$0xf]
        %s1682 = scalar_lea.vmem %s1611, 160 [#allocation2]
        %v1683 = vld [vmem:[%s1682] ss:$2 sm:$0xf]
        %s1684 = scalar_lea.vmem %s1611, 192 [#allocation2]
        %v1685 = vld [vmem:[%s1684] ss:$2 sm:$0xf]
        %s1686 = scalar_lea.vmem %s1611, 224 [#allocation2]
        %v1687 = vld [vmem:[%s1686] ss:$2 sm:$0xf]
        %s1688 = scalar_lea.vmem %s1611, 256 [#allocation2]
        %v1689 = vld [vmem:[%s1688] ss:$2 sm:$0xf]
        %s1690 = scalar_lea.vmem %s1611, 1 [#allocation2]
        %v1691 = vld [vmem:[%s1690] ss:$2 sm:$0xf]
        %s1692 = scalar_lea.vmem %s1611, 33 [#allocation2]
        %v1693 = vld [vmem:[%s1692] ss:$2 sm:$0xf]
        %s1694 = scalar_lea.vmem %s1611, 65 [#allocation2]
        %v1695 = vld [vmem:[%s1694] ss:$2 sm:$0xf]
        %s1696 = scalar_lea.vmem %s1611, 97 [#allocation2]
        %v1697 = vld [vmem:[%s1696] ss:$2 sm:$0xf]
        %s1698 = scalar_lea.vmem %s1611, 161 [#allocation2]
        %v1699 = vld [vmem:[%s1698] ss:$2 sm:$0xf]
        %s1700 = scalar_lea.vmem %s1611, 193 [#allocation2]
        %v1701 = vld [vmem:[%s1700] ss:$2 sm:$0xf]
        %s1702 = scalar_lea.vmem %s1611, 225 [#allocation2]
        %v1703 = vld [vmem:[%s1702] ss:$2 sm:$0xf]
        %s1704 = scalar_lea.vmem %s1611, 257 [#allocation2]
        %v1705 = vld [vmem:[%s1704] ss:$2 sm:$0xf]
        %s1706 = scalar_lea.vmem %s1611, 2 [#allocation2]
        %v1707 = vld [vmem:[%s1706] ss:$2 sm:$0xf]
        %s1708 = scalar_lea.vmem %s1611, 34 [#allocation2]
        %v1709 = vld [vmem:[%s1708] ss:$2 sm:$0xf]
        %s1710 = scalar_lea.vmem %s1611, 66 [#allocation2]
        %v1711 = vld [vmem:[%s1710] ss:$2 sm:$0xf]
        %s1712 = scalar_lea.vmem %s1611, 98 [#allocation2]
        %v1713 = vld [vmem:[%s1712] ss:$2 sm:$0xf]
        %s1714 = scalar_lea.vmem %s1611, 162 [#allocation2]
        %v1715 = vld [vmem:[%s1714] ss:$2 sm:$0xf]
        %s1716 = scalar_lea.vmem %s1611, 194 [#allocation2]
        %v1717 = vld [vmem:[%s1716] ss:$2 sm:$0xf]
        %s1718 = scalar_lea.vmem %s1611, 226 [#allocation2]
        %v1719 = vld [vmem:[%s1718] ss:$2 sm:$0xf]
        %s1720 = scalar_lea.vmem %s1611, 258 [#allocation2]
        %v1721 = vld [vmem:[%s1720] ss:$2 sm:$0xf]
        %s1722 = scalar_lea.vmem [#allocation2], 32
        %v1723 = vld [vmem:[%s1722] ss:$2 sm:$0xf]
        %s1724 = scalar_lea.vmem %s1722, 32 [#allocation2]
        %v1725 = vld [vmem:[%s1724] ss:$2 sm:$0xf]
        %s1726 = scalar_lea.vmem %s1722, 64 [#allocation2]
        %v1727 = vld [vmem:[%s1726] ss:$2 sm:$0xf]
        %s1728 = scalar_lea.vmem %s1722, 96 [#allocation2]
        %v1729 = vld [vmem:[%s1728] ss:$2 sm:$0xf]
        %s1730 = scalar_lea.vmem %s1722, 160 [#allocation2]
        %v1731 = vld [vmem:[%s1730] ss:$2 sm:$0xf]
        %s1732 = scalar_lea.vmem %s1722, 192 [#allocation2]
        %v1733 = vld [vmem:[%s1732] ss:$2 sm:$0xf]
        %s1734 = scalar_lea.vmem %s1722, 224 [#allocation2]
        %v1735 = vld [vmem:[%s1734] ss:$2 sm:$0xf]
        %s1736 = scalar_lea.vmem %s1722, 256 [#allocation2]
        %v1737 = vld [vmem:[%s1736] ss:$2 sm:$0xf]
        %s1738 = scalar_lea.vmem %s1722, 1 [#allocation2]
        %v1739 = vld [vmem:[%s1738] ss:$2 sm:$0xf]
        %s1740 = scalar_lea.vmem %s1722, 33 [#allocation2]
        %v1741 = vld [vmem:[%s1740] ss:$2 sm:$0xf]
        %s1742 = scalar_lea.vmem %s1722, 65 [#allocation2]
        %v1743 = vld [vmem:[%s1742] ss:$2 sm:$0xf]
        %s1744 = scalar_lea.vmem %s1722, 97 [#allocation2]
        %v1745 = vld [vmem:[%s1744] ss:$2 sm:$0xf]
        %s1746 = scalar_lea.vmem %s1722, 161 [#allocation2]
        %v1747 = vld [vmem:[%s1746] ss:$2 sm:$0xf]
        %s1748 = scalar_lea.vmem %s1722, 193 [#allocation2]
        %v1749 = vld [vmem:[%s1748] ss:$2 sm:$0xf]
        %s1750 = scalar_lea.vmem %s1722, 225 [#allocation2]
        %v1751 = vld [vmem:[%s1750] ss:$2 sm:$0xf]
        %s1752 = scalar_lea.vmem %s1722, 257 [#allocation2]
        %v1753 = vld [vmem:[%s1752] ss:$2 sm:$0xf]
        %s1754 = scalar_lea.vmem %s1722, 2 [#allocation2]
        %v1755 = vld [vmem:[%s1754] ss:$2 sm:$0xf]
        %s1756 = scalar_lea.vmem %s1722, 34 [#allocation2]
        %v1757 = vld [vmem:[%s1756] ss:$2 sm:$0xf]
        %s1758 = scalar_lea.vmem %s1722, 66 [#allocation2]
        %v1759 = vld [vmem:[%s1758] ss:$2 sm:$0xf]
        %s1760 = scalar_lea.vmem %s1722, 98 [#allocation2]
        %v1761 = vld [vmem:[%s1760] ss:$2 sm:$0xf]
        %s1762 = scalar_lea.vmem %s1722, 162 [#allocation2]
        %v1763 = vld [vmem:[%s1762] ss:$2 sm:$0xf]
        %s1764 = scalar_lea.vmem %s1722, 194 [#allocation2]
        %v1765 = vld [vmem:[%s1764] ss:$2 sm:$0xf]
        %s1766 = scalar_lea.vmem %s1722, 226 [#allocation2]
        %v1767 = vld [vmem:[%s1766] ss:$2 sm:$0xf]
        %s1768 = scalar_lea.vmem %s1722, 258 [#allocation2]
        %v1769 = vld [vmem:[%s1768] ss:$2 sm:$0xf]
        %1778 = vrot.lane.b32.xlu0 %v1644, 8
        %v1779 = vpop.permute.xlu0 %1778
        %1780 = vrot.lane.b32.xlu0 %v1646, 8
        %v1781 = vpop.permute.xlu0 %1780
        %1782 = vrot.lane.b32.xlu0 %v1648, 8
        %v1783 = vpop.permute.xlu0 %1782
        %1784 = vrot.lane.b32.xlu0 %v1650, 8
        %v1785 = vpop.permute.xlu0 %1784
        %1786 = vrot.lane.b32.xlu0 %v1652, 8
        %v1787 = vpop.permute.xlu0 %1786
        %1788 = vrot.lane.b32.xlu0 %v1654, 8
        %v1789 = vpop.permute.xlu0 %1788
        %1790 = vrot.lane.b32.xlu0 %v1656, 8
        %v1791 = vpop.permute.xlu0 %1790
        %1792 = vrot.lane.b32.xlu0 %v1658, 8
        %v1793 = vpop.permute.xlu0 %1792
        %1810 = vrot.lane.b32.xlu0 %v1660, 16
        %v1811 = vpop.permute.xlu0 %1810
        %1812 = vrot.lane.b32.xlu0 %v1662, 16
        %v1813 = vpop.permute.xlu0 %1812
        %1814 = vrot.lane.b32.xlu0 %v1664, 16
        %v1815 = vpop.permute.xlu0 %1814
        %1816 = vrot.lane.b32.xlu0 %v1666, 16
        %v1817 = vpop.permute.xlu0 %1816
        %1818 = vrot.lane.b32.xlu0 %v1668, 16
        %v1819 = vpop.permute.xlu0 %1818
        %1820 = vrot.lane.b32.xlu0 %v1670, 16
        %v1821 = vpop.permute.xlu0 %1820
        %1822 = vrot.lane.b32.xlu0 %v1672, 16
        %v1823 = vpop.permute.xlu0 %1822
        %1824 = vrot.lane.b32.xlu0 %v1674, 16
        %v1825 = vpop.permute.xlu0 %1824
        %1842 = vrot.lane.b32.xlu0 %v1675, 24
        %v1843 = vpop.permute.xlu0 %1842
        %1844 = vrot.lane.b32.xlu0 %v1677, 24
        %v1845 = vpop.permute.xlu0 %1844
        %1846 = vrot.lane.b32.xlu0 %v1679, 24
        %v1847 = vpop.permute.xlu0 %1846
        %1848 = vrot.lane.b32.xlu0 %v1681, 24
        %v1849 = vpop.permute.xlu0 %1848
        %1850 = vrot.lane.b32.xlu0 %v1683, 24
        %v1851 = vpop.permute.xlu0 %1850
        %1852 = vrot.lane.b32.xlu0 %v1685, 24
        %v1853 = vpop.permute.xlu0 %1852
        %1854 = vrot.lane.b32.xlu0 %v1687, 24
        %v1855 = vpop.permute.xlu0 %1854
        %1856 = vrot.lane.b32.xlu0 %v1689, 24
        %v1857 = vpop.permute.xlu0 %1856
        %1874 = vrot.lane.b32.xlu0 %v1691, 32
        %v1875 = vpop.permute.xlu0 %1874
        %1876 = vrot.lane.b32.xlu0 %v1693, 32
        %v1877 = vpop.permute.xlu0 %1876
        %1878 = vrot.lane.b32.xlu0 %v1695, 32
        %v1879 = vpop.permute.xlu0 %1878
        %1880 = vrot.lane.b32.xlu0 %v1697, 32
        %v1881 = vpop.permute.xlu0 %1880
        %1882 = vrot.lane.b32.xlu0 %v1699, 32
        %v1883 = vpop.permute.xlu0 %1882
        %1884 = vrot.lane.b32.xlu0 %v1701, 32
        %v1885 = vpop.permute.xlu0 %1884
        %1886 = vrot.lane.b32.xlu0 %v1703, 32
        %v1887 = vpop.permute.xlu0 %1886
        %1888 = vrot.lane.b32.xlu0 %v1705, 32
        %v1889 = vpop.permute.xlu0 %1888
        %1906 = vrot.lane.b32.xlu0 %v1707, 40
        %v1907 = vpop.permute.xlu0 %1906
        %1908 = vrot.lane.b32.xlu0 %v1709, 40
        %v1909 = vpop.permute.xlu0 %1908
        %1910 = vrot.lane.b32.xlu0 %v1711, 40
        %v1911 = vpop.permute.xlu0 %1910
        %1912 = vrot.lane.b32.xlu0 %v1713, 40
        %v1913 = vpop.permute.xlu0 %1912
        %1914 = vrot.lane.b32.xlu0 %v1715, 40
        %v1915 = vpop.permute.xlu0 %1914
        %1916 = vrot.lane.b32.xlu0 %v1717, 40
        %v1917 = vpop.permute.xlu0 %1916
        %1918 = vrot.lane.b32.xlu0 %v1719, 40
        %v1919 = vpop.permute.xlu0 %1918
        %1920 = vrot.lane.b32.xlu0 %v1721, 40
        %v1921 = vpop.permute.xlu0 %1920
        %1938 = vrot.lane.b32.xlu0 %v1723, 48
        %v1939 = vpop.permute.xlu0 %1938
        %1940 = vrot.lane.b32.xlu0 %v1725, 48
        %v1941 = vpop.permute.xlu0 %1940
        %1942 = vrot.lane.b32.xlu0 %v1727, 48
        %v1943 = vpop.permute.xlu0 %1942
        %1944 = vrot.lane.b32.xlu0 %v1729, 48
        %v1945 = vpop.permute.xlu0 %1944
        %1946 = vrot.lane.b32.xlu0 %v1731, 48
        %v1947 = vpop.permute.xlu0 %1946
        %1948 = vrot.lane.b32.xlu0 %v1733, 48
        %v1949 = vpop.permute.xlu0 %1948
        %1950 = vrot.lane.b32.xlu0 %v1735, 48
        %v1951 = vpop.permute.xlu0 %1950
        %1952 = vrot.lane.b32.xlu0 %v1737, 48
        %v1953 = vpop.permute.xlu0 %1952
        %1970 = vrot.lane.b32.xlu0 %v1739, 56
        %v1971 = vpop.permute.xlu0 %1970
        %1972 = vrot.lane.b32.xlu0 %v1741, 56
        %v1973 = vpop.permute.xlu0 %1972
        %1974 = vrot.lane.b32.xlu0 %v1743, 56
        %v1975 = vpop.permute.xlu0 %1974
        %1976 = vrot.lane.b32.xlu0 %v1745, 56
        %v1977 = vpop.permute.xlu0 %1976
        %1978 = vrot.lane.b32.xlu0 %v1747, 56
        %v1979 = vpop.permute.xlu0 %1978
        %1980 = vrot.lane.b32.xlu0 %v1749, 56
        %v1981 = vpop.permute.xlu0 %1980
        %1982 = vrot.lane.b32.xlu0 %v1751, 56
        %v1983 = vpop.permute.xlu0 %1982
        %1984 = vrot.lane.b32.xlu0 %v1753, 56
        %v1985 = vpop.permute.xlu0 %1984
        %2002 = vrot.lane.b32.xlu0 %v1755, 64
        %v2003 = vpop.permute.xlu0 %2002
        %2004 = vrot.lane.b32.xlu0 %v1757, 64
        %v2005 = vpop.permute.xlu0 %2004
        %2006 = vrot.lane.b32.xlu0 %v1759, 64
        %v2007 = vpop.permute.xlu0 %2006
        %2008 = vrot.lane.b32.xlu0 %v1761, 64
        %v2009 = vpop.permute.xlu0 %2008
        %2010 = vrot.lane.b32.xlu0 %v1763, 64
        %v2011 = vpop.permute.xlu0 %2010
        %2012 = vrot.lane.b32.xlu0 %v1765, 64
        %v2013 = vpop.permute.xlu0 %2012
        %2014 = vrot.lane.b32.xlu0 %v1767, 64
        %v2015 = vpop.permute.xlu0 %2014
        %2016 = vrot.lane.b32.xlu0 %v1769, 64
        %v2017 = vpop.permute.xlu0 %2016
        %v2026 = vsel %vm1559, %v1628, %v1779
        %v2027 = vsel %vm1559, %v1630, %v1781
        %v2028 = vsel %vm1559, %v1632, %v1783
        %v2029 = vsel %vm1559, %v1634, %v1785
        %v2030 = vsel %vm1559, %v1636, %v1787
        %v2031 = vsel %vm1559, %v1638, %v1789
        %v2032 = vsel %vm1559, %v1640, %v1791
        %v2033 = vsel %vm1559, %v1642, %v1793
        %vm2034 = vcmask 130048
        %v2035 = vsel %vm2034, %v2026, %v1811
        %v2036 = vsel %vm2034, %v2027, %v1813
        %v2037 = vsel %vm2034, %v2028, %v1815
        %v2038 = vsel %vm2034, %v2029, %v1817
        %v2039 = vsel %vm2034, %v2030, %v1819
        %v2040 = vsel %vm2034, %v2031, %v1821
        %v2041 = vsel %vm2034, %v2032, %v1823
        %v2042 = vsel %vm2034, %v2033, %v1825
        %v2043 = vsel %vm1386, %v2035, %v1843
        %v2044 = vsel %vm1386, %v2036, %v1845
        %v2045 = vsel %vm1386, %v2037, %v1847
        %v2046 = vsel %vm1386, %v2038, %v1849
        %v2047 = vsel %vm1386, %v2039, %v1851
        %v2048 = vsel %vm1386, %v2040, %v1853
        %v2049 = vsel %vm1386, %v2041, %v1855
        %v2050 = vsel %vm1386, %v2042, %v1857
        %vm2051 = vcmask 261120
        %v2052 = vsel %vm2051, %v2043, %v1875
        %v2053 = vsel %vm2051, %v2044, %v1877
        %v2054 = vsel %vm2051, %v2045, %v1879
        %v2055 = vsel %vm2051, %v2046, %v1881
        %v2056 = vsel %vm2051, %v2047, %v1883
        %v2057 = vsel %vm2051, %v2048, %v1885
        %v2058 = vsel %vm2051, %v2049, %v1887
        %v2059 = vsel %vm2051, %v2050, %v1889
        %vm2060 = vcmask 326656
        %v2061 = vsel %vm2060, %v2052, %v1907
        %v2062 = vsel %vm2060, %v2053, %v1909
        %v2063 = vsel %vm2060, %v2054, %v1911
        %v2064 = vsel %vm2060, %v2055, %v1913
        %v2065 = vsel %vm2060, %v2056, %v1915
        %v2066 = vsel %vm2060, %v2057, %v1917
        %v2067 = vsel %vm2060, %v2058, %v1919
        %v2068 = vsel %vm2060, %v2059, %v1921
        %vm2069 = vcmask 392192
        %v2070 = vsel %vm2069, %v2061, %v1939
        %v2071 = vsel %vm2069, %v2062, %v1941
        %v2072 = vsel %vm2069, %v2063, %v1943
        %v2073 = vsel %vm2069, %v2064, %v1945
        %v2074 = vsel %vm2069, %v2065, %v1947
        %v2075 = vsel %vm2069, %v2066, %v1949
        %v2076 = vsel %vm2069, %v2067, %v1951
        %v2077 = vsel %vm2069, %v2068, %v1953
        %vm2078 = vcmask 457728
        %v2079 = vsel %vm2078, %v2070, %v1971
        %v2080 = vsel %vm2078, %v2071, %v1973
        %v2081 = vsel %vm2078, %v2072, %v1975
        %v2082 = vsel %vm2078, %v2073, %v1977
        %v2083 = vsel %vm2078, %v2074, %v1979
        %v2084 = vsel %vm2078, %v2075, %v1981
        %v2085 = vsel %vm2078, %v2076, %v1983
        %v2086 = vsel %vm2078, %v2077, %v1985
        %vm2087 = vcmask 523264
        %v2088 = vsel %vm2087, %v2079, %v2003
        %v2089 = vsel %vm2087, %v2080, %v2005
        %v2090 = vsel %vm2087, %v2081, %v2007
        %v2091 = vsel %vm2087, %v2082, %v2009
        %v2092 = vsel %vm2087, %v2083, %v2011
        %v2093 = vsel %vm2087, %v2084, %v2013
        %v2094 = vsel %vm2087, %v2085, %v2015
        %v2095 = vsel %vm2087, %v2086, %v2017
        %2104 = vst [vmem:[#allocation1] ss:$2 sm:$0xff] %v2088
        %s2105 = scalar_lea.vmem [#allocation1], 1
        %2106 = vst [vmem:[%s2105] ss:$2 sm:$0xff] %v2089
        %s2107 = scalar_lea.vmem [#allocation1], 16
        %2108 = vst [vmem:[%s2107] ss:$2 sm:$0xff] %v2090
        %s2109 = scalar_lea.vmem [#allocation1], 17
        %2110 = vst [vmem:[%s2109] ss:$2 sm:$0xff] %v2091
        %s2111 = scalar_lea.vmem [#allocation1], 32
        %2112 = vst [vmem:[%s2111] ss:$2 sm:$0xff] %v2092
        %s2113 = scalar_lea.vmem [#allocation1], 33
        %2114 = vst [vmem:[%s2113] ss:$2 sm:$0xff] %v2093
        %s2115 = scalar_lea.vmem [#allocation1], 48
        %2116 = vst [vmem:[%s2115] ss:$2 sm:$0xff] %v2094
        %s2117 = scalar_lea.vmem [#allocation1], 49
        %2118 = vst [vmem:[%s2117] ss:$2 sm:$0xff] %v2095
        %v2119 = vld.sshfl [vmem:[#allocation1] sm:$0xff pattern:$0x75316420]
        %v2120 = vld.sshfl [vmem:[#allocation1 + $0x10] sm:$0xff pattern:$0x75316420]
        %v2121 = vld.sshfl [vmem:[#allocation1 + $0x20] sm:$0xff pattern:$0x75316420]
        %v2122 = vld.sshfl [vmem:[#allocation1 + $0x30] sm:$0xff pattern:$0x75316420]
        %v2127 = vpack.c.bf16 %v2120, %v2119
        %v2128 = vpack.c.bf16 %v2122, %v2121
        %v2129 = vld [vmem:[%s447] sm:$0xf]
        %v2130 = vld [vmem:[%s447 + $0x4] sm:$0xf]
        %v2131 = vld [vmem:[%s447 + $0x8] sm:$0xf]
        %v2132 = vld [vmem:[%s447 + $0xc] sm:$0xf]
        %v2133 = vld [vmem:[%s447 + $0x10] sm:$0xf]
        %v2134 = vld [vmem:[%s447 + $0x14] sm:$0xf]
        %v2135 = vld [vmem:[%s447 + $0x18] sm:$0xf]
        %v2136 = vld [vmem:[%s447 + $0x1c] sm:$0xf]
        %v2137 = vld [vmem:[%s447 + $0x20] sm:$0xf]
        %v2138 = vld [vmem:[%s450] sm:$0x1]
        %v2140 = vperm.slane %v2138, 0
        %v2151 = vunpack.c.l.b16 %v2129
        %v2152 = vunpack.c.l.b16 %v2130
        %v2153 = vunpack.c.l.b16 %v2131
        %v2154 = vunpack.c.l.b16 %v2132
        %v2155 = vunpack.c.l.b16 %v2133
        %v2156 = vunpack.c.l.b16 %v2134
        %v2157 = vunpack.c.l.b16 %v2135
        %v2158 = vunpack.c.l.b16 %v2136
        %v2159 = vunpack.c.l.b16 %v2137
        %v2160 = vpack.c.b16 %v2152, %v2151
        %v2161 = vpack.c.b16 %v2154, %v2153
        %v2162 = vpack.c.b16 %v2156, %v2155
        %v2163 = vpack.c.b16 %v2158, %v2157
        %v2164 = vpack.c.b16 %v2159, %v2159
        %vm2169 = vcmask 588800
        %v2171 = vsel %vm2169, %v2127, 0
        %v2174 = vsel %vm2169, %v2128, 0
        %vm2176 = vcmask 1043456
        %v2178 = vsel %vm2176, %v2164, 0
        %2180 = vmatpush.bf16.msra.mxu0 0
        %2181 = vmatpush.bf16.msra.mxu0 0
        %2182 = vmatpush.bf16.msra.mxu0 0
        %2183 = vmatpush.bf16.msra.mxu0 %v2178
        %2184 = vmatpush.bf16.msra.mxu0 %v2163
        %2185 = vmatpush.bf16.msra.mxu0 %v2162
        %2186 = vmatpush.bf16.msra.mxu0 %v2161
        %2187 = vmatpush.bf16.msra.mxu0 %v2160
        %2188 = vmatmul.bf16.gmra.mxu0 %v2171
        %v2189 = vpop.f32.mrf.mxu0
        %v2190 = vadd.f32 %v2140, %v2189
        %v2191 = vpop.f32.mrf.mxu0
        %v2192 = vadd.f32 %v2140, %v2191
        %2193 = vmatmul.bf16.gmra.mxu0 %v2174
        %v2194 = vpop.f32.mrf.mxu0
        %v2195 = vadd.f32 %v2140, %v2194
        %v2196 = vpop.f32.mrf.mxu0
        %v2197 = vadd.f32 %v2140, %v2196
        %2198 = vdwg.mxu0
        %v2199 = vsel %vm2034, %v2190, 0.0
        %v2200 = vsel %vm2034, %v2192, 0.0
        %v2201 = vadd.f32 %v2199, %v2200
        %v2202 = vrot.slane %v2201, 4
        %v2203 = vadd.f32 %v2201, %v2202
        %v2204 = vrot.slane %v2203, 2
        %v2205 = vadd.f32 %v2203, %v2204
        %v2206 = vrot.slane %v2205, 1
        %v2207 = vadd.f32 %v2205, %v2206
        %v2208 = vsel %vm2034, %v2195, 0.0
        %v2209 = vsel %vm2034, %v2197, 0.0
        %v2210 = vadd.f32 %v2208, %v2209
        %v2211 = vrot.slane %v2210, 4
        %v2212 = vadd.f32 %v2210, %v2211
        %v2213 = vrot.slane %v2212, 2
        %v2214 = vadd.f32 %v2212, %v2213
        %v2215 = vrot.slane %v2214, 1
        %v2216 = vadd.f32 %v2214, %v2215
        %v2217 = vrcp.pop 16.0
        %v2218 = vmul.f32 16.0, %v2217
        %v2219 = vsub.f32 1.0, %v2218
        %v2220 = vmul.f32 %v2217, %v2219
        %v2221 = vadd.f32 %v2217, %v2220
        %vm2222 = vweird.f32 %v2217
        %v2223 = vsel %vm2222, %v2217, %v2221
        %v2224 = vmul.f32 %v2207, %v2223
        %v2225 = vmul.f32 %v2216, %v2223
        %v2226 = vsub.f32 %v2190, %v2224
        %v2227 = vsub.f32 %v2192, %v2224
        %v2228 = vsub.f32 %v2195, %v2225
        %v2229 = vsub.f32 %v2197, %v2225
        %v2230 = vmul.f32 %v2226, %v2226
        %v2231 = vmul.f32 %v2227, %v2227
        %v2232 = vmul.f32 %v2228, %v2228
        %v2233 = vmul.f32 %v2229, %v2229
        %v2234 = vsel %vm2034, %v2230, 0.0
        %v2235 = vsel %vm2034, %v2231, 0.0
        %v2236 = vadd.f32 %v2234, %v2235
        %v2237 = vrot.slane %v2236, 4
        %v2238 = vadd.f32 %v2236, %v2237
        %v2239 = vrot.slane %v2238, 2
        %v2240 = vadd.f32 %v2238, %v2239
        %v2241 = vrot.slane %v2240, 1
        %v2242 = vadd.f32 %v2240, %v2241
        %v2243 = vsel %vm2034, %v2232, 0.0
        %v2244 = vsel %vm2034, %v2233, 0.0
        %v2245 = vadd.f32 %v2243, %v2244
        %v2246 = vrot.slane %v2245, 4
        %v2247 = vadd.f32 %v2245, %v2246
        %v2248 = vrot.slane %v2247, 2
        %v2249 = vadd.f32 %v2247, %v2248
        %v2250 = vrot.slane %v2249, 1
        %v2251 = vadd.f32 %v2249, %v2250
        %v2252 = vmul.f32 %v2242, %v2223
        %v2253 = vmul.f32 %v2251, %v2223
        %v2254 = vadd.f32 %v2252, 1e-05
        %v2255 = vadd.f32 %v2253, 1e-05
        %v2256 = vrsqrt.pop %v2254
        %v2257 = vmul.f32 %v2256, %v2254
        %v2258 = vmul.f32 %v2257, %v2256
        %v2259 = vmul.f32 0.5, %v2258
        %v2260 = vsub.f32 1.5, %v2259
        %v2261 = vmul.f32 %v2256, %v2260
        %vm2262 = vweird.f32 %v2254
        %vm2263 = vweird.f32 %v2256
        %vm2264 = vmor %vm2262, %vm2263
        %v2265 = vsel %vm2264, %v2256, %v2261
        %v2266 = vrsqrt.pop %v2255
        %v2267 = vmul.f32 %v2266, %v2255
        %v2268 = vmul.f32 %v2267, %v2266
        %v2269 = vmul.f32 0.5, %v2268
        %v2270 = vsub.f32 1.5, %v2269
        %v2271 = vmul.f32 %v2266, %v2270
        %vm2272 = vweird.f32 %v2255
        %vm2273 = vweird.f32 %v2266
        %vm2274 = vmor %vm2272, %vm2273
        %v2275 = vsel %vm2274, %v2266, %v2271
        %v2276 = vmul.f32 %v2226, %v2265
        %v2277 = vmul.f32 %v2227, %v2265
        %v2278 = vmul.f32 %v2228, %v2275
        %v2279 = vmul.f32 %v2229, %v2275
        %vm2280 = vcmp.gt.f32.partialorder %v2276, 0.0
        %vm2281 = vcmp.gt.f32.partialorder %v2277, 0.0
        %vm2282 = vcmp.gt.f32.partialorder %v2278, 0.0
        %vm2283 = vcmp.gt.f32.partialorder %v2279, 0.0
        %v2284 = vmul.f32 %v2276, 0.2
        %v2285 = vmul.f32 %v2277, 0.2
        %v2286 = vmul.f32 %v2278, 0.2
        %v2287 = vmul.f32 %v2279, 0.2
        %v2288 = vsel %vm2280, %v2276, %v2284
        %v2289 = vsel %vm2281, %v2277, %v2285
        %v2290 = vsel %vm2282, %v2278, %v2286
        %v2291 = vsel %vm2283, %v2279, %v2287
        %vm2292 = vcmask 128000
        %2293 = vst.msk [vmem:[#allocation3] sm:$0x3f] %vm2292, 0.0
        %2294 = vst.msk [vmem:[#allocation3 + $0x30] sm:$0x3f] %vm2292, 0.0
        %s2295 = scalar_lea.vmem [#allocation3], 40
        %2296 = vst.msk [vmem:[%s2295] sm:$0x3f] %vm2292, 0.0
        %2297 = vst.msk [vmem:[%s2295 + $0x30] sm:$0x3f] %vm2292, 0.0
        %vm2298 = vcmask 122880
        %2299 = vst.msk [vmem:[#allocation3] sm:$0x1] %vm2298, 0.0
        %2300 = vst.msk [vmem:[#allocation3 + $0x8] sm:$0x1] %vm2298, 0.0
        %2301 = vst.msk [vmem:[#allocation3 + $0x10] sm:$0x1] %vm2298, 0.0
        %2302 = vst.msk [vmem:[#allocation3 + $0x18] sm:$0x1] %vm2298, 0.0
        %2303 = vst.msk [vmem:[#allocation3 + $0x20] sm:$0x1] %vm2298, 0.0
        %2304 = vst.msk [vmem:[#allocation3 + $0x28] sm:$0x1] %vm2298, 0.0
        %2305 = vst.msk [vmem:[#allocation3 + $0x30] sm:$0x1] %vm2298, 0.0
        %2306 = vst.msk [vmem:[#allocation3 + $0x38] sm:$0x1] %vm2298, 0.0
        %2307 = vst.msk [vmem:[#allocation3 + $0x40] sm:$0x1] %vm2298, 0.0
        %2308 = vst.msk [vmem:[#allocation3 + $0x48] sm:$0x1] %vm2298, 0.0
        %2309 = vst.msk [vmem:[#allocation3 + $0x50] sm:$0x1] %vm2298, 0.0
        %2310 = vst.msk [vmem:[#allocation3 + $0x58] sm:$0x1] %vm2298, 0.0
        %2311 = vst.msk [vmem:[#allocation3 + $0x5] sm:$0x1] %vm2298, 0.0
        %2312 = vst.msk [vmem:[#allocation3 + $0xd] sm:$0x1] %vm2298, 0.0
        %2313 = vst.msk [vmem:[#allocation3 + $0x15] sm:$0x1] %vm2298, 0.0
        %2314 = vst.msk [vmem:[#allocation3 + $0x1d] sm:$0x1] %vm2298, 0.0
        %2315 = vst.msk [vmem:[#allocation3 + $0x25] sm:$0x1] %vm2298, 0.0
        %2316 = vst.msk [vmem:[#allocation3 + $0x2d] sm:$0x1] %vm2298, 0.0
        %2317 = vst.msk [vmem:[#allocation3 + $0x35] sm:$0x1] %vm2298, 0.0
        %2318 = vst.msk [vmem:[#allocation3 + $0x3d] sm:$0x1] %vm2298, 0.0
        %2319 = vst.msk [vmem:[#allocation3 + $0x45] sm:$0x1] %vm2298, 0.0
        %2320 = vst.msk [vmem:[#allocation3 + $0x4d] sm:$0x1] %vm2298, 0.0
        %2321 = vst.msk [vmem:[#allocation3 + $0x55] sm:$0x1] %vm2298, 0.0
        %2322 = vst.msk [vmem:[#allocation3 + $0x5d] sm:$0x1] %vm2298, 0.0
        %v2327 = vrot.slane %v2288, 4
        %v2328 = vrot.slane %v2289, 4
        %v2329 = vrot.slane %v2290, 4
        %v2330 = vrot.slane %v2291, 4
        %s2335 = scalar_lea.vmem [#allocation3], 8
        %vm2336 = vcmask 125952
        %2337 = vst.msk [vmem:[%s2335 + $0x1] sm:$0xf] %vm2336, %v2288
        %2338 = vst.msk [vmem:[%s2335 + $0x9] sm:$0xf] %vm2336, %v2327
        %2339 = vst.msk [vmem:[%s2335 + $0x11] sm:$0xf] %vm2336, %v2289
        %2340 = vst.msk [vmem:[%s2335 + $0x19] sm:$0xf] %vm2336, %v2328
        %2341 = vst.msk [vmem:[%s2335 + $0x31] sm:$0xf] %vm2336, %v2290
        %2342 = vst.msk [vmem:[%s2335 + $0x39] sm:$0xf] %vm2336, %v2329
        %2343 = vst.msk [vmem:[%s2335 + $0x41] sm:$0xf] %vm2336, %v2291
        %2344 = vst.msk [vmem:[%s2335 + $0x49] sm:$0xf] %vm2336, %v2330
        %v2345 = vld [vmem:[#allocation3] sm:$0xf]
        %v2346 = vld [vmem:[#allocation3 + $0x8] sm:$0xf]
        %v2347 = vld [vmem:[#allocation3 + $0x10] sm:$0xf]
        %v2348 = vld [vmem:[#allocation3 + $0x18] sm:$0xf]
        %v2349 = vld [vmem:[#allocation3 + $0x30] sm:$0xf]
        %v2350 = vld [vmem:[#allocation3 + $0x38] sm:$0xf]
        %v2351 = vld [vmem:[#allocation3 + $0x40] sm:$0xf]
        %v2352 = vld [vmem:[#allocation3 + $0x48] sm:$0xf]
        %v2353 = vld [vmem:[#allocation3 + $0x1] sm:$0xf]
        %v2354 = vld [vmem:[#allocation3 + $0x9] sm:$0xf]
        %v2355 = vld [vmem:[#allocation3 + $0x11] sm:$0xf]
        %v2356 = vld [vmem:[#allocation3 + $0x19] sm:$0xf]
        %v2357 = vld [vmem:[#allocation3 + $0x31] sm:$0xf]
        %v2358 = vld [vmem:[#allocation3 + $0x39] sm:$0xf]
        %v2359 = vld [vmem:[#allocation3 + $0x41] sm:$0xf]
        %v2360 = vld [vmem:[#allocation3 + $0x49] sm:$0xf]
        %v2361 = vld [vmem:[#allocation3 + $0x2] sm:$0xf]
        %v2362 = vld [vmem:[#allocation3 + $0xa] sm:$0xf]
        %v2363 = vld [vmem:[#allocation3 + $0x12] sm:$0xf]
        %v2364 = vld [vmem:[#allocation3 + $0x1a] sm:$0xf]
        %v2365 = vld [vmem:[#allocation3 + $0x32] sm:$0xf]
        %v2366 = vld [vmem:[#allocation3 + $0x3a] sm:$0xf]
        %v2367 = vld [vmem:[#allocation3 + $0x42] sm:$0xf]
        %v2368 = vld [vmem:[#allocation3 + $0x4a] sm:$0xf]
        %v2369 = vld [vmem:[%s2335] sm:$0xf]
        %v2370 = vld [vmem:[%s2335 + $0x8] sm:$0xf]
        %v2371 = vld [vmem:[%s2335 + $0x10] sm:$0xf]
        %v2372 = vld [vmem:[%s2335 + $0x18] sm:$0xf]
        %v2373 = vld [vmem:[%s2335 + $0x30] sm:$0xf]
        %v2374 = vld [vmem:[%s2335 + $0x38] sm:$0xf]
        %v2375 = vld [vmem:[%s2335 + $0x40] sm:$0xf]
        %v2376 = vld [vmem:[%s2335 + $0x48] sm:$0xf]
        %v2377 = vld [vmem:[%s2335 + $0x1] sm:$0xf]
        %v2378 = vld [vmem:[%s2335 + $0x9] sm:$0xf]
        %v2379 = vld [vmem:[%s2335 + $0x11] sm:$0xf]
        %v2380 = vld [vmem:[%s2335 + $0x19] sm:$0xf]
        %v2381 = vld [vmem:[%s2335 + $0x31] sm:$0xf]
        %v2382 = vld [vmem:[%s2335 + $0x39] sm:$0xf]
        %v2383 = vld [vmem:[%s2335 + $0x41] sm:$0xf]
        %v2384 = vld [vmem:[%s2335 + $0x49] sm:$0xf]
        %v2385 = vld [vmem:[%s2335 + $0x2] sm:$0xf]
        %v2386 = vld [vmem:[%s2335 + $0xa] sm:$0xf]
        %v2387 = vld [vmem:[%s2335 + $0x12] sm:$0xf]
        %v2388 = vld [vmem:[%s2335 + $0x1a] sm:$0xf]
        %v2389 = vld [vmem:[%s2335 + $0x32] sm:$0xf]
        %v2390 = vld [vmem:[%s2335 + $0x3a] sm:$0xf]
        %v2391 = vld [vmem:[%s2335 + $0x42] sm:$0xf]
        %v2392 = vld [vmem:[%s2335 + $0x4a] sm:$0xf]
        %s2393 = scalar_lea.vmem [#allocation3], 16
        %v2394 = vld [vmem:[%s2393] sm:$0xf]
        %v2395 = vld [vmem:[%s2393 + $0x8] sm:$0xf]
        %v2396 = vld [vmem:[%s2393 + $0x10] sm:$0xf]
        %v2397 = vld [vmem:[%s2393 + $0x18] sm:$0xf]
        %v2398 = vld [vmem:[%s2393 + $0x30] sm:$0xf]
        %v2399 = vld [vmem:[%s2393 + $0x38] sm:$0xf]
        %v2400 = vld [vmem:[%s2393 + $0x40] sm:$0xf]
        %v2401 = vld [vmem:[%s2393 + $0x48] sm:$0xf]
        %v2402 = vld [vmem:[%s2393 + $0x1] sm:$0xf]
        %v2403 = vld [vmem:[%s2393 + $0x9] sm:$0xf]
        %v2404 = vld [vmem:[%s2393 + $0x11] sm:$0xf]
        %v2405 = vld [vmem:[%s2393 + $0x19] sm:$0xf]
        %v2406 = vld [vmem:[%s2393 + $0x31] sm:$0xf]
        %v2407 = vld [vmem:[%s2393 + $0x39] sm:$0xf]
        %v2408 = vld [vmem:[%s2393 + $0x41] sm:$0xf]
        %v2409 = vld [vmem:[%s2393 + $0x49] sm:$0xf]
        %v2410 = vld [vmem:[%s2393 + $0x2] sm:$0xf]
        %v2411 = vld [vmem:[%s2393 + $0xa] sm:$0xf]
        %v2412 = vld [vmem:[%s2393 + $0x12] sm:$0xf]
        %v2413 = vld [vmem:[%s2393 + $0x1a] sm:$0xf]
        %v2414 = vld [vmem:[%s2393 + $0x32] sm:$0xf]
        %v2415 = vld [vmem:[%s2393 + $0x3a] sm:$0xf]
        %v2416 = vld [vmem:[%s2393 + $0x42] sm:$0xf]
        %v2417 = vld [vmem:[%s2393 + $0x4a] sm:$0xf]
        %2426 = vrot.lane.b32.xlu0 %v2353, 16
        %v2427 = vpop.permute.xlu0 %2426
        %2428 = vrot.lane.b32.xlu0 %v2354, 16
        %v2429 = vpop.permute.xlu0 %2428
        %2430 = vrot.lane.b32.xlu0 %v2355, 16
        %v2431 = vpop.permute.xlu0 %2430
        %2432 = vrot.lane.b32.xlu0 %v2356, 16
        %v2433 = vpop.permute.xlu0 %2432
        %2434 = vrot.lane.b32.xlu0 %v2357, 16
        %v2435 = vpop.permute.xlu0 %2434
        %2436 = vrot.lane.b32.xlu0 %v2358, 16
        %v2437 = vpop.permute.xlu0 %2436
        %2438 = vrot.lane.b32.xlu0 %v2359, 16
        %v2439 = vpop.permute.xlu0 %2438
        %2440 = vrot.lane.b32.xlu0 %v2360, 16
        %v2441 = vpop.permute.xlu0 %2440
        %2458 = vrot.lane.b32.xlu0 %v2361, 32
        %v2459 = vpop.permute.xlu0 %2458
        %2460 = vrot.lane.b32.xlu0 %v2362, 32
        %v2461 = vpop.permute.xlu0 %2460
        %2462 = vrot.lane.b32.xlu0 %v2363, 32
        %v2463 = vpop.permute.xlu0 %2462
        %2464 = vrot.lane.b32.xlu0 %v2364, 32
        %v2465 = vpop.permute.xlu0 %2464
        %2466 = vrot.lane.b32.xlu0 %v2365, 32
        %v2467 = vpop.permute.xlu0 %2466
        %2468 = vrot.lane.b32.xlu0 %v2366, 32
        %v2469 = vpop.permute.xlu0 %2468
        %2470 = vrot.lane.b32.xlu0 %v2367, 32
        %v2471 = vpop.permute.xlu0 %2470
        %2472 = vrot.lane.b32.xlu0 %v2368, 32
        %v2473 = vpop.permute.xlu0 %2472
        %2490 = vrot.lane.b32.xlu0 %v2369, 48
        %v2491 = vpop.permute.xlu0 %2490
        %2492 = vrot.lane.b32.xlu0 %v2370, 48
        %v2493 = vpop.permute.xlu0 %2492
        %2494 = vrot.lane.b32.xlu0 %v2371, 48
        %v2495 = vpop.permute.xlu0 %2494
        %2496 = vrot.lane.b32.xlu0 %v2372, 48
        %v2497 = vpop.permute.xlu0 %2496
        %2498 = vrot.lane.b32.xlu0 %v2373, 48
        %v2499 = vpop.permute.xlu0 %2498
        %2500 = vrot.lane.b32.xlu0 %v2374, 48
        %v2501 = vpop.permute.xlu0 %2500
        %2502 = vrot.lane.b32.xlu0 %v2375, 48
        %v2503 = vpop.permute.xlu0 %2502
        %2504 = vrot.lane.b32.xlu0 %v2376, 48
        %v2505 = vpop.permute.xlu0 %2504
        %2522 = vrot.lane.b32.xlu0 %v2377, 64
        %v2523 = vpop.permute.xlu0 %2522
        %2524 = vrot.lane.b32.xlu0 %v2378, 64
        %v2525 = vpop.permute.xlu0 %2524
        %2526 = vrot.lane.b32.xlu0 %v2379, 64
        %v2527 = vpop.permute.xlu0 %2526
        %2528 = vrot.lane.b32.xlu0 %v2380, 64
        %v2529 = vpop.permute.xlu0 %2528
        %2530 = vrot.lane.b32.xlu0 %v2381, 64
        %v2531 = vpop.permute.xlu0 %2530
        %2532 = vrot.lane.b32.xlu0 %v2382, 64
        %v2533 = vpop.permute.xlu0 %2532
        %2534 = vrot.lane.b32.xlu0 %v2383, 64
        %v2535 = vpop.permute.xlu0 %2534
        %2536 = vrot.lane.b32.xlu0 %v2384, 64
        %v2537 = vpop.permute.xlu0 %2536
        %2554 = vrot.lane.b32.xlu0 %v2385, 80
        %v2555 = vpop.permute.xlu0 %2554
        %2556 = vrot.lane.b32.xlu0 %v2386, 80
        %v2557 = vpop.permute.xlu0 %2556
        %2558 = vrot.lane.b32.xlu0 %v2387, 80
        %v2559 = vpop.permute.xlu0 %2558
        %2560 = vrot.lane.b32.xlu0 %v2388, 80
        %v2561 = vpop.permute.xlu0 %2560
        %2562 = vrot.lane.b32.xlu0 %v2389, 80
        %v2563 = vpop.permute.xlu0 %2562
        %2564 = vrot.lane.b32.xlu0 %v2390, 80
        %v2565 = vpop.permute.xlu0 %2564
        %2566 = vrot.lane.b32.xlu0 %v2391, 80
        %v2567 = vpop.permute.xlu0 %2566
        %2568 = vrot.lane.b32.xlu0 %v2392, 80
        %v2569 = vpop.permute.xlu0 %2568
        %2586 = vrot.lane.b32.xlu0 %v2394, 96
        %v2587 = vpop.permute.xlu0 %2586
        %2588 = vrot.lane.b32.xlu0 %v2395, 96
        %v2589 = vpop.permute.xlu0 %2588
        %2590 = vrot.lane.b32.xlu0 %v2396, 96
        %v2591 = vpop.permute.xlu0 %2590
        %2592 = vrot.lane.b32.xlu0 %v2397, 96
        %v2593 = vpop.permute.xlu0 %2592
        %2594 = vrot.lane.b32.xlu0 %v2398, 96
        %v2595 = vpop.permute.xlu0 %2594
        %2596 = vrot.lane.b32.xlu0 %v2399, 96
        %v2597 = vpop.permute.xlu0 %2596
        %2598 = vrot.lane.b32.xlu0 %v2400, 96
        %v2599 = vpop.permute.xlu0 %2598
        %2600 = vrot.lane.b32.xlu0 %v2401, 96
        %v2601 = vpop.permute.xlu0 %2600
        %2618 = vrot.lane.b32.xlu0 %v2402, 112
        %v2619 = vpop.permute.xlu0 %2618
        %2620 = vrot.lane.b32.xlu0 %v2403, 112
        %v2621 = vpop.permute.xlu0 %2620
        %2622 = vrot.lane.b32.xlu0 %v2404, 112
        %v2623 = vpop.permute.xlu0 %2622
        %2624 = vrot.lane.b32.xlu0 %v2405, 112
        %v2625 = vpop.permute.xlu0 %2624
        %2626 = vrot.lane.b32.xlu0 %v2406, 112
        %v2627 = vpop.permute.xlu0 %2626
        %2628 = vrot.lane.b32.xlu0 %v2407, 112
        %v2629 = vpop.permute.xlu0 %2628
        %2630 = vrot.lane.b32.xlu0 %v2408, 112
        %v2631 = vpop.permute.xlu0 %2630
        %2632 = vrot.lane.b32.xlu0 %v2409, 112
        %v2633 = vpop.permute.xlu0 %2632
        %v2642 = vsel %vm2034, %v2345, %v2427
        %v2643 = vsel %vm2034, %v2346, %v2429
        %v2644 = vsel %vm2034, %v2347, %v2431
        %v2645 = vsel %vm2034, %v2348, %v2433
        %v2646 = vsel %vm2034, %v2349, %v2435
        %v2647 = vsel %vm2034, %v2350, %v2437
        %v2648 = vsel %vm2034, %v2351, %v2439
        %v2649 = vsel %vm2034, %v2352, %v2441
        %v2650 = vsel %vm2051, %v2642, %v2459
        %v2651 = vsel %vm2051, %v2643, %v2461
        %v2652 = vsel %vm2051, %v2644, %v2463
        %v2653 = vsel %vm2051, %v2645, %v2465
        %v2654 = vsel %vm2051, %v2646, %v2467
        %v2655 = vsel %vm2051, %v2647, %v2469
        %v2656 = vsel %vm2051, %v2648, %v2471
        %v2657 = vsel %vm2051, %v2649, %v2473
        %v2658 = vsel %vm2069, %v2650, %v2491
        %v2659 = vsel %vm2069, %v2651, %v2493
        %v2660 = vsel %vm2069, %v2652, %v2495
        %v2661 = vsel %vm2069, %v2653, %v2497
        %v2662 = vsel %vm2069, %v2654, %v2499
        %v2663 = vsel %vm2069, %v2655, %v2501
        %v2664 = vsel %vm2069, %v2656, %v2503
        %v2665 = vsel %vm2069, %v2657, %v2505
        %v2666 = vsel %vm2087, %v2658, %v2523
        %v2667 = vsel %vm2087, %v2659, %v2525
        %v2668 = vsel %vm2087, %v2660, %v2527
        %v2669 = vsel %vm2087, %v2661, %v2529
        %v2670 = vsel %vm2087, %v2662, %v2531
        %v2671 = vsel %vm2087, %v2663, %v2533
        %v2672 = vsel %vm2087, %v2664, %v2535
        %v2673 = vsel %vm2087, %v2665, %v2537
        %vm2674 = vcmask 654336
        %v2675 = vsel %vm2674, %v2666, %v2555
        %v2676 = vsel %vm2674, %v2667, %v2557
        %v2677 = vsel %vm2674, %v2668, %v2559
        %v2678 = vsel %vm2674, %v2669, %v2561
        %v2679 = vsel %vm2674, %v2670, %v2563
        %v2680 = vsel %vm2674, %v2671, %v2565
        %v2681 = vsel %vm2674, %v2672, %v2567
        %v2682 = vsel %vm2674, %v2673, %v2569
        %vm2683 = vcmask 785408
        %v2684 = vsel %vm2683, %v2675, %v2587
        %v2685 = vsel %vm2683, %v2676, %v2589
        %v2686 = vsel %vm2683, %v2677, %v2591
        %v2687 = vsel %vm2683, %v2678, %v2593
        %v2688 = vsel %vm2683, %v2679, %v2595
        %v2689 = vsel %vm2683, %v2680, %v2597
        %v2690 = vsel %vm2683, %v2681, %v2599
        %v2691 = vsel %vm2683, %v2682, %v2601
        %vm2692 = vcmask 916480
        %v2693 = vsel %vm2692, %v2684, %v2619
        %v2694 = vsel %vm2692, %v2685, %v2621
        %v2695 = vsel %vm2692, %v2686, %v2623
        %v2696 = vsel %vm2692, %v2687, %v2625
        %v2697 = vsel %vm2692, %v2688, %v2627
        %v2698 = vsel %vm2692, %v2689, %v2629
        %v2699 = vsel %vm2692, %v2690, %v2631
        %v2700 = vsel %vm2692, %v2691, %v2633
        %v2717 = vrot.slane %v2410, 4
        %v2718 = vrot.slane %v2411, 4
        %v2719 = vrot.slane %v2412, 4
        %v2720 = vrot.slane %v2413, 4
        %v2721 = vrot.slane %v2414, 4
        %v2722 = vrot.slane %v2415, 4
        %v2723 = vrot.slane %v2416, 4
        %v2724 = vrot.slane %v2417, 4
        %v2725 = vsel %vm2176, %v2693, %v2717
        %v2726 = vsel %vm2176, %v2694, %v2718
        %v2727 = vsel %vm2176, %v2695, %v2719
        %v2728 = vsel %vm2176, %v2696, %v2720
        %v2729 = vsel %vm2176, %v2697, %v2721
        %v2730 = vsel %vm2176, %v2698, %v2722
        %v2731 = vsel %vm2176, %v2699, %v2723
        %v2732 = vsel %vm2176, %v2700, %v2724
        %2733 = vst [vmem:[#allocation1] ss:$2 sm:$0xff] %v2725
        %s2734 = scalar_lea.vmem [#allocation1], 1
        %2735 = vst [vmem:[%s2734] ss:$2 sm:$0xff] %v2726
        %s2736 = scalar_lea.vmem [#allocation1], 16
        %2737 = vst [vmem:[%s2736] ss:$2 sm:$0xff] %v2727
        %s2738 = scalar_lea.vmem [#allocation1], 17
        %2739 = vst [vmem:[%s2738] ss:$2 sm:$0xff] %v2728
        %s2740 = scalar_lea.vmem [#allocation1], 32
        %2741 = vst [vmem:[%s2740] ss:$2 sm:$0xff] %v2729
        %s2742 = scalar_lea.vmem [#allocation1], 33
        %2743 = vst [vmem:[%s2742] ss:$2 sm:$0xff] %v2730
        %s2744 = scalar_lea.vmem [#allocation1], 48
        %2745 = vst [vmem:[%s2744] ss:$2 sm:$0xff] %v2731
        %s2746 = scalar_lea.vmem [#allocation1], 49
        %2747 = vst [vmem:[%s2746] ss:$2 sm:$0xff] %v2732
        %v2748 = vld.sshfl [vmem:[#allocation1] sm:$0xff pattern:$0x75316420]
        %v2749 = vld.sshfl [vmem:[#allocation1 + $0x8] sm:$0xff pattern:$0x75316420]
        %v2750 = vld.sshfl [vmem:[#allocation1 + $0x10] sm:$0xff pattern:$0x75316420]
        %v2751 = vld.sshfl [vmem:[#allocation1 + $0x18] sm:$0xff pattern:$0x75316420]
        %v2752 = vld.sshfl [vmem:[#allocation1 + $0x20] sm:$0xff pattern:$0x75316420]
        %v2753 = vld.sshfl [vmem:[#allocation1 + $0x28] sm:$0xff pattern:$0x75316420]
        %v2754 = vld.sshfl [vmem:[#allocation1 + $0x30] sm:$0xff pattern:$0x75316420]
        %v2755 = vld.sshfl [vmem:[#allocation1 + $0x38] sm:$0xff pattern:$0x75316420]
        %v2764 = vpack.c.bf16 %v2750, %v2748
        %v2765 = vpack.c.bf16 %v2751, %v2749
        %v2766 = vpack.c.bf16 %v2754, %v2752
        %v2767 = vpack.c.bf16 %v2755, %v2753
        %v2768 = vld [vmem:[%s455] sm:$0xf]
        %v2769 = vld [vmem:[%s455 + $0x4] sm:$0xf]
        %v2770 = vld [vmem:[%s455 + $0x8] sm:$0xf]
        %v2771 = vld [vmem:[%s455 + $0xc] sm:$0xf]
        %v2772 = vld [vmem:[%s455 + $0x10] sm:$0xf]
        %v2773 = vld [vmem:[%s455 + $0x14] sm:$0xf]
        %v2774 = vld [vmem:[%s455 + $0x18] sm:$0xf]
        %v2775 = vld [vmem:[%s455 + $0x1c] sm:$0xf]
        %v2776 = vld [vmem:[%s455 + $0x20] sm:$0xf]
        %v2777 = vld [vmem:[%s455 + $0x24] sm:$0xf]
        %v2778 = vld [vmem:[%s455 + $0x28] sm:$0xf]
        %v2779 = vld [vmem:[%s455 + $0x2c] sm:$0xf]
        %v2780 = vld [vmem:[%s455 + $0x30] sm:$0xf]
        %v2781 = vld [vmem:[%s455 + $0x34] sm:$0xf]
        %v2782 = vld [vmem:[%s455 + $0x38] sm:$0xf]
        %v2783 = vld [vmem:[%s455 + $0x3c] sm:$0xf]
        %v2784 = vld [vmem:[%s455 + $0x40] sm:$0xf]
        %v2785 = vld [vmem:[%s455 + $0x44] sm:$0xf]
        %v2786 = vld [vmem:[%s458] sm:$0x1]
        %v2788 = vperm.slane %v2786, 0
        %v2808 = vunpack.c.l.b16 %v2768
        %v2809 = vunpack.c.l.b16 %v2769
        %v2810 = vunpack.c.l.b16 %v2770
        %v2811 = vunpack.c.l.b16 %v2771
        %v2812 = vunpack.c.l.b16 %v2772
        %v2813 = vunpack.c.l.b16 %v2773
        %v2814 = vunpack.c.l.b16 %v2774
        %v2815 = vunpack.c.l.b16 %v2775
        %v2816 = vunpack.c.l.b16 %v2776
        %v2817 = vunpack.c.l.b16 %v2777
        %v2818 = vunpack.c.l.b16 %v2778
        %v2819 = vunpack.c.l.b16 %v2779
        %v2820 = vunpack.c.l.b16 %v2780
        %v2821 = vunpack.c.l.b16 %v2781
        %v2822 = vunpack.c.l.b16 %v2782
        %v2823 = vunpack.c.l.b16 %v2783
        %v2824 = vunpack.c.l.b16 %v2784
        %v2825 = vunpack.c.l.b16 %v2785
        %v2826 = vpack.c.b16 %v2809, %v2808
        %v2827 = vpack.c.b16 %v2811, %v2810
        %v2828 = vpack.c.b16 %v2813, %v2812
        %v2829 = vpack.c.b16 %v2815, %v2814
        %v2830 = vpack.c.b16 %v2817, %v2816
        %v2831 = vpack.c.b16 %v2819, %v2818
        %v2832 = vpack.c.b16 %v2821, %v2820
        %v2833 = vpack.c.b16 %v2823, %v2822
        %v2834 = vpack.c.b16 %v2825, %v2824
        %v2845 = vsel %vm2034, %v2765, 0
        %v2848 = vsel %vm2034, %v2767, 0
        %2850 = vmatpush.bf16.msra.mxu0 %v2833
        %2851 = vmatpush.bf16.msra.mxu0 %v2832
        %2852 = vmatpush.bf16.msra.mxu0 %v2831
        %2853 = vmatpush.bf16.msra.mxu0 %v2830
        %2854 = vmatpush.bf16.msra.mxu0 %v2829
        %2855 = vmatpush.bf16.msra.mxu0 %v2828
        %2856 = vmatpush.bf16.msra.mxu0 %v2827
        %2857 = vmatpush.bf16.msra.mxu0 %v2826
        %2858 = vmatmul.bf16.gmra.mxu0 %v2764
        %v2859 = vpop.f32.mrf.mxu0
        %v2860 = vadd.f32 %v2788, %v2859
        %v2861 = vpop.f32.mrf.mxu0
        %v2862 = vadd.f32 %v2788, %v2861
        %2863 = vmatmul.bf16.gmra.mxu0 %v2766
        %v2864 = vpop.f32.mrf.mxu0
        %v2865 = vadd.f32 %v2788, %v2864
        %v2866 = vpop.f32.mrf.mxu0
        %v2867 = vadd.f32 %v2788, %v2866
        %2868 = vdwg.mxu0
        %2869 = vmatpush.bf16.msra.mxu0 0
        %2870 = vmatpush.bf16.msra.mxu0 0
        %2871 = vmatpush.bf16.msra.mxu0 0
        %2872 = vmatpush.bf16.msra.mxu0 0
        %2873 = vmatpush.bf16.msra.mxu0 0
        %2874 = vmatpush.bf16.msra.mxu0 0
        %2875 = vmatpush.bf16.msra.mxu0 0
        %2876 = vmatpush.bf16.msra.mxu0 %v2834
        %2877 = vmatmul.bf16.gmra.mxu0 %v2845
        %v2878 = vpop.f32.mrf.mxu0
        %v2879 = vadd.f32 %v2860, %v2878
        %v2880 = vpop.f32.mrf.mxu0
        %v2881 = vadd.f32 %v2862, %v2880
        %2882 = vmatmul.bf16.gmra.mxu0 %v2848
        %v2883 = vpop.f32.mrf.mxu0
        %v2884 = vadd.f32 %v2865, %v2883
        %v2885 = vpop.f32.mrf.mxu0
        %v2886 = vadd.f32 %v2867, %v2885
        %2887 = vdwg.mxu0
        %v2888 = vsel %vm2034, %v2879, 0.0
        %v2889 = vsel %vm2034, %v2881, 0.0
        %v2890 = vadd.f32 %v2888, %v2889
        %v2891 = vrot.slane %v2890, 4
        %v2892 = vadd.f32 %v2890, %v2891
        %v2893 = vrot.slane %v2892, 2
        %v2894 = vadd.f32 %v2892, %v2893
        %v2895 = vrot.slane %v2894, 1
        %v2896 = vadd.f32 %v2894, %v2895
        %v2897 = vsel %vm2034, %v2884, 0.0
        %v2898 = vsel %vm2034, %v2886, 0.0
        %v2899 = vadd.f32 %v2897, %v2898
        %v2900 = vrot.slane %v2899, 4
        %v2901 = vadd.f32 %v2899, %v2900
        %v2902 = vrot.slane %v2901, 2
        %v2903 = vadd.f32 %v2901, %v2902
        %v2904 = vrot.slane %v2903, 1
        %v2905 = vadd.f32 %v2903, %v2904
        %v2906 = vmul.f32 %v2896, %v2223
        %v2907 = vmul.f32 %v2905, %v2223
        %v2908 = vsub.f32 %v2879, %v2906
        %v2909 = vsub.f32 %v2881, %v2906
        %v2910 = vsub.f32 %v2884, %v2907
        %v2911 = vsub.f32 %v2886, %v2907
        %v2912 = vmul.f32 %v2908, %v2908
        %v2913 = vmul.f32 %v2909, %v2909
        %v2914 = vmul.f32 %v2910, %v2910
        %v2915 = vmul.f32 %v2911, %v2911
        %v2916 = vsel %vm2034, %v2912, 0.0
        %v2917 = vsel %vm2034, %v2913, 0.0
        %v2918 = vadd.f32 %v2916, %v2917
        %v2919 = vrot.slane %v2918, 4
        %v2920 = vadd.f32 %v2918, %v2919
        %v2921 = vrot.slane %v2920, 2
        %v2922 = vadd.f32 %v2920, %v2921
        %v2923 = vrot.slane %v2922, 1
        %v2924 = vadd.f32 %v2922, %v2923
        %v2925 = vsel %vm2034, %v2914, 0.0
        %v2926 = vsel %vm2034, %v2915, 0.0
        %v2927 = vadd.f32 %v2925, %v2926
        %v2928 = vrot.slane %v2927, 4
        %v2929 = vadd.f32 %v2927, %v2928
        %v2930 = vrot.slane %v2929, 2
        %v2931 = vadd.f32 %v2929, %v2930
        %v2932 = vrot.slane %v2931, 1
        %v2933 = vadd.f32 %v2931, %v2932
        %v2934 = vmul.f32 %v2924, %v2223
        %v2935 = vmul.f32 %v2933, %v2223
        %v2936 = vadd.f32 %v2934, 1e-05
        %v2937 = vadd.f32 %v2935, 1e-05
        %v2938 = vrsqrt.pop %v2936
        %v2939 = vmul.f32 %v2938, %v2936
        %v2940 = vmul.f32 %v2939, %v2938
        %v2941 = vmul.f32 0.5, %v2940
        %v2942 = vsub.f32 1.5, %v2941
        %v2943 = vmul.f32 %v2938, %v2942
        %vm2944 = vweird.f32 %v2936
        %vm2945 = vweird.f32 %v2938
        %vm2946 = vmor %vm2944, %vm2945
        %v2947 = vsel %vm2946, %v2938, %v2943
        %v2948 = vrsqrt.pop %v2937
        %v2949 = vmul.f32 %v2948, %v2937
        %v2950 = vmul.f32 %v2949, %v2948
        %v2951 = vmul.f32 0.5, %v2950
        %v2952 = vsub.f32 1.5, %v2951
        %v2953 = vmul.f32 %v2948, %v2952
        %vm2954 = vweird.f32 %v2937
        %vm2955 = vweird.f32 %v2948
        %vm2956 = vmor %vm2954, %vm2955
        %v2957 = vsel %vm2956, %v2948, %v2953
        %v2958 = vmul.f32 %v2908, %v2947
        %v2959 = vmul.f32 %v2909, %v2947
        %v2960 = vmul.f32 %v2910, %v2957
        %v2961 = vmul.f32 %v2911, %v2957
        %vm2962 = vcmp.gt.f32.partialorder %v2958, 0.0
        %vm2963 = vcmp.gt.f32.partialorder %v2959, 0.0
        %vm2964 = vcmp.gt.f32.partialorder %v2960, 0.0
        %vm2965 = vcmp.gt.f32.partialorder %v2961, 0.0
        %v2966 = vmul.f32 %v2958, 0.2
        %v2967 = vmul.f32 %v2959, 0.2
        %v2968 = vmul.f32 %v2960, 0.2
        %v2969 = vmul.f32 %v2961, 0.2
        %v2970 = vsel %vm2962, %v2958, %v2966
        %v2971 = vsel %vm2963, %v2959, %v2967
        %v2972 = vsel %vm2964, %v2960, %v2968
        %v2973 = vsel %vm2965, %v2961, %v2969
        %2974 = vst.msk [vmem:[#allocation4] sm:$0x3f] %vm2292, 0.0
        %2975 = vst.msk [vmem:[#allocation4 + $0x30] sm:$0x3f] %vm2292, 0.0
        %s2976 = scalar_lea.vmem [#allocation4], 40
        %2977 = vst.msk [vmem:[%s2976] sm:$0x3f] %vm2292, 0.0
        %2978 = vst.msk [vmem:[%s2976 + $0x30] sm:$0x3f] %vm2292, 0.0
        %2979 = vst.msk [vmem:[#allocation4] sm:$0x1] %vm2298, 0.0
        %2980 = vst.msk [vmem:[#allocation4 + $0x8] sm:$0x1] %vm2298, 0.0
        %2981 = vst.msk [vmem:[#allocation4 + $0x10] sm:$0x1] %vm2298, 0.0
        %2982 = vst.msk [vmem:[#allocation4 + $0x18] sm:$0x1] %vm2298, 0.0
        %2983 = vst.msk [vmem:[#allocation4 + $0x20] sm:$0x1] %vm2298, 0.0
        %2984 = vst.msk [vmem:[#allocation4 + $0x28] sm:$0x1] %vm2298, 0.0
        %2985 = vst.msk [vmem:[#allocation4 + $0x30] sm:$0x1] %vm2298, 0.0
        %2986 = vst.msk [vmem:[#allocation4 + $0x38] sm:$0x1] %vm2298, 0.0
        %2987 = vst.msk [vmem:[#allocation4 + $0x40] sm:$0x1] %vm2298, 0.0
        %2988 = vst.msk [vmem:[#allocation4 + $0x48] sm:$0x1] %vm2298, 0.0
        %2989 = vst.msk [vmem:[#allocation4 + $0x50] sm:$0x1] %vm2298, 0.0
        %2990 = vst.msk [vmem:[#allocation4 + $0x58] sm:$0x1] %vm2298, 0.0
        %2991 = vst.msk [vmem:[#allocation4 + $0x5] sm:$0x1] %vm2298, 0.0
        %2992 = vst.msk [vmem:[#allocation4 + $0xd] sm:$0x1] %vm2298, 0.0
        %2993 = vst.msk [vmem:[#allocation4 + $0x15] sm:$0x1] %vm2298, 0.0
        %2994 = vst.msk [vmem:[#allocation4 + $0x1d] sm:$0x1] %vm2298, 0.0
        %2995 = vst.msk [vmem:[#allocation4 + $0x25] sm:$0x1] %vm2298, 0.0
        %2996 = vst.msk [vmem:[#allocation4 + $0x2d] sm:$0x1] %vm2298, 0.0
        %2997 = vst.msk [vmem:[#allocation4 + $0x35] sm:$0x1] %vm2298, 0.0
        %2998 = vst.msk [vmem:[#allocation4 + $0x3d] sm:$0x1] %vm2298, 0.0
        %2999 = vst.msk [vmem:[#allocation4 + $0x45] sm:$0x1] %vm2298, 0.0
        %3000 = vst.msk [vmem:[#allocation4 + $0x4d] sm:$0x1] %vm2298, 0.0
        %3001 = vst.msk [vmem:[#allocation4 + $0x55] sm:$0x1] %vm2298, 0.0
        %3002 = vst.msk [vmem:[#allocation4 + $0x5d] sm:$0x1] %vm2298, 0.0
        %v3007 = vrot.slane %v2970, 4
        %v3008 = vrot.slane %v2971, 4
        %v3009 = vrot.slane %v2972, 4
        %v3010 = vrot.slane %v2973, 4
        %s3015 = scalar_lea.vmem [#allocation4], 8
        %3016 = vst.msk [vmem:[%s3015 + $0x1] sm:$0xf] %vm2336, %v2970
        %3017 = vst.msk [vmem:[%s3015 + $0x9] sm:$0xf] %vm2336, %v3007
        %3018 = vst.msk [vmem:[%s3015 + $0x11] sm:$0xf] %vm2336, %v2971
        %3019 = vst.msk [vmem:[%s3015 + $0x19] sm:$0xf] %vm2336, %v3008
        %3020 = vst.msk [vmem:[%s3015 + $0x31] sm:$0xf] %vm2336, %v2972
        %3021 = vst.msk [vmem:[%s3015 + $0x39] sm:$0xf] %vm2336, %v3009
        %3022 = vst.msk [vmem:[%s3015 + $0x41] sm:$0xf] %vm2336, %v2973
        %3023 = vst.msk [vmem:[%s3015 + $0x49] sm:$0xf] %vm2336, %v3010
        %v3024 = vld [vmem:[#allocation4] sm:$0xf]
        %v3025 = vld [vmem:[#allocation4 + $0x8] sm:$0xf]
        %v3026 = vld [vmem:[#allocation4 + $0x10] sm:$0xf]
        %v3027 = vld [vmem:[#allocation4 + $0x18] sm:$0xf]
        %v3028 = vld [vmem:[#allocation4 + $0x30] sm:$0xf]
        %v3029 = vld [vmem:[#allocation4 + $0x38] sm:$0xf]
        %v3030 = vld [vmem:[#allocation4 + $0x40] sm:$0xf]
        %v3031 = vld [vmem:[#allocation4 + $0x48] sm:$0xf]
        %v3032 = vld [vmem:[#allocation4 + $0x1] sm:$0xf]
        %v3033 = vld [vmem:[#allocation4 + $0x9] sm:$0xf]
        %v3034 = vld [vmem:[#allocation4 + $0x11] sm:$0xf]
        %v3035 = vld [vmem:[#allocation4 + $0x19] sm:$0xf]
        %v3036 = vld [vmem:[#allocation4 + $0x31] sm:$0xf]
        %v3037 = vld [vmem:[#allocation4 + $0x39] sm:$0xf]
        %v3038 = vld [vmem:[#allocation4 + $0x41] sm:$0xf]
        %v3039 = vld [vmem:[#allocation4 + $0x49] sm:$0xf]
        %v3040 = vld [vmem:[#allocation4 + $0x2] sm:$0xf]
        %v3041 = vld [vmem:[#allocation4 + $0xa] sm:$0xf]
        %v3042 = vld [vmem:[#allocation4 + $0x12] sm:$0xf]
        %v3043 = vld [vmem:[#allocation4 + $0x1a] sm:$0xf]
        %v3044 = vld [vmem:[#allocation4 + $0x32] sm:$0xf]
        %v3045 = vld [vmem:[#allocation4 + $0x3a] sm:$0xf]
        %v3046 = vld [vmem:[#allocation4 + $0x42] sm:$0xf]
        %v3047 = vld [vmem:[#allocation4 + $0x4a] sm:$0xf]
        %v3048 = vld [vmem:[%s3015] sm:$0xf]
        %v3049 = vld [vmem:[%s3015 + $0x8] sm:$0xf]
        %v3050 = vld [vmem:[%s3015 + $0x10] sm:$0xf]
        %v3051 = vld [vmem:[%s3015 + $0x18] sm:$0xf]
        %v3052 = vld [vmem:[%s3015 + $0x30] sm:$0xf]
        %v3053 = vld [vmem:[%s3015 + $0x38] sm:$0xf]
        %v3054 = vld [vmem:[%s3015 + $0x40] sm:$0xf]
        %v3055 = vld [vmem:[%s3015 + $0x48] sm:$0xf]
        %v3056 = vld [vmem:[%s3015 + $0x1] sm:$0xf]
        %v3057 = vld [vmem:[%s3015 + $0x9] sm:$0xf]
        %v3058 = vld [vmem:[%s3015 + $0x11] sm:$0xf]
        %v3059 = vld [vmem:[%s3015 + $0x19] sm:$0xf]
        %v3060 = vld [vmem:[%s3015 + $0x31] sm:$0xf]
        %v3061 = vld [vmem:[%s3015 + $0x39] sm:$0xf]
        %v3062 = vld [vmem:[%s3015 + $0x41] sm:$0xf]
        %v3063 = vld [vmem:[%s3015 + $0x49] sm:$0xf]
        %v3064 = vld [vmem:[%s3015 + $0x2] sm:$0xf]
        %v3065 = vld [vmem:[%s3015 + $0xa] sm:$0xf]
        %v3066 = vld [vmem:[%s3015 + $0x12] sm:$0xf]
        %v3067 = vld [vmem:[%s3015 + $0x1a] sm:$0xf]
        %v3068 = vld [vmem:[%s3015 + $0x32] sm:$0xf]
        %v3069 = vld [vmem:[%s3015 + $0x3a] sm:$0xf]
        %v3070 = vld [vmem:[%s3015 + $0x42] sm:$0xf]
        %v3071 = vld [vmem:[%s3015 + $0x4a] sm:$0xf]
        %s3072 = scalar_lea.vmem [#allocation4], 16
        %v3073 = vld [vmem:[%s3072] sm:$0xf]
        %v3074 = vld [vmem:[%s3072 + $0x8] sm:$0xf]
        %v3075 = vld [vmem:[%s3072 + $0x10] sm:$0xf]
        %v3076 = vld [vmem:[%s3072 + $0x18] sm:$0xf]
        %v3077 = vld [vmem:[%s3072 + $0x30] sm:$0xf]
        %v3078 = vld [vmem:[%s3072 + $0x38] sm:$0xf]
        %v3079 = vld [vmem:[%s3072 + $0x40] sm:$0xf]
        %v3080 = vld [vmem:[%s3072 + $0x48] sm:$0xf]
        %v3081 = vld [vmem:[%s3072 + $0x1] sm:$0xf]
        %v3082 = vld [vmem:[%s3072 + $0x9] sm:$0xf]
        %v3083 = vld [vmem:[%s3072 + $0x11] sm:$0xf]
        %v3084 = vld [vmem:[%s3072 + $0x19] sm:$0xf]
        %v3085 = vld [vmem:[%s3072 + $0x31] sm:$0xf]
        %v3086 = vld [vmem:[%s3072 + $0x39] sm:$0xf]
        %v3087 = vld [vmem:[%s3072 + $0x41] sm:$0xf]
        %v3088 = vld [vmem:[%s3072 + $0x49] sm:$0xf]
        %v3089 = vld [vmem:[%s3072 + $0x2] sm:$0xf]
        %v3090 = vld [vmem:[%s3072 + $0xa] sm:$0xf]
        %v3091 = vld [vmem:[%s3072 + $0x12] sm:$0xf]
        %v3092 = vld [vmem:[%s3072 + $0x1a] sm:$0xf]
        %v3093 = vld [vmem:[%s3072 + $0x32] sm:$0xf]
        %v3094 = vld [vmem:[%s3072 + $0x3a] sm:$0xf]
        %v3095 = vld [vmem:[%s3072 + $0x42] sm:$0xf]
        %v3096 = vld [vmem:[%s3072 + $0x4a] sm:$0xf]
        %3105 = vrot.lane.b32.xlu0 %v3032, 16
        %v3106 = vpop.permute.xlu0 %3105
        %3107 = vrot.lane.b32.xlu0 %v3033, 16
        %v3108 = vpop.permute.xlu0 %3107
        %3109 = vrot.lane.b32.xlu0 %v3034, 16
        %v3110 = vpop.permute.xlu0 %3109
        %3111 = vrot.lane.b32.xlu0 %v3035, 16
        %v3112 = vpop.permute.xlu0 %3111
        %3113 = vrot.lane.b32.xlu0 %v3036, 16
        %v3114 = vpop.permute.xlu0 %3113
        %3115 = vrot.lane.b32.xlu0 %v3037, 16
        %v3116 = vpop.permute.xlu0 %3115
        %3117 = vrot.lane.b32.xlu0 %v3038, 16
        %v3118 = vpop.permute.xlu0 %3117
        %3119 = vrot.lane.b32.xlu0 %v3039, 16
        %v3120 = vpop.permute.xlu0 %3119
        %3137 = vrot.lane.b32.xlu0 %v3040, 32
        %v3138 = vpop.permute.xlu0 %3137
        %3139 = vrot.lane.b32.xlu0 %v3041, 32
        %v3140 = vpop.permute.xlu0 %3139
        %3141 = vrot.lane.b32.xlu0 %v3042, 32
        %v3142 = vpop.permute.xlu0 %3141
        %3143 = vrot.lane.b32.xlu0 %v3043, 32
        %v3144 = vpop.permute.xlu0 %3143
        %3145 = vrot.lane.b32.xlu0 %v3044, 32
        %v3146 = vpop.permute.xlu0 %3145
        %3147 = vrot.lane.b32.xlu0 %v3045, 32
        %v3148 = vpop.permute.xlu0 %3147
        %3149 = vrot.lane.b32.xlu0 %v3046, 32
        %v3150 = vpop.permute.xlu0 %3149
        %3151 = vrot.lane.b32.xlu0 %v3047, 32
        %v3152 = vpop.permute.xlu0 %3151
        %3169 = vrot.lane.b32.xlu0 %v3048, 48
        %v3170 = vpop.permute.xlu0 %3169
        %3171 = vrot.lane.b32.xlu0 %v3049, 48
        %v3172 = vpop.permute.xlu0 %3171
        %3173 = vrot.lane.b32.xlu0 %v3050, 48
        %v3174 = vpop.permute.xlu0 %3173
        %3175 = vrot.lane.b32.xlu0 %v3051, 48
        %v3176 = vpop.permute.xlu0 %3175
        %3177 = vrot.lane.b32.xlu0 %v3052, 48
        %v3178 = vpop.permute.xlu0 %3177
        %3179 = vrot.lane.b32.xlu0 %v3053, 48
        %v3180 = vpop.permute.xlu0 %3179
        %3181 = vrot.lane.b32.xlu0 %v3054, 48
        %v3182 = vpop.permute.xlu0 %3181
        %3183 = vrot.lane.b32.xlu0 %v3055, 48
        %v3184 = vpop.permute.xlu0 %3183
        %3201 = vrot.lane.b32.xlu0 %v3056, 64
        %v3202 = vpop.permute.xlu0 %3201
        %3203 = vrot.lane.b32.xlu0 %v3057, 64
        %v3204 = vpop.permute.xlu0 %3203
        %3205 = vrot.lane.b32.xlu0 %v3058, 64
        %v3206 = vpop.permute.xlu0 %3205
        %3207 = vrot.lane.b32.xlu0 %v3059, 64
        %v3208 = vpop.permute.xlu0 %3207
        %3209 = vrot.lane.b32.xlu0 %v3060, 64
        %v3210 = vpop.permute.xlu0 %3209
        %3211 = vrot.lane.b32.xlu0 %v3061, 64
        %v3212 = vpop.permute.xlu0 %3211
        %3213 = vrot.lane.b32.xlu0 %v3062, 64
        %v3214 = vpop.permute.xlu0 %3213
        %3215 = vrot.lane.b32.xlu0 %v3063, 64
        %v3216 = vpop.permute.xlu0 %3215
        %3233 = vrot.lane.b32.xlu0 %v3064, 80
        %v3234 = vpop.permute.xlu0 %3233
        %3235 = vrot.lane.b32.xlu0 %v3065, 80
        %v3236 = vpop.permute.xlu0 %3235
        %3237 = vrot.lane.b32.xlu0 %v3066, 80
        %v3238 = vpop.permute.xlu0 %3237
        %3239 = vrot.lane.b32.xlu0 %v3067, 80
        %v3240 = vpop.permute.xlu0 %3239
        %3241 = vrot.lane.b32.xlu0 %v3068, 80
        %v3242 = vpop.permute.xlu0 %3241
        %3243 = vrot.lane.b32.xlu0 %v3069, 80
        %v3244 = vpop.permute.xlu0 %3243
        %3245 = vrot.lane.b32.xlu0 %v3070, 80
        %v3246 = vpop.permute.xlu0 %3245
        %3247 = vrot.lane.b32.xlu0 %v3071, 80
        %v3248 = vpop.permute.xlu0 %3247
        %3265 = vrot.lane.b32.xlu0 %v3073, 96
        %v3266 = vpop.permute.xlu0 %3265
        %3267 = vrot.lane.b32.xlu0 %v3074, 96
        %v3268 = vpop.permute.xlu0 %3267
        %3269 = vrot.lane.b32.xlu0 %v3075, 96
        %v3270 = vpop.permute.xlu0 %3269
        %3271 = vrot.lane.b32.xlu0 %v3076, 96
        %v3272 = vpop.permute.xlu0 %3271
        %3273 = vrot.lane.b32.xlu0 %v3077, 96
        %v3274 = vpop.permute.xlu0 %3273
        %3275 = vrot.lane.b32.xlu0 %v3078, 96
        %v3276 = vpop.permute.xlu0 %3275
        %3277 = vrot.lane.b32.xlu0 %v3079, 96
        %v3278 = vpop.permute.xlu0 %3277
        %3279 = vrot.lane.b32.xlu0 %v3080, 96
        %v3280 = vpop.permute.xlu0 %3279
        %3297 = vrot.lane.b32.xlu0 %v3081, 112
        %v3298 = vpop.permute.xlu0 %3297
        %3299 = vrot.lane.b32.xlu0 %v3082, 112
        %v3300 = vpop.permute.xlu0 %3299
        %3301 = vrot.lane.b32.xlu0 %v3083, 112
        %v3302 = vpop.permute.xlu0 %3301
        %3303 = vrot.lane.b32.xlu0 %v3084, 112
        %v3304 = vpop.permute.xlu0 %3303
        %3305 = vrot.lane.b32.xlu0 %v3085, 112
        %v3306 = vpop.permute.xlu0 %3305
        %3307 = vrot.lane.b32.xlu0 %v3086, 112
        %v3308 = vpop.permute.xlu0 %3307
        %3309 = vrot.lane.b32.xlu0 %v3087, 112
        %v3310 = vpop.permute.xlu0 %3309
        %3311 = vrot.lane.b32.xlu0 %v3088, 112
        %v3312 = vpop.permute.xlu0 %3311
        %v3321 = vsel %vm2034, %v3024, %v3106
        %v3322 = vsel %vm2034, %v3025, %v3108
        %v3323 = vsel %vm2034, %v3026, %v3110
        %v3324 = vsel %vm2034, %v3027, %v3112
        %v3325 = vsel %vm2034, %v3028, %v3114
        %v3326 = vsel %vm2034, %v3029, %v3116
        %v3327 = vsel %vm2034, %v3030, %v3118
        %v3328 = vsel %vm2034, %v3031, %v3120
        %v3329 = vsel %vm2051, %v3321, %v3138
        %v3330 = vsel %vm2051, %v3322, %v3140
        %v3331 = vsel %vm2051, %v3323, %v3142
        %v3332 = vsel %vm2051, %v3324, %v3144
        %v3333 = vsel %vm2051, %v3325, %v3146
        %v3334 = vsel %vm2051, %v3326, %v3148
        %v3335 = vsel %vm2051, %v3327, %v3150
        %v3336 = vsel %vm2051, %v3328, %v3152
        %v3337 = vsel %vm2069, %v3329, %v3170
        %v3338 = vsel %vm2069, %v3330, %v3172
        %v3339 = vsel %vm2069, %v3331, %v3174
        %v3340 = vsel %vm2069, %v3332, %v3176
        %v3341 = vsel %vm2069, %v3333, %v3178
        %v3342 = vsel %vm2069, %v3334, %v3180
        %v3343 = vsel %vm2069, %v3335, %v3182
        %v3344 = vsel %vm2069, %v3336, %v3184
        %v3345 = vsel %vm2087, %v3337, %v3202
        %v3346 = vsel %vm2087, %v3338, %v3204
        %v3347 = vsel %vm2087, %v3339, %v3206
        %v3348 = vsel %vm2087, %v3340, %v3208
        %v3349 = vsel %vm2087, %v3341, %v3210
        %v3350 = vsel %vm2087, %v3342, %v3212
        %v3351 = vsel %vm2087, %v3343, %v3214
        %v3352 = vsel %vm2087, %v3344, %v3216
        %v3353 = vsel %vm2674, %v3345, %v3234
        %v3354 = vsel %vm2674, %v3346, %v3236
        %v3355 = vsel %vm2674, %v3347, %v3238
        %v3356 = vsel %vm2674, %v3348, %v3240
        %v3357 = vsel %vm2674, %v3349, %v3242
        %v3358 = vsel %vm2674, %v3350, %v3244
        %v3359 = vsel %vm2674, %v3351, %v3246
        %v3360 = vsel %vm2674, %v3352, %v3248
        %v3361 = vsel %vm2683, %v3353, %v3266
        %v3362 = vsel %vm2683, %v3354, %v3268
        %v3363 = vsel %vm2683, %v3355, %v3270
        %v3364 = vsel %vm2683, %v3356, %v3272
        %v3365 = vsel %vm2683, %v3357, %v3274
        %v3366 = vsel %vm2683, %v3358, %v3276
        %v3367 = vsel %vm2683, %v3359, %v3278
        %v3368 = vsel %vm2683, %v3360, %v3280
        %v3369 = vsel %vm2692, %v3361, %v3298
        %v3370 = vsel %vm2692, %v3362, %v3300
        %v3371 = vsel %vm2692, %v3363, %v3302
        %v3372 = vsel %vm2692, %v3364, %v3304
        %v3373 = vsel %vm2692, %v3365, %v3306
        %v3374 = vsel %vm2692, %v3366, %v3308
        %v3375 = vsel %vm2692, %v3367, %v3310
        %v3376 = vsel %vm2692, %v3368, %v3312
        %v3393 = vrot.slane %v3089, 4
        %v3394 = vrot.slane %v3090, 4
        %v3395 = vrot.slane %v3091, 4
        %v3396 = vrot.slane %v3092, 4
        %v3397 = vrot.slane %v3093, 4
        %v3398 = vrot.slane %v3094, 4
        %v3399 = vrot.slane %v3095, 4
        %v3400 = vrot.slane %v3096, 4
        %v3401 = vsel %vm2176, %v3369, %v3393
        %v3402 = vsel %vm2176, %v3370, %v3394
        %v3403 = vsel %vm2176, %v3371, %v3395
        %v3404 = vsel %vm2176, %v3372, %v3396
        %v3405 = vsel %vm2176, %v3373, %v3397
        %v3406 = vsel %vm2176, %v3374, %v3398
        %v3407 = vsel %vm2176, %v3375, %v3399
        %v3408 = vsel %vm2176, %v3376, %v3400
        %3409 = vst [vmem:[#allocation1] ss:$2 sm:$0xff] %v3401
        %s3410 = scalar_lea.vmem [#allocation1], 1
        %3411 = vst [vmem:[%s3410] ss:$2 sm:$0xff] %v3402
        %s3412 = scalar_lea.vmem [#allocation1], 16
        %3413 = vst [vmem:[%s3412] ss:$2 sm:$0xff] %v3403
        %s3414 = scalar_lea.vmem [#allocation1], 17
        %3415 = vst [vmem:[%s3414] ss:$2 sm:$0xff] %v3404
        %s3416 = scalar_lea.vmem [#allocation1], 32
        %3417 = vst [vmem:[%s3416] ss:$2 sm:$0xff] %v3405
        %s3418 = scalar_lea.vmem [#allocation1], 33
        %3419 = vst [vmem:[%s3418] ss:$2 sm:$0xff] %v3406
        %s3420 = scalar_lea.vmem [#allocation1], 48
        %3421 = vst [vmem:[%s3420] ss:$2 sm:$0xff] %v3407
        %s3422 = scalar_lea.vmem [#allocation1], 49
        %3423 = vst [vmem:[%s3422] ss:$2 sm:$0xff] %v3408
        %v3424 = vld.sshfl [vmem:[#allocation1] sm:$0xff pattern:$0x75316420]
        %v3425 = vld.sshfl [vmem:[#allocation1 + $0x8] sm:$0xff pattern:$0x75316420]
        %v3426 = vld.sshfl [vmem:[#allocation1 + $0x10] sm:$0xff pattern:$0x75316420]
        %v3427 = vld.sshfl [vmem:[#allocation1 + $0x18] sm:$0xff pattern:$0x75316420]
        %v3428 = vld.sshfl [vmem:[#allocation1 + $0x20] sm:$0xff pattern:$0x75316420]
        %v3429 = vld.sshfl [vmem:[#allocation1 + $0x28] sm:$0xff pattern:$0x75316420]
        %v3430 = vld.sshfl [vmem:[#allocation1 + $0x30] sm:$0xff pattern:$0x75316420]
        %v3431 = vld.sshfl [vmem:[#allocation1 + $0x38] sm:$0xff pattern:$0x75316420]
        %v3440 = vpack.c.bf16 %v3426, %v3424
        %v3441 = vpack.c.bf16 %v3427, %v3425
        %v3442 = vpack.c.bf16 %v3430, %v3428
        %v3443 = vpack.c.bf16 %v3431, %v3429
        %v3444 = vld [vmem:[%s463] sm:$0xf]
        %v3445 = vld [vmem:[%s463 + $0x4] sm:$0xf]
        %v3446 = vld [vmem:[%s463 + $0x8] sm:$0xf]
        %v3447 = vld [vmem:[%s463 + $0xc] sm:$0xf]
        %v3448 = vld [vmem:[%s463 + $0x10] sm:$0xf]
        %v3449 = vld [vmem:[%s463 + $0x14] sm:$0xf]
        %v3450 = vld [vmem:[%s463 + $0x18] sm:$0xf]
        %v3451 = vld [vmem:[%s463 + $0x1c] sm:$0xf]
        %v3452 = vld [vmem:[%s463 + $0x20] sm:$0xf]
        %v3453 = vld [vmem:[%s463 + $0x24] sm:$0xf]
        %v3454 = vld [vmem:[%s463 + $0x28] sm:$0xf]
        %v3455 = vld [vmem:[%s463 + $0x2c] sm:$0xf]
        %v3456 = vld [vmem:[%s463 + $0x30] sm:$0xf]
        %v3457 = vld [vmem:[%s463 + $0x34] sm:$0xf]
        %v3458 = vld [vmem:[%s463 + $0x38] sm:$0xf]
        %v3459 = vld [vmem:[%s463 + $0x3c] sm:$0xf]
        %v3460 = vld [vmem:[%s463 + $0x40] sm:$0xf]
        %v3461 = vld [vmem:[%s463 + $0x44] sm:$0xf]
        %v3462 = vld [vmem:[%s466] sm:$0x1]
        %v3464 = vperm.slane %v3462, 0
        %v3484 = vunpack.c.l.b16 %v3444
        %v3485 = vunpack.c.l.b16 %v3445
        %v3486 = vunpack.c.l.b16 %v3446
        %v3487 = vunpack.c.l.b16 %v3447
        %v3488 = vunpack.c.l.b16 %v3448
        %v3489 = vunpack.c.l.b16 %v3449
        %v3490 = vunpack.c.l.b16 %v3450
        %v3491 = vunpack.c.l.b16 %v3451
        %v3492 = vunpack.c.l.b16 %v3452
        %v3493 = vunpack.c.l.b16 %v3453
        %v3494 = vunpack.c.l.b16 %v3454
        %v3495 = vunpack.c.l.b16 %v3455
        %v3496 = vunpack.c.l.b16 %v3456
        %v3497 = vunpack.c.l.b16 %v3457
        %v3498 = vunpack.c.l.b16 %v3458
        %v3499 = vunpack.c.l.b16 %v3459
        %v3500 = vunpack.c.l.b16 %v3460
        %v3501 = vunpack.c.l.b16 %v3461
        %v3502 = vpack.c.b16 %v3485, %v3484
        %v3503 = vpack.c.b16 %v3487, %v3486
        %v3504 = vpack.c.b16 %v3489, %v3488
        %v3505 = vpack.c.b16 %v3491, %v3490
        %v3506 = vpack.c.b16 %v3493, %v3492
        %v3507 = vpack.c.b16 %v3495, %v3494
        %v3508 = vpack.c.b16 %v3497, %v3496
        %v3509 = vpack.c.b16 %v3499, %v3498
        %v3510 = vpack.c.b16 %v3501, %v3500
        %v3521 = vsel %vm2034, %v3441, 0
        %v3524 = vsel %vm2034, %v3443, 0
        %3526 = vmatpush.bf16.msra.mxu0 %v3509
        %3527 = vmatpush.bf16.msra.mxu0 %v3508
        %3528 = vmatpush.bf16.msra.mxu0 %v3507
        %3529 = vmatpush.bf16.msra.mxu0 %v3506
        %3530 = vmatpush.bf16.msra.mxu0 %v3505
        %3531 = vmatpush.bf16.msra.mxu0 %v3504
        %3532 = vmatpush.bf16.msra.mxu0 %v3503
        %3533 = vmatpush.bf16.msra.mxu0 %v3502
        %3534 = vmatmul.bf16.gmra.mxu0 %v3440
        %v3535 = vpop.f32.mrf.mxu0
        %v3536 = vadd.f32 %v3464, %v3535
        %v3537 = vpop.f32.mrf.mxu0
        %v3538 = vadd.f32 %v3464, %v3537
        %3539 = vmatmul.bf16.gmra.mxu0 %v3442
        %v3540 = vpop.f32.mrf.mxu0
        %v3541 = vadd.f32 %v3464, %v3540
        %v3542 = vpop.f32.mrf.mxu0
        %v3543 = vadd.f32 %v3464, %v3542
        %3544 = vdwg.mxu0
        %3545 = vmatpush.bf16.msra.mxu0 0
        %3546 = vmatpush.bf16.msra.mxu0 0
        %3547 = vmatpush.bf16.msra.mxu0 0
        %3548 = vmatpush.bf16.msra.mxu0 0
        %3549 = vmatpush.bf16.msra.mxu0 0
        %3550 = vmatpush.bf16.msra.mxu0 0
        %3551 = vmatpush.bf16.msra.mxu0 0
        %3552 = vmatpush.bf16.msra.mxu0 %v3510
        %3553 = vmatmul.bf16.gmra.mxu0 %v3521
        %v3554 = vpop.f32.mrf.mxu0
        %v3555 = vadd.f32 %v3536, %v3554
        %v3556 = vpop.f32.mrf.mxu0
        %v3557 = vadd.f32 %v3538, %v3556
        %3558 = vmatmul.bf16.gmra.mxu0 %v3524
        %v3559 = vpop.f32.mrf.mxu0
        %v3560 = vadd.f32 %v3541, %v3559
        %v3561 = vpop.f32.mrf.mxu0
        %v3562 = vadd.f32 %v3543, %v3561
        %3563 = vdwg.mxu0
        %3568 = vset.pattern.permute.xlu0 0
        %3569 = vperm.xlu0 %3568, %v3555
        %v3570 = vpop.permute.xlu0 %3569
        %3571 = vset.pattern.permute.xlu0 0
        %3572 = vperm.xlu0 %3571, %v3557
        %v3573 = vpop.permute.xlu0 %3572
        %3574 = vset.pattern.permute.xlu0 0
        %3575 = vperm.xlu0 %3574, %v3560
        %v3576 = vpop.permute.xlu0 %3575
        %3577 = vset.pattern.permute.xlu0 0
        %3578 = vperm.xlu0 %3577, %v3562
        %v3579 = vpop.permute.xlu0 %3578
        %v3580 = vlaneseq
        %v3581 = vand.u32 %v3580, 127
        %v3582 = vperm.slane %v3570, %v3581
        %v3583 = vadd.s32 %v3581, 4294967288
        %v3584 = vperm.slane %v3573, %v3583
        %vm3585 = vcmask 130112
        %v3586 = vsel %vm3585, %v3584, %v3582
        %v3587 = vperm.slane %v3576, %v3581
        %v3588 = vperm.slane %v3579, %v3583
        %v3589 = vsel %vm3585, %v3588, %v3587
        %vm3590 = vcmask 1041409
        %v3591 = vsel %vm3590, %v3589, %v3586
        %vm3593 = vcmask 123904
        %3594 = vst.msk [vmem:[%s429] sm:$0x3] %vm3593, %v3591
        %s3595 = sand.u32 %s265, 1
        %s3596 = scalar_lea.sflag [#allocation6], %s3595
        %s3597 = sand.u32 %s265, 1
        %s3598 = smul.addr %s3597, 2
        %s3599 = scalar_lea.vmem [#allocation5], %s3598
        // Predicated region
        $region57: #{tpu_custom_call.1} parent=55 // pred_check
          %p3600 = pneg %p275
        $region58: #{tpu_custom_call.1} parent=55 // pred_check_branch
          %3602 = sbr.rel (%p3600) target = $region60
        $region59: #{tpu_custom_call.1} parent=55 // pred_region
          %3604 = vsyncadd %s3596, 0
          %s3605 = smul.addr %s23, 2
          %s3606 = scalar_lea.hbm %s9, %s3605
          %s3608 = sshll.u32 %s3599, 4
          %s3609 = int_to_ptr.vmem [resolvable:$true] %s3608
          %s3610 = sshll.u32 %s3606, 4
          %s3611 = int_to_ptr.hbm [resolvable:$true] %s3610
          %3613 = dma.vmem_to_hbm [thread:$0]  %s3609, 32, %s3611, %s3596
        $region60: #{tpu_custom_call.1} parent=55 // pred_fallthru
          _
      $region56: #{tpu_custom_call.1} parent=5 // pred_fallthru
        _
      %p3614 = scmp.le.s32.totalorder 2, %s18
      // Predicated region
      $region61: #{tpu_custom_call.1} parent=5 // pred_check
        %p3615 = pneg %p3614
      $region62: #{tpu_custom_call.1} parent=5 // pred_check_branch
        %3617 = sbr.rel (%p3615) target = $region64
      $region63: #{tpu_custom_call.1} parent=5 // pred_region
        %s3618 = ssub.s32 %s18, 2
        // Predicated region
        $region65: #{tpu_custom_call.1} parent=63 // pred_check
          %p3619 = pneg %p281
        $region66: #{tpu_custom_call.1} parent=63 // pred_check_branch
          %3621 = sbr.rel (%p3619) target = $region68
        $region67: #{tpu_custom_call.1} parent=63 // pred_region
          %s3622 = sand.u32 %s266, 1
          %s3623 = scalar_lea.sflag [#allocation6], %s3622
          %s3624 = sand.u32 %s266, 1
          %s3625 = smul.addr %s3624, 2
          %s3626 = scalar_lea.vmem [#allocation5], %s3625
          %3628 = dma.done %s3623, 32
        $region68: #{tpu_custom_call.1} parent=63 // pred_fallthru
          _
      $region64: #{tpu_custom_call.1} parent=5 // pred_fallthru
        _
    $region6: #{tpu_custom_call.1} parent=1 // loop_footer
      %s22 = sadd.s32 1, %s18
    $region7: #{tpu_custom_call.1} parent=1 // loop_footer_branch
      %17 = sbr.rel target = $region3
    $region8: #{tpu_custom_call.1} parent=1 // loop_exit
      _
    %3629 = vsyncpa [#allocation6], 1
    %s3630 = scalar_lea.sflag [#allocation6], 1
    %3631 = vsyncpa %s3630, 1

</llo_original>
